<compile_context>
chip_gen: v6e
topology: v6e:2x2x1
jax: 0.10.0
libtpu: 0.0.40
codegen_flags: <defaults>
</compile_context>

<pallas_src>
import functools

import jax
import jax.numpy as jnp
from jax import lax
from jax.experimental import pallas as pl
from jax.experimental.pallas import tpu as pltpu


def _block3d_kernel(x_ref, w_ref, aff_ref, mask_ref, o_ref, patches_ref,
                    *, D, H, W, C):
    """Fused L-layer [BN(eval) + Conv3d(3,1,1) + bias + ReLU], one batch element.

    Lane-dense layout (channels on sublanes, flattened spatial on lanes):
      x_ref:       (1, C, D*H*W)     layer-1 input (channels zero-padded to C)
      w_ref:       (L, C, 27*C+8)    per-layer im2col weights, bias in col 27*C
      aff_ref:     (L, 2, C, 1)      [l,0] = BN scale, [l,1] = BN shift
      mask_ref:    (26, D*H*W)       halo validity masks (non-centre taps)
      o_ref:       (1, C, D*H*W)     last-layer output
      patches_ref: (27*C+8, D*H*W)   f32 VMEM scratch (im2col patch matrix)
    """
    DHW = D * H * W
    L = w_ref.shape[0]
    KROWS = patches_ref.shape[0]
    PAD_ROWS = KROWS - 27 * C           # 8: ones row (bias) + 7 zero rows

    # Constant tail of the patch matrix: row 27*C = 1.0 (multiplies the bias
    # column of w), remaining pad rows = 0. Written every grid step so it is
    # correct when the batch grid is sharded across TensorCores.
    row_id = lax.broadcasted_iota(jnp.int32, (PAD_ROWS, DHW), 0)
    patches_ref[pl.ds(27 * C, PAD_ROWS), :] = (row_id == 0).astype(jnp.float32)

    a = x_ref[0].astype(jnp.float32)
    for l in range(L):
        # Exact eval-mode BatchNorm affine applied in-kernel on unscaled conv
        # weights (robust even for near-zero gamma). Masked (padded) halo taps
        # contribute exactly 0, same as Conv3d zero-padding the BN output.
        a = a * aff_ref[l, 0] + aff_ref[l, 1]

        # im2col: each tap goes straight into the VMEM scratch (bounded live
        # set, no concatenate, no spill, no extra copy pass). Halo handling is
        # an XLU lane rotation + precomputed boundary mask (mask == padding).
        t = 0
        mi = 0
        for kd in range(3):
            for kh in range(3):
                for kw in range(3):
                    dd, hh, ww = kd - 1, kh - 1, kw - 1
                    off = dd * H * W + hh * W + ww
                    if dd == 0 and hh == 0 and ww == 0:
                        tap = a
                    else:
                        shifted = pltpu.roll(a, shift=(-off) % DHW, axis=1)
                        tap = shifted * mask_ref[pl.ds(mi, 1), :]
                        mi += 1
                    patches_ref[pl.ds(t * C, C), :] = tap
                    t += 1

        # One MXU matmul per layer; conv bias folded in via the ones row.
        acc = jnp.dot(w_ref[l], patches_ref[...],
                      preferred_element_type=jnp.float32)     # (C, DHW)
        a = jnp.maximum(acc, 0.0)                              # ReLU

    o_ref[0] = a.astype(o_ref.dtype)


def block3d_forward(x_ncdhw, params):
    """Eval-mode Block3D forward.

    x_ncdhw: (N, Cin, D, H, W) float32 (PyTorch NCDHW layout).
    params:  list of (bn_scale, bn_shift, conv_w[O,I,3,3,3], conv_bias) per
             layer, where bn_scale = gamma/sqrt(var+eps),
             bn_shift = beta - mean*bn_scale.
    Returns: (N, C, D, H, W) float32.
    """
    N, Cin, D, H, W = x_ncdhw.shape
    DHW = D * H * W
    C = params[0][2].shape[0]          # ch (= Cout of every layer)
    L = len(params)
    PAD_ROWS = 8
    K = 27 * C + PAD_ROWS

    # Channels-first, flattened-spatial-on-lanes activations; pad Cin -> C.
    x = x_ncdhw.reshape(N, Cin, DHW).astype(jnp.float32)
    if Cin < C:
        x = jnp.pad(x, ((0, 0), (0, C - Cin), (0, 0)))

    # Pack per-layer weights (unscaled, bias as an extra column) and the BN
    # affine (scale, shift) applied in-kernel.
    w_all, aff_all = [], []
    for scale, shift, w, b in params:
        cout, cin = w.shape[0], w.shape[1]
        assert cout == C and cin <= C
        scale_p, shift_p = scale, shift
        if cin < C:
            w = jnp.pad(w, ((0, 0), (0, C - cin), (0, 0), (0, 0), (0, 0)))
            scale_p = jnp.pad(scale, (0, C - cin), constant_values=1.0)
            shift_p = jnp.pad(shift, (0, C - cin))
        # (O,I,kd,kh,kw) -> (O,kd,kh,kw,I) -> (O, 27*C): column order matches
        # the kernel's tap-major / channel-minor im2col rows.
        wf = jnp.transpose(w, (0, 2, 3, 4, 1)).reshape(C, 27 * C)
        wf = jnp.concatenate(
            [wf, b.reshape(C, 1), jnp.zeros((C, PAD_ROWS - 1), wf.dtype)],
            axis=1)                                              # (C, K)
        w_all.append(wf)
        aff_all.append(jnp.stack([scale_p.reshape(C, 1),
                                  shift_p.reshape(C, 1)], 0))
    w_all = jnp.stack(w_all, axis=0).astype(jnp.float32)         # (L, C, K)
    aff_all = jnp.stack(aff_all, axis=0).astype(jnp.float32)     # (L, 2, C, 1)

    # 26 boundary masks for the non-centre taps, built ONCE in the wrapper
    # (hoisted out of the per-grid-step kernel body) and DMA'd once into VMEM
    # via a constant index_map.
    lane = jnp.arange(DHW, dtype=jnp.int32)
    dpos = lane // (H * W)
    hpos = (lane // W) % H
    wpos = lane % W
    mask_rows = []
    for kd in range(3):
        for kh in range(3):
            for kw in range(3):
                dd, hh, ww = kd - 1, kh - 1, kw - 1
                if dd == 0 and hh == 0 and ww == 0:
                    continue
                valid = ((dpos + dd >= 0) & (dpos + dd < D) &
                         (hpos + hh >= 0) & (hpos + hh < H) &
                         (wpos + ww >= 0) & (wpos + ww < W))
                mask_rows.append(valid.astype(jnp.float32))
    masks = jnp.stack(mask_rows, axis=0)                         # (26, DHW)

    # Explicit VMEM budget: double-buffered x/out blocks + resident weights /
    # masks / affine + the patches scratch, with 4x headroom. Recompute this
    # when scaling block sizes (v7x physical VMEM is 64 MiB, not 128).
    bytes_f32 = 4
    est = bytes_f32 * (2 * C * DHW        # x block (double-buffered)
                       + 2 * C * DHW      # out block (double-buffered)
                       + 2 * L * C * K    # weights
                       + 2 * 26 * DHW     # masks
                       + 2 * L * 2 * C    # affine
                       + K * DHW)         # patches scratch
    vmem_limit = max(4 * est, 8 * 1024 * 1024)

    out = pl.pallas_call(
        functools.partial(_block3d_kernel, D=D, H=H, W=W, C=C),
        out_shape=jax.ShapeDtypeStruct((N, C, DHW), jnp.float32),
        grid=(N,),
        in_specs=[
            pl.BlockSpec((1, C, DHW), lambda n: (n, 0, 0)),
            pl.BlockSpec((L, C, K), lambda n: (0, 0, 0)),
            pl.BlockSpec((L, 2, C, 1), lambda n: (0, 0, 0, 0)),
            pl.BlockSpec((26, DHW), lambda n: (0, 0)),
        ],
        out_specs=pl.BlockSpec((1, C, DHW), lambda n: (n, 0, 0)),
        scratch_shapes=[pltpu.VMEM((K, DHW), jnp.float32)],
        compiler_params=pltpu.CompilerParams(
            dimension_semantics=("parallel",),
            vmem_limit_bytes=vmem_limit),
    )(x, w_all, aff_all, masks)
    return out.reshape(N, C, D, H, W)


def _ref_forward(x_ncdhw, params):
    """Pure-JAX reference: eval BN -> Conv3d(k=3,s=1,p=1) -> bias -> ReLU, x3."""
    y = x_ncdhw
    for scale, shift, w, b in params:
        cin = y.shape[1]
        yb = y * scale.reshape(1, cin, 1, 1, 1) + shift.reshape(1, cin, 1, 1, 1)
        y = lax.conv_general_dilated(
            yb, w, window_strides=(1, 1, 1),
            padding=((1, 1), (1, 1), (1, 1)),
            dimension_numbers=("NCDHW", "OIDHW", "NCDHW"))
        y = jnp.maximum(y + b.reshape(1, -1, 1, 1, 1), 0.0)
    return y


if __name__ == "__main__":
    key = jax.random.PRNGKey(0)
    N, Cin, D, H, W = 2, 4, 8, 8, 8        # PyTorch input NCDHW = (2, 4, 8, 8, 8)
    ch = 8                                  # Block3D(ch=8)
    eps = 1e-5

    keys = iter(jax.random.split(key, 32))
    x = jax.random.normal(next(keys), (N, Cin, D, H, W), jnp.float32)

    # Deterministic synthetic eval-mode parameters for the 3 fused layers.
    params = []
    cin = Cin
    for _ in range(3):
        gamma = 1.0 + 0.1 * jax.random.normal(next(keys), (cin,), jnp.float32)
        beta = 0.1 * jax.random.normal(next(keys), (cin,), jnp.float32)
        r_mean = 0.1 * jax.random.normal(next(keys), (cin,), jnp.float32)
        r_var = jax.random.uniform(next(keys), (cin,), jnp.float32, 0.5, 1.5)
        scale = gamma / jnp.sqrt(r_var + eps)
        shift = beta - r_mean * scale
        # PyTorch Conv3d weight layout (Cout, Cin, kD, kH, kW) == OIDHW.
        w = 0.1 * jax.random.normal(next(keys), (ch, cin, 3, 3, 3), jnp.float32)
        b = 0.1 * jax.random.normal(next(keys), (ch,), jnp.float32)
        params.append((scale, shift, w, b))
        cin = ch

    fwd = jax.jit(block3d_forward)
    y = jax.block_until_ready(fwd(x, params))
    y_ref = _ref_forward(x, params)

    assert y.shape == (N, ch, D, H, W)
    # All-f32 kernel (bf16 MXU operands deliberately deferred), so the strict
    # f32 tolerance from the previous version is kept.
    if not jnp.allclose(y, y_ref, atol=2e-4, rtol=2e-4):
        max_err = float(jnp.max(jnp.abs(y - y_ref)))
        raise AssertionError(f"Pallas kernel mismatch vs JAX reference "
                             f"(max abs err = {max_err})")
    print("KERNEL_OK")
</pallas_src>

<mosaic_0001>
module attributes {stable_mosaic.version = 11 : i64} {
  func.func @_block3d_kernel(%arg0: i32, %arg1: memref<1x8x512xf32, #tpu.memory_space<vmem>>, %arg2: memref<3x8x224xf32, #tpu.memory_space<vmem>>, %arg3: memref<3x2x8x1xf32, #tpu.memory_space<vmem>>, %arg4: memref<26x512xf32, #tpu.memory_space<vmem>>, %arg5: memref<1x8x512xf32, #tpu.memory_space<vmem>>, %arg6: memref<224x512xf32, #tpu.memory_space<vmem>>) attributes {dimension_semantics = [#tpu.dimension_semantics<parallel>], iteration_bounds = array<i64: 2>, scalar_prefetch = 0 : i64, scratch_operands = 1 : i64, tpu.core_type = #tpu.core_type<tc>, window_params = [{transform_indices = @transform_0, window_bounds = array<i64: 1, 8, 512>}, {pipeline_mode = #tpu.pipeline_mode<synchronous>, transform_indices = @transform_1, window_bounds = array<i64: 3, 8, 224>}, {pipeline_mode = #tpu.pipeline_mode<synchronous>, transform_indices = @transform_2, window_bounds = array<i64: 3, 2, 8, 1>}, {pipeline_mode = #tpu.pipeline_mode<synchronous>, transform_indices = @transform_3, window_bounds = array<i64: 26, 512>}, {transform_indices = @transform_4, window_bounds = array<i64: 1, 8, 512>}]} {
    %0 = tpu.iota {dimensions = array<i32: 0>} : vector<8x512xi32>
    %c0_i32 = arith.constant 0 : i32
    %1 = vector.broadcast %c0_i32 : i32 to vector<8x512xi32>
    %2 = arith.cmpi eq, %0, %1 : vector<8x512xi32>
    %3 = arith.extui %2 : vector<8x512xi1> to vector<8x512xi32>
    %4 = arith.sitofp %3 : vector<8x512xi32> to vector<8x512xf32>
    %c216 = arith.constant 216 : index
    %c0 = arith.constant 0 : index
    %5 = vector.load %arg6[%c216, %c0] : memref<224x512xf32, #tpu.memory_space<vmem>>, vector<8x512xf32>
    tpu.vector_store %arg6[%c216, %c0], %4 {strides = array<i32>} : memref<224x512xf32, #tpu.memory_space<vmem>>, vector<8x512xf32>,
    %c0_0 = arith.constant 0 : index
    %c0_1 = arith.constant 0 : index
    %c0_2 = arith.constant 0 : index
    %6 = vector.load %arg1[%c0_0, %c0_1, %c0_2] : memref<1x8x512xf32, #tpu.memory_space<vmem>>, vector<1x8x512xf32>
    %7 = vector.shape_cast %6 : vector<1x8x512xf32> to vector<8x512xf32>
    %c0_3 = arith.constant 0 : index
    %c0_4 = arith.constant 0 : index
    %c0_5 = arith.constant 0 : index
    %c0_6 = arith.constant 0 : index
    %8 = vector.load %arg3[%c0_3, %c0_4, %c0_5, %c0_6] : memref<3x2x8x1xf32, #tpu.memory_space<vmem>>, vector<1x1x8x1xf32>
    %9 = vector.shape_cast %8 : vector<1x1x8x1xf32> to vector<8x1xf32>
    %10 = vector.broadcast %9 : vector<8x1xf32> to vector<8x512xf32>
    %11 = arith.mulf %7, %10 : vector<8x512xf32>
    %c0_7 = arith.constant 0 : index
    %c1 = arith.constant 1 : index
    %c0_8 = arith.constant 0 : index
    %c0_9 = arith.constant 0 : index
    %12 = vector.load %arg3[%c0_7, %c1, %c0_8, %c0_9] : memref<3x2x8x1xf32, #tpu.memory_space<vmem>>, vector<1x1x8x1xf32>
    %13 = vector.shape_cast %12 : vector<1x1x8x1xf32> to vector<8x1xf32>
    %14 = vector.broadcast %13 : vector<8x1xf32> to vector<8x512xf32>
    %15 = arith.addf %11, %14 : vector<8x512xf32>
    %c73_i32 = arith.constant 73 : i32
    %16 = tpu.dynamic_rotate %15 by %c73_i32 dim 1 : vector<8x512xf32>, i32 -> vector<8x512xf32>
    %c0_10 = arith.constant 0 : index
    %c0_11 = arith.constant 0 : index
    %17 = vector.load %arg4[%c0_10, %c0_11] : memref<26x512xf32, #tpu.memory_space<vmem>>, vector<1x512xf32>
    %18 = vector.broadcast %17 : vector<1x512xf32> to vector<8x512xf32>
    %19 = arith.mulf %16, %18 : vector<8x512xf32>
    %c0_12 = arith.constant 0 : index
    %c0_13 = arith.constant 0 : index
    %20 = vector.load %arg6[%c0_12, %c0_13] : memref<224x512xf32, #tpu.memory_space<vmem>>, vector<8x512xf32>
    tpu.vector_store %arg6[%c0_12, %c0_13], %19 {strides = array<i32>} : memref<224x512xf32, #tpu.memory_space<vmem>>, vector<8x512xf32>,
    %c72_i32 = arith.constant 72 : i32
    %21 = tpu.dynamic_rotate %15 by %c72_i32 dim 1 : vector<8x512xf32>, i32 -> vector<8x512xf32>
    %c1_14 = arith.constant 1 : index
    %c0_15 = arith.constant 0 : index
    %22 = vector.load %arg4[%c1_14, %c0_15] : memref<26x512xf32, #tpu.memory_space<vmem>>, vector<1x512xf32>
    %23 = vector.broadcast %22 : vector<1x512xf32> to vector<8x512xf32>
    %24 = arith.mulf %21, %23 : vector<8x512xf32>
    %c8 = arith.constant 8 : index
    %c0_16 = arith.constant 0 : index
    %25 = vector.load %arg6[%c8, %c0_16] : memref<224x512xf32, #tpu.memory_space<vmem>>, vector<8x512xf32>
    tpu.vector_store %arg6[%c8, %c0_16], %24 {strides = array<i32>} : memref<224x512xf32, #tpu.memory_space<vmem>>, vector<8x512xf32>,
    %c71_i32 = arith.constant 71 : i32
    %26 = tpu.dynamic_rotate %15 by %c71_i32 dim 1 : vector<8x512xf32>, i32 -> vector<8x512xf32>
    %c2 = arith.constant 2 : index
    %c0_17 = arith.constant 0 : index
    %27 = vector.load %arg4[%c2, %c0_17] : memref<26x512xf32, #tpu.memory_space<vmem>>, vector<1x512xf32>
    %28 = vector.broadcast %27 : vector<1x512xf32> to vector<8x512xf32>
    %29 = arith.mulf %26, %28 : vector<8x512xf32>
    %c16 = arith.constant 16 : index
    %c0_18 = arith.constant 0 : index
    %30 = vector.load %arg6[%c16, %c0_18] : memref<224x512xf32, #tpu.memory_space<vmem>>, vector<8x512xf32>
    tpu.vector_store %arg6[%c16, %c0_18], %29 {strides = array<i32>} : memref<224x512xf32, #tpu.memory_space<vmem>>, vector<8x512xf32>,
    %c65_i32 = arith.constant 65 : i32
    %31 = tpu.dynamic_rotate %15 by %c65_i32 dim 1 : vector<8x512xf32>, i32 -> vector<8x512xf32>
    %c3 = arith.constant 3 : index
    %c0_19 = arith.constant 0 : index
    %32 = vector.load %arg4[%c3, %c0_19] : memref<26x512xf32, #tpu.memory_space<vmem>>, vector<1x512xf32>
    %33 = vector.broadcast %32 : vector<1x512xf32> to vector<8x512xf32>
    %34 = arith.mulf %31, %33 : vector<8x512xf32>
    %c24 = arith.constant 24 : index
    %c0_20 = arith.constant 0 : index
    %35 = vector.load %arg6[%c24, %c0_20] : memref<224x512xf32, #tpu.memory_space<vmem>>, vector<8x512xf32>
    tpu.vector_store %arg6[%c24, %c0_20], %34 {strides = array<i32>} : memref<224x512xf32, #tpu.memory_space<vmem>>, vector<8x512xf32>,
    %c64_i32 = arith.constant 64 : i32
    %36 = tpu.dynamic_rotate %15 by %c64_i32 dim 1 : vector<8x512xf32>, i32 -> vector<8x512xf32>
    %c4 = arith.constant 4 : index
    %c0_21 = arith.constant 0 : index
    %37 = vector.load %arg4[%c4, %c0_21] : memref<26x512xf32, #tpu.memory_space<vmem>>, vector<1x512xf32>
    %38 = vector.broadcast %37 : vector<1x512xf32> to vector<8x512xf32>
    %39 = arith.mulf %36, %38 : vector<8x512xf32>
    %c32 = arith.constant 32 : index
    %c0_22 = arith.constant 0 : index
    %40 = vector.load %arg6[%c32, %c0_22] : memref<224x512xf32, #tpu.memory_space<vmem>>, vector<8x512xf32>
    tpu.vector_store %arg6[%c32, %c0_22], %39 {strides = array<i32>} : memref<224x512xf32, #tpu.memory_space<vmem>>, vector<8x512xf32>,
    %c63_i32 = arith.constant 63 : i32
    %41 = tpu.dynamic_rotate %15 by %c63_i32 dim 1 : vector<8x512xf32>, i32 -> vector<8x512xf32>
    %c5 = arith.constant 5 : index
    %c0_23 = arith.constant 0 : index
    %42 = vector.load %arg4[%c5, %c0_23] : memref<26x512xf32, #tpu.memory_space<vmem>>, vector<1x512xf32>
    %43 = vector.broadcast %42 : vector<1x512xf32> to vector<8x512xf32>
    %44 = arith.mulf %41, %43 : vector<8x512xf32>
    %c40 = arith.constant 40 : index
    %c0_24 = arith.constant 0 : index
    %45 = vector.load %arg6[%c40, %c0_24] : memref<224x512xf32, #tpu.memory_space<vmem>>, vector<8x512xf32>
    tpu.vector_store %arg6[%c40, %c0_24], %44 {strides = array<i32>} : memref<224x512xf32, #tpu.memory_space<vmem>>, vector<8x512xf32>,
    %c57_i32 = arith.constant 57 : i32
    %46 = tpu.dynamic_rotate %15 by %c57_i32 dim 1 : vector<8x512xf32>, i32 -> vector<8x512xf32>
    %c6 = arith.constant 6 : index
    %c0_25 = arith.constant 0 : index
    %47 = vector.load %arg4[%c6, %c0_25] : memref<26x512xf32, #tpu.memory_space<vmem>>, vector<1x512xf32>
    %48 = vector.broadcast %47 : vector<1x512xf32> to vector<8x512xf32>
    %49 = arith.mulf %46, %48 : vector<8x512xf32>
    %c48 = arith.constant 48 : index
    %c0_26 = arith.constant 0 : index
    %50 = vector.load %arg6[%c48, %c0_26] : memref<224x512xf32, #tpu.memory_space<vmem>>, vector<8x512xf32>
    tpu.vector_store %arg6[%c48, %c0_26], %49 {strides = array<i32>} : memref<224x512xf32, #tpu.memory_space<vmem>>, vector<8x512xf32>,
    %c56_i32 = arith.constant 56 : i32
    %51 = tpu.dynamic_rotate %15 by %c56_i32 dim 1 : vector<8x512xf32>, i32 -> vector<8x512xf32>
    %c7 = arith.constant 7 : index
    %c0_27 = arith.constant 0 : index
    %52 = vector.load %arg4[%c7, %c0_27] : memref<26x512xf32, #tpu.memory_space<vmem>>, vector<1x512xf32>
    %53 = vector.broadcast %52 : vector<1x512xf32> to vector<8x512xf32>
    %54 = arith.mulf %51, %53 : vector<8x512xf32>
    %c56 = arith.constant 56 : index
    %c0_28 = arith.constant 0 : index
    %55 = vector.load %arg6[%c56, %c0_28] : memref<224x512xf32, #tpu.memory_space<vmem>>, vector<8x512xf32>
    tpu.vector_store %arg6[%c56, %c0_28], %54 {strides = array<i32>} : memref<224x512xf32, #tpu.memory_space<vmem>>, vector<8x512xf32>,
    %c55_i32 = arith.constant 55 : i32
    %56 = tpu.dynamic_rotate %15 by %c55_i32 dim 1 : vector<8x512xf32>, i32 -> vector<8x512xf32>
    %c8_29 = arith.constant 8 : index
    %c0_30 = arith.constant 0 : index
    %57 = vector.load %arg4[%c8_29, %c0_30] : memref<26x512xf32, #tpu.memory_space<vmem>>, vector<1x512xf32>
    %58 = vector.broadcast %57 : vector<1x512xf32> to vector<8x512xf32>
    %59 = arith.mulf %56, %58 : vector<8x512xf32>
    %c64 = arith.constant 64 : index
    %c0_31 = arith.constant 0 : index
    %60 = vector.load %arg6[%c64, %c0_31] : memref<224x512xf32, #tpu.memory_space<vmem>>, vector<8x512xf32>
    tpu.vector_store %arg6[%c64, %c0_31], %59 {strides = array<i32>} : memref<224x512xf32, #tpu.memory_space<vmem>>, vector<8x512xf32>,
    %c9_i32 = arith.constant 9 : i32
    %61 = tpu.dynamic_rotate %15 by %c9_i32 dim 1 : vector<8x512xf32>, i32 -> vector<8x512xf32>
    %c9 = arith.constant 9 : index
    %c0_32 = arith.constant 0 : index
    %62 = vector.load %arg4[%c9, %c0_32] : memref<26x512xf32, #tpu.memory_space<vmem>>, vector<1x512xf32>
    %63 = vector.broadcast %62 : vector<1x512xf32> to vector<8x512xf32>
    %64 = arith.mulf %61, %63 : vector<8x512xf32>
    %c72 = arith.constant 72 : index
    %c0_33 = arith.constant 0 : index
    %65 = vector.load %arg6[%c72, %c0_33] : memref<224x512xf32, #tpu.memory_space<vmem>>, vector<8x512xf32>
    tpu.vector_store %arg6[%c72, %c0_33], %64 {strides = array<i32>} : memref<224x512xf32, #tpu.memory_space<vmem>>, vector<8x512xf32>,
    %c8_i32 = arith.constant 8 : i32
    %66 = tpu.dynamic_rotate %15 by %c8_i32 dim 1 : vector<8x512xf32>, i32 -> vector<8x512xf32>
    %c10 = arith.constant 10 : index
    %c0_34 = arith.constant 0 : index
    %67 = vector.load %arg4[%c10, %c0_34] : memref<26x512xf32, #tpu.memory_space<vmem>>, vector<1x512xf32>
    %68 = vector.broadcast %67 : vector<1x512xf32> to vector<8x512xf32>
    %69 = arith.mulf %66, %68 : vector<8x512xf32>
    %c80 = arith.constant 80 : index
    %c0_35 = arith.constant 0 : index
    %70 = vector.load %arg6[%c80, %c0_35] : memref<224x512xf32, #tpu.memory_space<vmem>>, vector<8x512xf32>
    tpu.vector_store %arg6[%c80, %c0_35], %69 {strides = array<i32>} : memref<224x512xf32, #tpu.memory_space<vmem>>, vector<8x512xf32>,
    %c7_i32 = arith.constant 7 : i32
    %71 = tpu.dynamic_rotate %15 by %c7_i32 dim 1 : vector<8x512xf32>, i32 -> vector<8x512xf32>
    %c11 = arith.constant 11 : index
    %c0_36 = arith.constant 0 : index
    %72 = vector.load %arg4[%c11, %c0_36] : memref<26x512xf32, #tpu.memory_space<vmem>>, vector<1x512xf32>
    %73 = vector.broadcast %72 : vector<1x512xf32> to vector<8x512xf32>
    %74 = arith.mulf %71, %73 : vector<8x512xf32>
    %c88 = arith.constant 88 : index
    %c0_37 = arith.constant 0 : index
    %75 = vector.load %arg6[%c88, %c0_37] : memref<224x512xf32, #tpu.memory_space<vmem>>, vector<8x512xf32>
    tpu.vector_store %arg6[%c88, %c0_37], %74 {strides = array<i32>} : memref<224x512xf32, #tpu.memory_space<vmem>>, vector<8x512xf32>,
    %c1_i32 = arith.constant 1 : i32
    %76 = tpu.dynamic_rotate %15 by %c1_i32 dim 1 : vector<8x512xf32>, i32 -> vector<8x512xf32>
    %c12 = arith.constant 12 : index
    %c0_38 = arith.constant 0 : index
    %77 = vector.load %arg4[%c12, %c0_38] : memref<26x512xf32, #tpu.memory_space<vmem>>, vector<1x512xf32>
    %78 = vector.broadcast %77 : vector<1x512xf32> to vector<8x512xf32>
    %79 = arith.mulf %76, %78 : vector<8x512xf32>
    %c96 = arith.constant 96 : index
    %c0_39 = arith.constant 0 : index
    %80 = vector.load %arg6[%c96, %c0_39] : memref<224x512xf32, #tpu.memory_space<vmem>>, vector<8x512xf32>
    tpu.vector_store %arg6[%c96, %c0_39], %79 {strides = array<i32>} : memref<224x512xf32, #tpu.memory_space<vmem>>, vector<8x512xf32>,
    %c104 = arith.constant 104 : index
    %c0_40 = arith.constant 0 : index
    %81 = vector.load %arg6[%c104, %c0_40] : memref<224x512xf32, #tpu.memory_space<vmem>>, vector<8x512xf32>
    tpu.vector_store %arg6[%c104, %c0_40], %15 {strides = array<i32>} : memref<224x512xf32, #tpu.memory_space<vmem>>, vector<8x512xf32>,
    %c511_i32 = arith.constant 511 : i32
    %82 = tpu.dynamic_rotate %15 by %c511_i32 dim 1 : vector<8x512xf32>, i32 -> vector<8x512xf32>
    %c13 = arith.constant 13 : index
    %c0_41 = arith.constant 0 : index
    %83 = vector.load %arg4[%c13, %c0_41] : memref<26x512xf32, #tpu.memory_space<vmem>>, vector<1x512xf32>
    %84 = vector.broadcast %83 : vector<1x512xf32> to vector<8x512xf32>
    %85 = arith.mulf %82, %84 : vector<8x512xf32>
    %c112 = arith.constant 112 : index
    %c0_42 = arith.constant 0 : index
    %86 = vector.load %arg6[%c112, %c0_42] : memref<224x512xf32, #tpu.memory_space<vmem>>, vector<8x512xf32>
    tpu.vector_store %arg6[%c112, %c0_42], %85 {strides = array<i32>} : memref<224x512xf32, #tpu.memory_space<vmem>>, vector<8x512xf32>,
    %c505_i32 = arith.constant 505 : i32
    %87 = tpu.dynamic_rotate %15 by %c505_i32 dim 1 : vector<8x512xf32>, i32 -> vector<8x512xf32>
    %c14 = arith.constant 14 : index
    %c0_43 = arith.constant 0 : index
    %88 = vector.load %arg4[%c14, %c0_43] : memref<26x512xf32, #tpu.memory_space<vmem>>, vector<1x512xf32>
    %89 = vector.broadcast %88 : vector<1x512xf32> to vector<8x512xf32>
    %90 = arith.mulf %87, %89 : vector<8x512xf32>
    %c120 = arith.constant 120 : index
    %c0_44 = arith.constant 0 : index
    %91 = vector.load %arg6[%c120, %c0_44] : memref<224x512xf32, #tpu.memory_space<vmem>>, vector<8x512xf32>
    tpu.vector_store %arg6[%c120, %c0_44], %90 {strides = array<i32>} : memref<224x512xf32, #tpu.memory_space<vmem>>, vector<8x512xf32>,
    %c504_i32 = arith.constant 504 : i32
    %92 = tpu.dynamic_rotate %15 by %c504_i32 dim 1 : vector<8x512xf32>, i32 -> vector<8x512xf32>
    %c15 = arith.constant 15 : index
    %c0_45 = arith.constant 0 : index
    %93 = vector.load %arg4[%c15, %c0_45] : memref<26x512xf32, #tpu.memory_space<vmem>>, vector<1x512xf32>
    %94 = vector.broadcast %93 : vector<1x512xf32> to vector<8x512xf32>
    %95 = arith.mulf %92, %94 : vector<8x512xf32>
    %c128 = arith.constant 128 : index
    %c0_46 = arith.constant 0 : index
    %96 = vector.load %arg6[%c128, %c0_46] : memref<224x512xf32, #tpu.memory_space<vmem>>, vector<8x512xf32>
    tpu.vector_store %arg6[%c128, %c0_46], %95 {strides = array<i32>} : memref<224x512xf32, #tpu.memory_space<vmem>>, vector<8x512xf32>,
    %c503_i32 = arith.constant 503 : i32
    %97 = tpu.dynamic_rotate %15 by %c503_i32 dim 1 : vector<8x512xf32>, i32 -> vector<8x512xf32>
    %c16_47 = arith.constant 16 : index
    %c0_48 = arith.constant 0 : index
    %98 = vector.load %arg4[%c16_47, %c0_48] : memref<26x512xf32, #tpu.memory_space<vmem>>, vector<1x512xf32>
    %99 = vector.broadcast %98 : vector<1x512xf32> to vector<8x512xf32>
    %100 = arith.mulf %97, %99 : vector<8x512xf32>
    %c136 = arith.constant 136 : index
    %c0_49 = arith.constant 0 : index
    %101 = vector.load %arg6[%c136, %c0_49] : memref<224x512xf32, #tpu.memory_space<vmem>>, vector<8x512xf32>
    tpu.vector_store %arg6[%c136, %c0_49], %100 {strides = array<i32>} : memref<224x512xf32, #tpu.memory_space<vmem>>, vector<8x512xf32>,
    %c457_i32 = arith.constant 457 : i32
    %102 = tpu.dynamic_rotate %15 by %c457_i32 dim 1 : vector<8x512xf32>, i32 -> vector<8x512xf32>
    %c17 = arith.constant 17 : index
    %c0_50 = arith.constant 0 : index
    %103 = vector.load %arg4[%c17, %c0_50] : memref<26x512xf32, #tpu.memory_space<vmem>>, vector<1x512xf32>
    %104 = vector.broadcast %103 : vector<1x512xf32> to vector<8x512xf32>
    %105 = arith.mulf %102, %104 : vector<8x512xf32>
    %c144 = arith.constant 144 : index
    %c0_51 = arith.constant 0 : index
    %106 = vector.load %arg6[%c144, %c0_51] : memref<224x512xf32, #tpu.memory_space<vmem>>, vector<8x512xf32>
    tpu.vector_store %arg6[%c144, %c0_51], %105 {strides = array<i32>} : memref<224x512xf32, #tpu.memory_space<vmem>>, vector<8x512xf32>,
    %c456_i32 = arith.constant 456 : i32
    %107 = tpu.dynamic_rotate %15 by %c456_i32 dim 1 : vector<8x512xf32>, i32 -> vector<8x512xf32>
    %c18 = arith.constant 18 : index
    %c0_52 = arith.constant 0 : index
    %108 = vector.load %arg4[%c18, %c0_52] : memref<26x512xf32, #tpu.memory_space<vmem>>, vector<1x512xf32>
    %109 = vector.broadcast %108 : vector<1x512xf32> to vector<8x512xf32>
    %110 = arith.mulf %107, %109 : vector<8x512xf32>
    %c152 = arith.constant 152 : index
    %c0_53 = arith.constant 0 : index
    %111 = vector.load %arg6[%c152, %c0_53] : memref<224x512xf32, #tpu.memory_space<vmem>>, vector<8x512xf32>
    tpu.vector_store %arg6[%c152, %c0_53], %110 {strides = array<i32>} : memref<224x512xf32, #tpu.memory_space<vmem>>, vector<8x512xf32>,
    %c455_i32 = arith.constant 455 : i32
    %112 = tpu.dynamic_rotate %15 by %c455_i32 dim 1 : vector<8x512xf32>, i32 -> vector<8x512xf32>
    %c19 = arith.constant 19 : index
    %c0_54 = arith.constant 0 : index
    %113 = vector.load %arg4[%c19, %c0_54] : memref<26x512xf32, #tpu.memory_space<vmem>>, vector<1x512xf32>
    %114 = vector.broadcast %113 : vector<1x512xf32> to vector<8x512xf32>
    %115 = arith.mulf %112, %114 : vector<8x512xf32>
    %c160 = arith.constant 160 : index
    %c0_55 = arith.constant 0 : index
    %116 = vector.load %arg6[%c160, %c0_55] : memref<224x512xf32, #tpu.memory_space<vmem>>, vector<8x512xf32>
    tpu.vector_store %arg6[%c160, %c0_55], %115 {strides = array<i32>} : memref<224x512xf32, #tpu.memory_space<vmem>>, vector<8x512xf32>,
    %c449_i32 = arith.constant 449 : i32
    %117 = tpu.dynamic_rotate %15 by %c449_i32 dim 1 : vector<8x512xf32>, i32 -> vector<8x512xf32>
    %c20 = arith.constant 20 : index
    %c0_56 = arith.constant 0 : index
    %118 = vector.load %arg4[%c20, %c0_56] : memref<26x512xf32, #tpu.memory_space<vmem>>, vector<1x512xf32>
    %119 = vector.broadcast %118 : vector<1x512xf32> to vector<8x512xf32>
    %120 = arith.mulf %117, %119 : vector<8x512xf32>
    %c168 = arith.constant 168 : index
    %c0_57 = arith.constant 0 : index
    %121 = vector.load %arg6[%c168, %c0_57] : memref<224x512xf32, #tpu.memory_space<vmem>>, vector<8x512xf32>
    tpu.vector_store %arg6[%c168, %c0_57], %120 {strides = array<i32>} : memref<224x512xf32, #tpu.memory_space<vmem>>, vector<8x512xf32>,
    %c448_i32 = arith.constant 448 : i32
    %122 = tpu.dynamic_rotate %15 by %c448_i32 dim 1 : vector<8x512xf32>, i32 -> vector<8x512xf32>
    %c21 = arith.constant 21 : index
    %c0_58 = arith.constant 0 : index
    %123 = vector.load %arg4[%c21, %c0_58] : memref<26x512xf32, #tpu.memory_space<vmem>>, vector<1x512xf32>
    %124 = vector.broadcast %123 : vector<1x512xf32> to vector<8x512xf32>
    %125 = arith.mulf %122, %124 : vector<8x512xf32>
    %c176 = arith.constant 176 : index
    %c0_59 = arith.constant 0 : index
    %126 = vector.load %arg6[%c176, %c0_59] : memref<224x512xf32, #tpu.memory_space<vmem>>, vector<8x512xf32>
    tpu.vector_store %arg6[%c176, %c0_59], %125 {strides = array<i32>} : memref<224x512xf32, #tpu.memory_space<vmem>>, vector<8x512xf32>,
    %c447_i32 = arith.constant 447 : i32
    %127 = tpu.dynamic_rotate %15 by %c447_i32 dim 1 : vector<8x512xf32>, i32 -> vector<8x512xf32>
    %c22 = arith.constant 22 : index
    %c0_60 = arith.constant 0 : index
    %128 = vector.load %arg4[%c22, %c0_60] : memref<26x512xf32, #tpu.memory_space<vmem>>, vector<1x512xf32>
    %129 = vector.broadcast %128 : vector<1x512xf32> to vector<8x512xf32>
    %130 = arith.mulf %127, %129 : vector<8x512xf32>
    %c184 = arith.constant 184 : index
    %c0_61 = arith.constant 0 : index
    %131 = vector.load %arg6[%c184, %c0_61] : memref<224x512xf32, #tpu.memory_space<vmem>>, vector<8x512xf32>
    tpu.vector_store %arg6[%c184, %c0_61], %130 {strides = array<i32>} : memref<224x512xf32, #tpu.memory_space<vmem>>, vector<8x512xf32>,
    %c441_i32 = arith.constant 441 : i32
    %132 = tpu.dynamic_rotate %15 by %c441_i32 dim 1 : vector<8x512xf32>, i32 -> vector<8x512xf32>
    %c23 = arith.constant 23 : index
    %c0_62 = arith.constant 0 : index
    %133 = vector.load %arg4[%c23, %c0_62] : memref<26x512xf32, #tpu.memory_space<vmem>>, vector<1x512xf32>
    %134 = vector.broadcast %133 : vector<1x512xf32> to vector<8x512xf32>
    %135 = arith.mulf %132, %134 : vector<8x512xf32>
    %c192 = arith.constant 192 : index
    %c0_63 = arith.constant 0 : index
    %136 = vector.load %arg6[%c192, %c0_63] : memref<224x512xf32, #tpu.memory_space<vmem>>, vector<8x512xf32>
    tpu.vector_store %arg6[%c192, %c0_63], %135 {strides = array<i32>} : memref<224x512xf32, #tpu.memory_space<vmem>>, vector<8x512xf32>,
    %c440_i32 = arith.constant 440 : i32
    %137 = tpu.dynamic_rotate %15 by %c440_i32 dim 1 : vector<8x512xf32>, i32 -> vector<8x512xf32>
    %c24_64 = arith.constant 24 : index
    %c0_65 = arith.constant 0 : index
    %138 = vector.load %arg4[%c24_64, %c0_65] : memref<26x512xf32, #tpu.memory_space<vmem>>, vector<1x512xf32>
    %139 = vector.broadcast %138 : vector<1x512xf32> to vector<8x512xf32>
    %140 = arith.mulf %137, %139 : vector<8x512xf32>
    %c200 = arith.constant 200 : index
    %c0_66 = arith.constant 0 : index
    %141 = vector.load %arg6[%c200, %c0_66] : memref<224x512xf32, #tpu.memory_space<vmem>>, vector<8x512xf32>
    tpu.vector_store %arg6[%c200, %c0_66], %140 {strides = array<i32>} : memref<224x512xf32, #tpu.memory_space<vmem>>, vector<8x512xf32>,
    %c439_i32 = arith.constant 439 : i32
    %142 = tpu.dynamic_rotate %15 by %c439_i32 dim 1 : vector<8x512xf32>, i32 -> vector<8x512xf32>
    %c25 = arith.constant 25 : index
    %c0_67 = arith.constant 0 : index
    %143 = vector.load %arg4[%c25, %c0_67] : memref<26x512xf32, #tpu.memory_space<vmem>>, vector<1x512xf32>
    %144 = vector.broadcast %143 : vector<1x512xf32> to vector<8x512xf32>
    %145 = arith.mulf %142, %144 : vector<8x512xf32>
    %c208 = arith.constant 208 : index
    %c0_68 = arith.constant 0 : index
    %146 = vector.load %arg6[%c208, %c0_68] : memref<224x512xf32, #tpu.memory_space<vmem>>, vector<8x512xf32>
    tpu.vector_store %arg6[%c208, %c0_68], %145 {strides = array<i32>} : memref<224x512xf32, #tpu.memory_space<vmem>>, vector<8x512xf32>,
    %c0_69 = arith.constant 0 : index
    %c0_70 = arith.constant 0 : index
    %c0_71 = arith.constant 0 : index
    %147 = vector.load %arg2[%c0_69, %c0_70, %c0_71] : memref<3x8x224xf32, #tpu.memory_space<vmem>>, vector<1x8x224xf32>
    %148 = vector.shape_cast %147 : vector<1x8x224xf32> to vector<8x224xf32>
    %c0_72 = arith.constant 0 : index
    %c0_73 = arith.constant 0 : index
    %149 = vector.load %arg6[%c0_72, %c0_73] : memref<224x512xf32, #tpu.memory_space<vmem>>, vector<224x512xf32>
    %cst = arith.constant dense<0.000000e+00> : vector<8x512xf32>
    %150 = tpu.matmul %148, %149, %cst {dimension_numbers = #tpu.dot_dimension_numbers<[1], [0], [0], [1], [0, 0, 1, 1], [], []>} : vector<8x224xf32>, vector<224x512xf32>, vector<8x512xf32> -> vector<8x512xf32>
    %cst_74 = arith.constant 0.000000e+00 : f32
    %151 = vector.broadcast %cst_74 : f32 to vector<8x512xf32>
    %152 = arith.maximumf %150, %151 : vector<8x512xf32>
    %c1_75 = arith.constant 1 : index
    %c0_76 = arith.constant 0 : index
    %c0_77 = arith.constant 0 : index
    %c0_78 = arith.constant 0 : index
    %153 = vector.load %arg3[%c1_75, %c0_76, %c0_77, %c0_78] : memref<3x2x8x1xf32, #tpu.memory_space<vmem>>, vector<1x1x8x1xf32>
    %154 = vector.shape_cast %153 : vector<1x1x8x1xf32> to vector<8x1xf32>
    %155 = vector.broadcast %154 : vector<8x1xf32> to vector<8x512xf32>
    %156 = arith.mulf %152, %155 : vector<8x512xf32>
    %c1_79 = arith.constant 1 : index
    %c1_80 = arith.constant 1 : index
    %c0_81 = arith.constant 0 : index
    %c0_82 = arith.constant 0 : index
    %157 = vector.load %arg3[%c1_79, %c1_80, %c0_81, %c0_82] : memref<3x2x8x1xf32, #tpu.memory_space<vmem>>, vector<1x1x8x1xf32>
    %158 = vector.shape_cast %157 : vector<1x1x8x1xf32> to vector<8x1xf32>
    %159 = vector.broadcast %158 : vector<8x1xf32> to vector<8x512xf32>
    %160 = arith.addf %156, %159 : vector<8x512xf32>
    %c73_i32_83 = arith.constant 73 : i32
    %161 = tpu.dynamic_rotate %160 by %c73_i32_83 dim 1 : vector<8x512xf32>, i32 -> vector<8x512xf32>
    %c0_84 = arith.constant 0 : index
    %c0_85 = arith.constant 0 : index
    %162 = vector.load %arg4[%c0_84, %c0_85] : memref<26x512xf32, #tpu.memory_space<vmem>>, vector<1x512xf32>
    %163 = vector.broadcast %162 : vector<1x512xf32> to vector<8x512xf32>
    %164 = arith.mulf %161, %163 : vector<8x512xf32>
    %c0_86 = arith.constant 0 : index
    %c0_87 = arith.constant 0 : index
    %165 = vector.load %arg6[%c0_86, %c0_87] : memref<224x512xf32, #tpu.memory_space<vmem>>, vector<8x512xf32>
    tpu.vector_store %arg6[%c0_86, %c0_87], %164 {strides = array<i32>} : memref<224x512xf32, #tpu.memory_space<vmem>>, vector<8x512xf32>,
    %c72_i32_88 = arith.constant 72 : i32
    %166 = tpu.dynamic_rotate %160 by %c72_i32_88 dim 1 : vector<8x512xf32>, i32 -> vector<8x512xf32>
    %c1_89 = arith.constant 1 : index
    %c0_90 = arith.constant 0 : index
    %167 = vector.load %arg4[%c1_89, %c0_90] : memref<26x512xf32, #tpu.memory_space<vmem>>, vector<1x512xf32>
    %168 = vector.broadcast %167 : vector<1x512xf32> to vector<8x512xf32>
    %169 = arith.mulf %166, %168 : vector<8x512xf32>
    %c8_91 = arith.constant 8 : index
    %c0_92 = arith.constant 0 : index
    %170 = vector.load %arg6[%c8_91, %c0_92] : memref<224x512xf32, #tpu.memory_space<vmem>>, vector<8x512xf32>
    tpu.vector_store %arg6[%c8_91, %c0_92], %169 {strides = array<i32>} : memref<224x512xf32, #tpu.memory_space<vmem>>, vector<8x512xf32>,
    %c71_i32_93 = arith.constant 71 : i32
    %171 = tpu.dynamic_rotate %160 by %c71_i32_93 dim 1 : vector<8x512xf32>, i32 -> vector<8x512xf32>
    %c2_94 = arith.constant 2 : index
    %c0_95 = arith.constant 0 : index
    %172 = vector.load %arg4[%c2_94, %c0_95] : memref<26x512xf32, #tpu.memory_space<vmem>>, vector<1x512xf32>
    %173 = vector.broadcast %172 : vector<1x512xf32> to vector<8x512xf32>
    %174 = arith.mulf %171, %173 : vector<8x512xf32>
    %c16_96 = arith.constant 16 : index
    %c0_97 = arith.constant 0 : index
    %175 = vector.load %arg6[%c16_96, %c0_97] : memref<224x512xf32, #tpu.memory_space<vmem>>, vector<8x512xf32>
    tpu.vector_store %arg6[%c16_96, %c0_97], %174 {strides = array<i32>} : memref<224x512xf32, #tpu.memory_space<vmem>>, vector<8x512xf32>,
    %c65_i32_98 = arith.constant 65 : i32
    %176 = tpu.dynamic_rotate %160 by %c65_i32_98 dim 1 : vector<8x512xf32>, i32 -> vector<8x512xf32>
    %c3_99 = arith.constant 3 : index
    %c0_100 = arith.constant 0 : index
    %177 = vector.load %arg4[%c3_99, %c0_100] : memref<26x512xf32, #tpu.memory_space<vmem>>, vector<1x512xf32>
    %178 = vector.broadcast %177 : vector<1x512xf32> to vector<8x512xf32>
    %179 = arith.mulf %176, %178 : vector<8x512xf32>
    %c24_101 = arith.constant 24 : index
    %c0_102 = arith.constant 0 : index
    %180 = vector.load %arg6[%c24_101, %c0_102] : memref<224x512xf32, #tpu.memory_space<vmem>>, vector<8x512xf32>
    tpu.vector_store %arg6[%c24_101, %c0_102], %179 {strides = array<i32>} : memref<224x512xf32, #tpu.memory_space<vmem>>, vector<8x512xf32>,
    %c64_i32_103 = arith.constant 64 : i32
    %181 = tpu.dynamic_rotate %160 by %c64_i32_103 dim 1 : vector<8x512xf32>, i32 -> vector<8x512xf32>
    %c4_104 = arith.constant 4 : index
    %c0_105 = arith.constant 0 : index
    %182 = vector.load %arg4[%c4_104, %c0_105] : memref<26x512xf32, #tpu.memory_space<vmem>>, vector<1x512xf32>
    %183 = vector.broadcast %182 : vector<1x512xf32> to vector<8x512xf32>
    %184 = arith.mulf %181, %183 : vector<8x512xf32>
    %c32_106 = arith.constant 32 : index
    %c0_107 = arith.constant 0 : index
    %185 = vector.load %arg6[%c32_106, %c0_107] : memref<224x512xf32, #tpu.memory_space<vmem>>, vector<8x512xf32>
    tpu.vector_store %arg6[%c32_106, %c0_107], %184 {strides = array<i32>} : memref<224x512xf32, #tpu.memory_space<vmem>>, vector<8x512xf32>,
    %c63_i32_108 = arith.constant 63 : i32
    %186 = tpu.dynamic_rotate %160 by %c63_i32_108 dim 1 : vector<8x512xf32>, i32 -> vector<8x512xf32>
    %c5_109 = arith.constant 5 : index
    %c0_110 = arith.constant 0 : index
    %187 = vector.load %arg4[%c5_109, %c0_110] : memref<26x512xf32, #tpu.memory_space<vmem>>, vector<1x512xf32>
    %188 = vector.broadcast %187 : vector<1x512xf32> to vector<8x512xf32>
    %189 = arith.mulf %186, %188 : vector<8x512xf32>
    %c40_111 = arith.constant 40 : index
    %c0_112 = arith.constant 0 : index
    %190 = vector.load %arg6[%c40_111, %c0_112] : memref<224x512xf32, #tpu.memory_space<vmem>>, vector<8x512xf32>
    tpu.vector_store %arg6[%c40_111, %c0_112], %189 {strides = array<i32>} : memref<224x512xf32, #tpu.memory_space<vmem>>, vector<8x512xf32>,
    %c57_i32_113 = arith.constant 57 : i32
    %191 = tpu.dynamic_rotate %160 by %c57_i32_113 dim 1 : vector<8x512xf32>, i32 -> vector<8x512xf32>
    %c6_114 = arith.constant 6 : index
    %c0_115 = arith.constant 0 : index
    %192 = vector.load %arg4[%c6_114, %c0_115] : memref<26x512xf32, #tpu.memory_space<vmem>>, vector<1x512xf32>
    %193 = vector.broadcast %192 : vector<1x512xf32> to vector<8x512xf32>
    %194 = arith.mulf %191, %193 : vector<8x512xf32>
    %c48_116 = arith.constant 48 : index
    %c0_117 = arith.constant 0 : index
    %195 = vector.load %arg6[%c48_116, %c0_117] : memref<224x512xf32, #tpu.memory_space<vmem>>, vector<8x512xf32>
    tpu.vector_store %arg6[%c48_116, %c0_117], %194 {strides = array<i32>} : memref<224x512xf32, #tpu.memory_space<vmem>>, vector<8x512xf32>,
    %c56_i32_118 = arith.constant 56 : i32
    %196 = tpu.dynamic_rotate %160 by %c56_i32_118 dim 1 : vector<8x512xf32>, i32 -> vector<8x512xf32>
    %c7_119 = arith.constant 7 : index
    %c0_120 = arith.constant 0 : index
    %197 = vector.load %arg4[%c7_119, %c0_120] : memref<26x512xf32, #tpu.memory_space<vmem>>, vector<1x512xf32>
    %198 = vector.broadcast %197 : vector<1x512xf32> to vector<8x512xf32>
    %199 = arith.mulf %196, %198 : vector<8x512xf32>
    %c56_121 = arith.constant 56 : index
    %c0_122 = arith.constant 0 : index
    %200 = vector.load %arg6[%c56_121, %c0_122] : memref<224x512xf32, #tpu.memory_space<vmem>>, vector<8x512xf32>
    tpu.vector_store %arg6[%c56_121, %c0_122], %199 {strides = array<i32>} : memref<224x512xf32, #tpu.memory_space<vmem>>, vector<8x512xf32>,
    %c55_i32_123 = arith.constant 55 : i32
    %201 = tpu.dynamic_rotate %160 by %c55_i32_123 dim 1 : vector<8x512xf32>, i32 -> vector<8x512xf32>
    %c8_124 = arith.constant 8 : index
    %c0_125 = arith.constant 0 : index
    %202 = vector.load %arg4[%c8_124, %c0_125] : memref<26x512xf32, #tpu.memory_space<vmem>>, vector<1x512xf32>
    %203 = vector.broadcast %202 : vector<1x512xf32> to vector<8x512xf32>
    %204 = arith.mulf %201, %203 : vector<8x512xf32>
    %c64_126 = arith.constant 64 : index
    %c0_127 = arith.constant 0 : index
    %205 = vector.load %arg6[%c64_126, %c0_127] : memref<224x512xf32, #tpu.memory_space<vmem>>, vector<8x512xf32>
    tpu.vector_store %arg6[%c64_126, %c0_127], %204 {strides = array<i32>} : memref<224x512xf32, #tpu.memory_space<vmem>>, vector<8x512xf32>,
    %c9_i32_128 = arith.constant 9 : i32
    %206 = tpu.dynamic_rotate %160 by %c9_i32_128 dim 1 : vector<8x512xf32>, i32 -> vector<8x512xf32>
    %c9_129 = arith.constant 9 : index
    %c0_130 = arith.constant 0 : index
    %207 = vector.load %arg4[%c9_129, %c0_130] : memref<26x512xf32, #tpu.memory_space<vmem>>, vector<1x512xf32>
    %208 = vector.broadcast %207 : vector<1x512xf32> to vector<8x512xf32>
    %209 = arith.mulf %206, %208 : vector<8x512xf32>
    %c72_131 = arith.constant 72 : index
    %c0_132 = arith.constant 0 : index
    %210 = vector.load %arg6[%c72_131, %c0_132] : memref<224x512xf32, #tpu.memory_space<vmem>>, vector<8x512xf32>
    tpu.vector_store %arg6[%c72_131, %c0_132], %209 {strides = array<i32>} : memref<224x512xf32, #tpu.memory_space<vmem>>, vector<8x512xf32>,
    %c8_i32_133 = arith.constant 8 : i32
    %211 = tpu.dynamic_rotate %160 by %c8_i32_133 dim 1 : vector<8x512xf32>, i32 -> vector<8x512xf32>
    %c10_134 = arith.constant 10 : index
    %c0_135 = arith.constant 0 : index
    %212 = vector.load %arg4[%c10_134, %c0_135] : memref<26x512xf32, #tpu.memory_space<vmem>>, vector<1x512xf32>
    %213 = vector.broadcast %212 : vector<1x512xf32> to vector<8x512xf32>
    %214 = arith.mulf %211, %213 : vector<8x512xf32>
    %c80_136 = arith.constant 80 : index
    %c0_137 = arith.constant 0 : index
    %215 = vector.load %arg6[%c80_136, %c0_137] : memref<224x512xf32, #tpu.memory_space<vmem>>, vector<8x512xf32>
    tpu.vector_store %arg6[%c80_136, %c0_137], %214 {strides = array<i32>} : memref<224x512xf32, #tpu.memory_space<vmem>>, vector<8x512xf32>,
    %c7_i32_138 = arith.constant 7 : i32
    %216 = tpu.dynamic_rotate %160 by %c7_i32_138 dim 1 : vector<8x512xf32>, i32 -> vector<8x512xf32>
    %c11_139 = arith.constant 11 : index
    %c0_140 = arith.constant 0 : index
    %217 = vector.load %arg4[%c11_139, %c0_140] : memref<26x512xf32, #tpu.memory_space<vmem>>, vector<1x512xf32>
    %218 = vector.broadcast %217 : vector<1x512xf32> to vector<8x512xf32>
    %219 = arith.mulf %216, %218 : vector<8x512xf32>
    %c88_141 = arith.constant 88 : index
    %c0_142 = arith.constant 0 : index
    %220 = vector.load %arg6[%c88_141, %c0_142] : memref<224x512xf32, #tpu.memory_space<vmem>>, vector<8x512xf32>
    tpu.vector_store %arg6[%c88_141, %c0_142], %219 {strides = array<i32>} : memref<224x512xf32, #tpu.memory_space<vmem>>, vector<8x512xf32>,
    %c1_i32_143 = arith.constant 1 : i32
    %221 = tpu.dynamic_rotate %160 by %c1_i32_143 dim 1 : vector<8x512xf32>, i32 -> vector<8x512xf32>
    %c12_144 = arith.constant 12 : index
    %c0_145 = arith.constant 0 : index
    %222 = vector.load %arg4[%c12_144, %c0_145] : memref<26x512xf32, #tpu.memory_space<vmem>>, vector<1x512xf32>
    %223 = vector.broadcast %222 : vector<1x512xf32> to vector<8x512xf32>
    %224 = arith.mulf %221, %223 : vector<8x512xf32>
    %c96_146 = arith.constant 96 : index
    %c0_147 = arith.constant 0 : index
    %225 = vector.load %arg6[%c96_146, %c0_147] : memref<224x512xf32, #tpu.memory_space<vmem>>, vector<8x512xf32>
    tpu.vector_store %arg6[%c96_146, %c0_147], %224 {strides = array<i32>} : memref<224x512xf32, #tpu.memory_space<vmem>>, vector<8x512xf32>,
    %c104_148 = arith.constant 104 : index
    %c0_149 = arith.constant 0 : index
    %226 = vector.load %arg6[%c104_148, %c0_149] : memref<224x512xf32, #tpu.memory_space<vmem>>, vector<8x512xf32>
    tpu.vector_store %arg6[%c104_148, %c0_149], %160 {strides = array<i32>} : memref<224x512xf32, #tpu.memory_space<vmem>>, vector<8x512xf32>,
    %c511_i32_150 = arith.constant 511 : i32
    %227 = tpu.dynamic_rotate %160 by %c511_i32_150 dim 1 : vector<8x512xf32>, i32 -> vector<8x512xf32>
    %c13_151 = arith.constant 13 : index
    %c0_152 = arith.constant 0 : index
    %228 = vector.load %arg4[%c13_151, %c0_152] : memref<26x512xf32, #tpu.memory_space<vmem>>, vector<1x512xf32>
    %229 = vector.broadcast %228 : vector<1x512xf32> to vector<8x512xf32>
    %230 = arith.mulf %227, %229 : vector<8x512xf32>
    %c112_153 = arith.constant 112 : index
    %c0_154 = arith.constant 0 : index
    %231 = vector.load %arg6[%c112_153, %c0_154] : memref<224x512xf32, #tpu.memory_space<vmem>>, vector<8x512xf32>
    tpu.vector_store %arg6[%c112_153, %c0_154], %230 {strides = array<i32>} : memref<224x512xf32, #tpu.memory_space<vmem>>, vector<8x512xf32>,
    %c505_i32_155 = arith.constant 505 : i32
    %232 = tpu.dynamic_rotate %160 by %c505_i32_155 dim 1 : vector<8x512xf32>, i32 -> vector<8x512xf32>
    %c14_156 = arith.constant 14 : index
    %c0_157 = arith.constant 0 : index
    %233 = vector.load %arg4[%c14_156, %c0_157] : memref<26x512xf32, #tpu.memory_space<vmem>>, vector<1x512xf32>
    %234 = vector.broadcast %233 : vector<1x512xf32> to vector<8x512xf32>
    %235 = arith.mulf %232, %234 : vector<8x512xf32>
    %c120_158 = arith.constant 120 : index
    %c0_159 = arith.constant 0 : index
    %236 = vector.load %arg6[%c120_158, %c0_159] : memref<224x512xf32, #tpu.memory_space<vmem>>, vector<8x512xf32>
    tpu.vector_store %arg6[%c120_158, %c0_159], %235 {strides = array<i32>} : memref<224x512xf32, #tpu.memory_space<vmem>>, vector<8x512xf32>,
    %c504_i32_160 = arith.constant 504 : i32
    %237 = tpu.dynamic_rotate %160 by %c504_i32_160 dim 1 : vector<8x512xf32>, i32 -> vector<8x512xf32>
    %c15_161 = arith.constant 15 : index
    %c0_162 = arith.constant 0 : index
    %238 = vector.load %arg4[%c15_161, %c0_162] : memref<26x512xf32, #tpu.memory_space<vmem>>, vector<1x512xf32>
    %239 = vector.broadcast %238 : vector<1x512xf32> to vector<8x512xf32>
    %240 = arith.mulf %237, %239 : vector<8x512xf32>
    %c128_163 = arith.constant 128 : index
    %c0_164 = arith.constant 0 : index
    %241 = vector.load %arg6[%c128_163, %c0_164] : memref<224x512xf32, #tpu.memory_space<vmem>>, vector<8x512xf32>
    tpu.vector_store %arg6[%c128_163, %c0_164], %240 {strides = array<i32>} : memref<224x512xf32, #tpu.memory_space<vmem>>, vector<8x512xf32>,
    %c503_i32_165 = arith.constant 503 : i32
    %242 = tpu.dynamic_rotate %160 by %c503_i32_165 dim 1 : vector<8x512xf32>, i32 -> vector<8x512xf32>
    %c16_166 = arith.constant 16 : index
    %c0_167 = arith.constant 0 : index
    %243 = vector.load %arg4[%c16_166, %c0_167] : memref<26x512xf32, #tpu.memory_space<vmem>>, vector<1x512xf32>
    %244 = vector.broadcast %243 : vector<1x512xf32> to vector<8x512xf32>
    %245 = arith.mulf %242, %244 : vector<8x512xf32>
    %c136_168 = arith.constant 136 : index
    %c0_169 = arith.constant 0 : index
    %246 = vector.load %arg6[%c136_168, %c0_169] : memref<224x512xf32, #tpu.memory_space<vmem>>, vector<8x512xf32>
    tpu.vector_store %arg6[%c136_168, %c0_169], %245 {strides = array<i32>} : memref<224x512xf32, #tpu.memory_space<vmem>>, vector<8x512xf32>,
    %c457_i32_170 = arith.constant 457 : i32
    %247 = tpu.dynamic_rotate %160 by %c457_i32_170 dim 1 : vector<8x512xf32>, i32 -> vector<8x512xf32>
    %c17_171 = arith.constant 17 : index
    %c0_172 = arith.constant 0 : index
    %248 = vector.load %arg4[%c17_171, %c0_172] : memref<26x512xf32, #tpu.memory_space<vmem>>, vector<1x512xf32>
    %249 = vector.broadcast %248 : vector<1x512xf32> to vector<8x512xf32>
    %250 = arith.mulf %247, %249 : vector<8x512xf32>
    %c144_173 = arith.constant 144 : index
    %c0_174 = arith.constant 0 : index
    %251 = vector.load %arg6[%c144_173, %c0_174] : memref<224x512xf32, #tpu.memory_space<vmem>>, vector<8x512xf32>
    tpu.vector_store %arg6[%c144_173, %c0_174], %250 {strides = array<i32>} : memref<224x512xf32, #tpu.memory_space<vmem>>, vector<8x512xf32>,
    %c456_i32_175 = arith.constant 456 : i32
    %252 = tpu.dynamic_rotate %160 by %c456_i32_175 dim 1 : vector<8x512xf32>, i32 -> vector<8x512xf32>
    %c18_176 = arith.constant 18 : index
    %c0_177 = arith.constant 0 : index
    %253 = vector.load %arg4[%c18_176, %c0_177] : memref<26x512xf32, #tpu.memory_space<vmem>>, vector<1x512xf32>
    %254 = vector.broadcast %253 : vector<1x512xf32> to vector<8x512xf32>
    %255 = arith.mulf %252, %254 : vector<8x512xf32>
    %c152_178 = arith.constant 152 : index
    %c0_179 = arith.constant 0 : index
    %256 = vector.load %arg6[%c152_178, %c0_179] : memref<224x512xf32, #tpu.memory_space<vmem>>, vector<8x512xf32>
    tpu.vector_store %arg6[%c152_178, %c0_179], %255 {strides = array<i32>} : memref<224x512xf32, #tpu.memory_space<vmem>>, vector<8x512xf32>,
    %c455_i32_180 = arith.constant 455 : i32
    %257 = tpu.dynamic_rotate %160 by %c455_i32_180 dim 1 : vector<8x512xf32>, i32 -> vector<8x512xf32>
    %c19_181 = arith.constant 19 : index
    %c0_182 = arith.constant 0 : index
    %258 = vector.load %arg4[%c19_181, %c0_182] : memref<26x512xf32, #tpu.memory_space<vmem>>, vector<1x512xf32>
    %259 = vector.broadcast %258 : vector<1x512xf32> to vector<8x512xf32>
    %260 = arith.mulf %257, %259 : vector<8x512xf32>
    %c160_183 = arith.constant 160 : index
    %c0_184 = arith.constant 0 : index
    %261 = vector.load %arg6[%c160_183, %c0_184] : memref<224x512xf32, #tpu.memory_space<vmem>>, vector<8x512xf32>
    tpu.vector_store %arg6[%c160_183, %c0_184], %260 {strides = array<i32>} : memref<224x512xf32, #tpu.memory_space<vmem>>, vector<8x512xf32>,
    %c449_i32_185 = arith.constant 449 : i32
    %262 = tpu.dynamic_rotate %160 by %c449_i32_185 dim 1 : vector<8x512xf32>, i32 -> vector<8x512xf32>
    %c20_186 = arith.constant 20 : index
    %c0_187 = arith.constant 0 : index
    %263 = vector.load %arg4[%c20_186, %c0_187] : memref<26x512xf32, #tpu.memory_space<vmem>>, vector<1x512xf32>
    %264 = vector.broadcast %263 : vector<1x512xf32> to vector<8x512xf32>
    %265 = arith.mulf %262, %264 : vector<8x512xf32>
    %c168_188 = arith.constant 168 : index
    %c0_189 = arith.constant 0 : index
    %266 = vector.load %arg6[%c168_188, %c0_189] : memref<224x512xf32, #tpu.memory_space<vmem>>, vector<8x512xf32>
    tpu.vector_store %arg6[%c168_188, %c0_189], %265 {strides = array<i32>} : memref<224x512xf32, #tpu.memory_space<vmem>>, vector<8x512xf32>,
    %c448_i32_190 = arith.constant 448 : i32
    %267 = tpu.dynamic_rotate %160 by %c448_i32_190 dim 1 : vector<8x512xf32>, i32 -> vector<8x512xf32>
    %c21_191 = arith.constant 21 : index
    %c0_192 = arith.constant 0 : index
    %268 = vector.load %arg4[%c21_191, %c0_192] : memref<26x512xf32, #tpu.memory_space<vmem>>, vector<1x512xf32>
    %269 = vector.broadcast %268 : vector<1x512xf32> to vector<8x512xf32>
    %270 = arith.mulf %267, %269 : vector<8x512xf32>
    %c176_193 = arith.constant 176 : index
    %c0_194 = arith.constant 0 : index
    %271 = vector.load %arg6[%c176_193, %c0_194] : memref<224x512xf32, #tpu.memory_space<vmem>>, vector<8x512xf32>
    tpu.vector_store %arg6[%c176_193, %c0_194], %270 {strides = array<i32>} : memref<224x512xf32, #tpu.memory_space<vmem>>, vector<8x512xf32>,
    %c447_i32_195 = arith.constant 447 : i32
    %272 = tpu.dynamic_rotate %160 by %c447_i32_195 dim 1 : vector<8x512xf32>, i32 -> vector<8x512xf32>
    %c22_196 = arith.constant 22 : index
    %c0_197 = arith.constant 0 : index
    %273 = vector.load %arg4[%c22_196, %c0_197] : memref<26x512xf32, #tpu.memory_space<vmem>>, vector<1x512xf32>
    %274 = vector.broadcast %273 : vector<1x512xf32> to vector<8x512xf32>
    %275 = arith.mulf %272, %274 : vector<8x512xf32>
    %c184_198 = arith.constant 184 : index
    %c0_199 = arith.constant 0 : index
    %276 = vector.load %arg6[%c184_198, %c0_199] : memref<224x512xf32, #tpu.memory_space<vmem>>, vector<8x512xf32>
    tpu.vector_store %arg6[%c184_198, %c0_199], %275 {strides = array<i32>} : memref<224x512xf32, #tpu.memory_space<vmem>>, vector<8x512xf32>,
    %c441_i32_200 = arith.constant 441 : i32
    %277 = tpu.dynamic_rotate %160 by %c441_i32_200 dim 1 : vector<8x512xf32>, i32 -> vector<8x512xf32>
    %c23_201 = arith.constant 23 : index
    %c0_202 = arith.constant 0 : index
    %278 = vector.load %arg4[%c23_201, %c0_202] : memref<26x512xf32, #tpu.memory_space<vmem>>, vector<1x512xf32>
    %279 = vector.broadcast %278 : vector<1x512xf32> to vector<8x512xf32>
    %280 = arith.mulf %277, %279 : vector<8x512xf32>
    %c192_203 = arith.constant 192 : index
    %c0_204 = arith.constant 0 : index
    %281 = vector.load %arg6[%c192_203, %c0_204] : memref<224x512xf32, #tpu.memory_space<vmem>>, vector<8x512xf32>
    tpu.vector_store %arg6[%c192_203, %c0_204], %280 {strides = array<i32>} : memref<224x512xf32, #tpu.memory_space<vmem>>, vector<8x512xf32>,
    %c440_i32_205 = arith.constant 440 : i32
    %282 = tpu.dynamic_rotate %160 by %c440_i32_205 dim 1 : vector<8x512xf32>, i32 -> vector<8x512xf32>
    %c24_206 = arith.constant 24 : index
    %c0_207 = arith.constant 0 : index
    %283 = vector.load %arg4[%c24_206, %c0_207] : memref<26x512xf32, #tpu.memory_space<vmem>>, vector<1x512xf32>
    %284 = vector.broadcast %283 : vector<1x512xf32> to vector<8x512xf32>
    %285 = arith.mulf %282, %284 : vector<8x512xf32>
    %c200_208 = arith.constant 200 : index
    %c0_209 = arith.constant 0 : index
    %286 = vector.load %arg6[%c200_208, %c0_209] : memref<224x512xf32, #tpu.memory_space<vmem>>, vector<8x512xf32>
    tpu.vector_store %arg6[%c200_208, %c0_209], %285 {strides = array<i32>} : memref<224x512xf32, #tpu.memory_space<vmem>>, vector<8x512xf32>,
    %c439_i32_210 = arith.constant 439 : i32
    %287 = tpu.dynamic_rotate %160 by %c439_i32_210 dim 1 : vector<8x512xf32>, i32 -> vector<8x512xf32>
    %c25_211 = arith.constant 25 : index
    %c0_212 = arith.constant 0 : index
    %288 = vector.load %arg4[%c25_211, %c0_212] : memref<26x512xf32, #tpu.memory_space<vmem>>, vector<1x512xf32>
    %289 = vector.broadcast %288 : vector<1x512xf32> to vector<8x512xf32>
    %290 = arith.mulf %287, %289 : vector<8x512xf32>
    %c208_213 = arith.constant 208 : index
    %c0_214 = arith.constant 0 : index
    %291 = vector.load %arg6[%c208_213, %c0_214] : memref<224x512xf32, #tpu.memory_space<vmem>>, vector<8x512xf32>
    tpu.vector_store %arg6[%c208_213, %c0_214], %290 {strides = array<i32>} : memref<224x512xf32, #tpu.memory_space<vmem>>, vector<8x512xf32>,
    %c1_215 = arith.constant 1 : index
    %c0_216 = arith.constant 0 : index
    %c0_217 = arith.constant 0 : index
    %292 = vector.load %arg2[%c1_215, %c0_216, %c0_217] : memref<3x8x224xf32, #tpu.memory_space<vmem>>, vector<1x8x224xf32>
    %293 = vector.shape_cast %292 : vector<1x8x224xf32> to vector<8x224xf32>
    %c0_218 = arith.constant 0 : index
    %c0_219 = arith.constant 0 : index
    %294 = vector.load %arg6[%c0_218, %c0_219] : memref<224x512xf32, #tpu.memory_space<vmem>>, vector<224x512xf32>
    %cst_220 = arith.constant dense<0.000000e+00> : vector<8x512xf32>
    %295 = tpu.matmul %293, %294, %cst_220 {dimension_numbers = #tpu.dot_dimension_numbers<[1], [0], [0], [1], [0, 0, 1, 1], [], []>} : vector<8x224xf32>, vector<224x512xf32>, vector<8x512xf32> -> vector<8x512xf32>
    %cst_221 = arith.constant 0.000000e+00 : f32
    %296 = vector.broadcast %cst_221 : f32 to vector<8x512xf32>
    %297 = arith.maximumf %295, %296 : vector<8x512xf32>
    %c2_222 = arith.constant 2 : index
    %c0_223 = arith.constant 0 : index
    %c0_224 = arith.constant 0 : index
    %c0_225 = arith.constant 0 : index
    %298 = vector.load %arg3[%c2_222, %c0_223, %c0_224, %c0_225] : memref<3x2x8x1xf32, #tpu.memory_space<vmem>>, vector<1x1x8x1xf32>
    %299 = vector.shape_cast %298 : vector<1x1x8x1xf32> to vector<8x1xf32>
    %300 = vector.broadcast %299 : vector<8x1xf32> to vector<8x512xf32>
    %301 = arith.mulf %297, %300 : vector<8x512xf32>
    %c2_226 = arith.constant 2 : index
    %c1_227 = arith.constant 1 : index
    %c0_228 = arith.constant 0 : index
    %c0_229 = arith.constant 0 : index
    %302 = vector.load %arg3[%c2_226, %c1_227, %c0_228, %c0_229] : memref<3x2x8x1xf32, #tpu.memory_space<vmem>>, vector<1x1x8x1xf32>
    %303 = vector.shape_cast %302 : vector<1x1x8x1xf32> to vector<8x1xf32>
    %304 = vector.broadcast %303 : vector<8x1xf32> to vector<8x512xf32>
    %305 = arith.addf %301, %304 : vector<8x512xf32>
    %c73_i32_230 = arith.constant 73 : i32
    %306 = tpu.dynamic_rotate %305 by %c73_i32_230 dim 1 : vector<8x512xf32>, i32 -> vector<8x512xf32>
    %c0_231 = arith.constant 0 : index
    %c0_232 = arith.constant 0 : index
    %307 = vector.load %arg4[%c0_231, %c0_232] : memref<26x512xf32, #tpu.memory_space<vmem>>, vector<1x512xf32>
    %308 = vector.broadcast %307 : vector<1x512xf32> to vector<8x512xf32>
    %309 = arith.mulf %306, %308 : vector<8x512xf32>
    %c0_233 = arith.constant 0 : index
    %c0_234 = arith.constant 0 : index
    %310 = vector.load %arg6[%c0_233, %c0_234] : memref<224x512xf32, #tpu.memory_space<vmem>>, vector<8x512xf32>
    tpu.vector_store %arg6[%c0_233, %c0_234], %309 {strides = array<i32>} : memref<224x512xf32, #tpu.memory_space<vmem>>, vector<8x512xf32>,
    %c72_i32_235 = arith.constant 72 : i32
    %311 = tpu.dynamic_rotate %305 by %c72_i32_235 dim 1 : vector<8x512xf32>, i32 -> vector<8x512xf32>
    %c1_236 = arith.constant 1 : index
    %c0_237 = arith.constant 0 : index
    %312 = vector.load %arg4[%c1_236, %c0_237] : memref<26x512xf32, #tpu.memory_space<vmem>>, vector<1x512xf32>
    %313 = vector.broadcast %312 : vector<1x512xf32> to vector<8x512xf32>
    %314 = arith.mulf %311, %313 : vector<8x512xf32>
    %c8_238 = arith.constant 8 : index
    %c0_239 = arith.constant 0 : index
    %315 = vector.load %arg6[%c8_238, %c0_239] : memref<224x512xf32, #tpu.memory_space<vmem>>, vector<8x512xf32>
    tpu.vector_store %arg6[%c8_238, %c0_239], %314 {strides = array<i32>} : memref<224x512xf32, #tpu.memory_space<vmem>>, vector<8x512xf32>,
    %c71_i32_240 = arith.constant 71 : i32
    %316 = tpu.dynamic_rotate %305 by %c71_i32_240 dim 1 : vector<8x512xf32>, i32 -> vector<8x512xf32>
    %c2_241 = arith.constant 2 : index
    %c0_242 = arith.constant 0 : index
    %317 = vector.load %arg4[%c2_241, %c0_242] : memref<26x512xf32, #tpu.memory_space<vmem>>, vector<1x512xf32>
    %318 = vector.broadcast %317 : vector<1x512xf32> to vector<8x512xf32>
    %319 = arith.mulf %316, %318 : vector<8x512xf32>
    %c16_243 = arith.constant 16 : index
    %c0_244 = arith.constant 0 : index
    %320 = vector.load %arg6[%c16_243, %c0_244] : memref<224x512xf32, #tpu.memory_space<vmem>>, vector<8x512xf32>
    tpu.vector_store %arg6[%c16_243, %c0_244], %319 {strides = array<i32>} : memref<224x512xf32, #tpu.memory_space<vmem>>, vector<8x512xf32>,
    %c65_i32_245 = arith.constant 65 : i32
    %321 = tpu.dynamic_rotate %305 by %c65_i32_245 dim 1 : vector<8x512xf32>, i32 -> vector<8x512xf32>
    %c3_246 = arith.constant 3 : index
    %c0_247 = arith.constant 0 : index
    %322 = vector.load %arg4[%c3_246, %c0_247] : memref<26x512xf32, #tpu.memory_space<vmem>>, vector<1x512xf32>
    %323 = vector.broadcast %322 : vector<1x512xf32> to vector<8x512xf32>
    %324 = arith.mulf %321, %323 : vector<8x512xf32>
    %c24_248 = arith.constant 24 : index
    %c0_249 = arith.constant 0 : index
    %325 = vector.load %arg6[%c24_248, %c0_249] : memref<224x512xf32, #tpu.memory_space<vmem>>, vector<8x512xf32>
    tpu.vector_store %arg6[%c24_248, %c0_249], %324 {strides = array<i32>} : memref<224x512xf32, #tpu.memory_space<vmem>>, vector<8x512xf32>,
    %c64_i32_250 = arith.constant 64 : i32
    %326 = tpu.dynamic_rotate %305 by %c64_i32_250 dim 1 : vector<8x512xf32>, i32 -> vector<8x512xf32>
    %c4_251 = arith.constant 4 : index
    %c0_252 = arith.constant 0 : index
    %327 = vector.load %arg4[%c4_251, %c0_252] : memref<26x512xf32, #tpu.memory_space<vmem>>, vector<1x512xf32>
    %328 = vector.broadcast %327 : vector<1x512xf32> to vector<8x512xf32>
    %329 = arith.mulf %326, %328 : vector<8x512xf32>
    %c32_253 = arith.constant 32 : index
    %c0_254 = arith.constant 0 : index
    %330 = vector.load %arg6[%c32_253, %c0_254] : memref<224x512xf32, #tpu.memory_space<vmem>>, vector<8x512xf32>
    tpu.vector_store %arg6[%c32_253, %c0_254], %329 {strides = array<i32>} : memref<224x512xf32, #tpu.memory_space<vmem>>, vector<8x512xf32>,
    %c63_i32_255 = arith.constant 63 : i32
    %331 = tpu.dynamic_rotate %305 by %c63_i32_255 dim 1 : vector<8x512xf32>, i32 -> vector<8x512xf32>
    %c5_256 = arith.constant 5 : index
    %c0_257 = arith.constant 0 : index
    %332 = vector.load %arg4[%c5_256, %c0_257] : memref<26x512xf32, #tpu.memory_space<vmem>>, vector<1x512xf32>
    %333 = vector.broadcast %332 : vector<1x512xf32> to vector<8x512xf32>
    %334 = arith.mulf %331, %333 : vector<8x512xf32>
    %c40_258 = arith.constant 40 : index
    %c0_259 = arith.constant 0 : index
    %335 = vector.load %arg6[%c40_258, %c0_259] : memref<224x512xf32, #tpu.memory_space<vmem>>, vector<8x512xf32>
    tpu.vector_store %arg6[%c40_258, %c0_259], %334 {strides = array<i32>} : memref<224x512xf32, #tpu.memory_space<vmem>>, vector<8x512xf32>,
    %c57_i32_260 = arith.constant 57 : i32
    %336 = tpu.dynamic_rotate %305 by %c57_i32_260 dim 1 : vector<8x512xf32>, i32 -> vector<8x512xf32>
    %c6_261 = arith.constant 6 : index
    %c0_262 = arith.constant 0 : index
    %337 = vector.load %arg4[%c6_261, %c0_262] : memref<26x512xf32, #tpu.memory_space<vmem>>, vector<1x512xf32>
    %338 = vector.broadcast %337 : vector<1x512xf32> to vector<8x512xf32>
    %339 = arith.mulf %336, %338 : vector<8x512xf32>
    %c48_263 = arith.constant 48 : index
    %c0_264 = arith.constant 0 : index
    %340 = vector.load %arg6[%c48_263, %c0_264] : memref<224x512xf32, #tpu.memory_space<vmem>>, vector<8x512xf32>
    tpu.vector_store %arg6[%c48_263, %c0_264], %339 {strides = array<i32>} : memref<224x512xf32, #tpu.memory_space<vmem>>, vector<8x512xf32>,
    %c56_i32_265 = arith.constant 56 : i32
    %341 = tpu.dynamic_rotate %305 by %c56_i32_265 dim 1 : vector<8x512xf32>, i32 -> vector<8x512xf32>
    %c7_266 = arith.constant 7 : index
    %c0_267 = arith.constant 0 : index
    %342 = vector.load %arg4[%c7_266, %c0_267] : memref<26x512xf32, #tpu.memory_space<vmem>>, vector<1x512xf32>
    %343 = vector.broadcast %342 : vector<1x512xf32> to vector<8x512xf32>
    %344 = arith.mulf %341, %343 : vector<8x512xf32>
    %c56_268 = arith.constant 56 : index
    %c0_269 = arith.constant 0 : index
    %345 = vector.load %arg6[%c56_268, %c0_269] : memref<224x512xf32, #tpu.memory_space<vmem>>, vector<8x512xf32>
    tpu.vector_store %arg6[%c56_268, %c0_269], %344 {strides = array<i32>} : memref<224x512xf32, #tpu.memory_space<vmem>>, vector<8x512xf32>,
    %c55_i32_270 = arith.constant 55 : i32
    %346 = tpu.dynamic_rotate %305 by %c55_i32_270 dim 1 : vector<8x512xf32>, i32 -> vector<8x512xf32>
    %c8_271 = arith.constant 8 : index
    %c0_272 = arith.constant 0 : index
    %347 = vector.load %arg4[%c8_271, %c0_272] : memref<26x512xf32, #tpu.memory_space<vmem>>, vector<1x512xf32>
    %348 = vector.broadcast %347 : vector<1x512xf32> to vector<8x512xf32>
    %349 = arith.mulf %346, %348 : vector<8x512xf32>
    %c64_273 = arith.constant 64 : index
    %c0_274 = arith.constant 0 : index
    %350 = vector.load %arg6[%c64_273, %c0_274] : memref<224x512xf32, #tpu.memory_space<vmem>>, vector<8x512xf32>
    tpu.vector_store %arg6[%c64_273, %c0_274], %349 {strides = array<i32>} : memref<224x512xf32, #tpu.memory_space<vmem>>, vector<8x512xf32>,
    %c9_i32_275 = arith.constant 9 : i32
    %351 = tpu.dynamic_rotate %305 by %c9_i32_275 dim 1 : vector<8x512xf32>, i32 -> vector<8x512xf32>
    %c9_276 = arith.constant 9 : index
    %c0_277 = arith.constant 0 : index
    %352 = vector.load %arg4[%c9_276, %c0_277] : memref<26x512xf32, #tpu.memory_space<vmem>>, vector<1x512xf32>
    %353 = vector.broadcast %352 : vector<1x512xf32> to vector<8x512xf32>
    %354 = arith.mulf %351, %353 : vector<8x512xf32>
    %c72_278 = arith.constant 72 : index
    %c0_279 = arith.constant 0 : index
    %355 = vector.load %arg6[%c72_278, %c0_279] : memref<224x512xf32, #tpu.memory_space<vmem>>, vector<8x512xf32>
    tpu.vector_store %arg6[%c72_278, %c0_279], %354 {strides = array<i32>} : memref<224x512xf32, #tpu.memory_space<vmem>>, vector<8x512xf32>,
    %c8_i32_280 = arith.constant 8 : i32
    %356 = tpu.dynamic_rotate %305 by %c8_i32_280 dim 1 : vector<8x512xf32>, i32 -> vector<8x512xf32>
    %c10_281 = arith.constant 10 : index
    %c0_282 = arith.constant 0 : index
    %357 = vector.load %arg4[%c10_281, %c0_282] : memref<26x512xf32, #tpu.memory_space<vmem>>, vector<1x512xf32>
    %358 = vector.broadcast %357 : vector<1x512xf32> to vector<8x512xf32>
    %359 = arith.mulf %356, %358 : vector<8x512xf32>
    %c80_283 = arith.constant 80 : index
    %c0_284 = arith.constant 0 : index
    %360 = vector.load %arg6[%c80_283, %c0_284] : memref<224x512xf32, #tpu.memory_space<vmem>>, vector<8x512xf32>
    tpu.vector_store %arg6[%c80_283, %c0_284], %359 {strides = array<i32>} : memref<224x512xf32, #tpu.memory_space<vmem>>, vector<8x512xf32>,
    %c7_i32_285 = arith.constant 7 : i32
    %361 = tpu.dynamic_rotate %305 by %c7_i32_285 dim 1 : vector<8x512xf32>, i32 -> vector<8x512xf32>
    %c11_286 = arith.constant 11 : index
    %c0_287 = arith.constant 0 : index
    %362 = vector.load %arg4[%c11_286, %c0_287] : memref<26x512xf32, #tpu.memory_space<vmem>>, vector<1x512xf32>
    %363 = vector.broadcast %362 : vector<1x512xf32> to vector<8x512xf32>
    %364 = arith.mulf %361, %363 : vector<8x512xf32>
    %c88_288 = arith.constant 88 : index
    %c0_289 = arith.constant 0 : index
    %365 = vector.load %arg6[%c88_288, %c0_289] : memref<224x512xf32, #tpu.memory_space<vmem>>, vector<8x512xf32>
    tpu.vector_store %arg6[%c88_288, %c0_289], %364 {strides = array<i32>} : memref<224x512xf32, #tpu.memory_space<vmem>>, vector<8x512xf32>,
    %c1_i32_290 = arith.constant 1 : i32
    %366 = tpu.dynamic_rotate %305 by %c1_i32_290 dim 1 : vector<8x512xf32>, i32 -> vector<8x512xf32>
    %c12_291 = arith.constant 12 : index
    %c0_292 = arith.constant 0 : index
    %367 = vector.load %arg4[%c12_291, %c0_292] : memref<26x512xf32, #tpu.memory_space<vmem>>, vector<1x512xf32>
    %368 = vector.broadcast %367 : vector<1x512xf32> to vector<8x512xf32>
    %369 = arith.mulf %366, %368 : vector<8x512xf32>
    %c96_293 = arith.constant 96 : index
    %c0_294 = arith.constant 0 : index
    %370 = vector.load %arg6[%c96_293, %c0_294] : memref<224x512xf32, #tpu.memory_space<vmem>>, vector<8x512xf32>
    tpu.vector_store %arg6[%c96_293, %c0_294], %369 {strides = array<i32>} : memref<224x512xf32, #tpu.memory_space<vmem>>, vector<8x512xf32>,
    %c104_295 = arith.constant 104 : index
    %c0_296 = arith.constant 0 : index
    %371 = vector.load %arg6[%c104_295, %c0_296] : memref<224x512xf32, #tpu.memory_space<vmem>>, vector<8x512xf32>
    tpu.vector_store %arg6[%c104_295, %c0_296], %305 {strides = array<i32>} : memref<224x512xf32, #tpu.memory_space<vmem>>, vector<8x512xf32>,
    %c511_i32_297 = arith.constant 511 : i32
    %372 = tpu.dynamic_rotate %305 by %c511_i32_297 dim 1 : vector<8x512xf32>, i32 -> vector<8x512xf32>
    %c13_298 = arith.constant 13 : index
    %c0_299 = arith.constant 0 : index
    %373 = vector.load %arg4[%c13_298, %c0_299] : memref<26x512xf32, #tpu.memory_space<vmem>>, vector<1x512xf32>
    %374 = vector.broadcast %373 : vector<1x512xf32> to vector<8x512xf32>
    %375 = arith.mulf %372, %374 : vector<8x512xf32>
    %c112_300 = arith.constant 112 : index
    %c0_301 = arith.constant 0 : index
    %376 = vector.load %arg6[%c112_300, %c0_301] : memref<224x512xf32, #tpu.memory_space<vmem>>, vector<8x512xf32>
    tpu.vector_store %arg6[%c112_300, %c0_301], %375 {strides = array<i32>} : memref<224x512xf32, #tpu.memory_space<vmem>>, vector<8x512xf32>,
    %c505_i32_302 = arith.constant 505 : i32
    %377 = tpu.dynamic_rotate %305 by %c505_i32_302 dim 1 : vector<8x512xf32>, i32 -> vector<8x512xf32>
    %c14_303 = arith.constant 14 : index
    %c0_304 = arith.constant 0 : index
    %378 = vector.load %arg4[%c14_303, %c0_304] : memref<26x512xf32, #tpu.memory_space<vmem>>, vector<1x512xf32>
    %379 = vector.broadcast %378 : vector<1x512xf32> to vector<8x512xf32>
    %380 = arith.mulf %377, %379 : vector<8x512xf32>
    %c120_305 = arith.constant 120 : index
    %c0_306 = arith.constant 0 : index
    %381 = vector.load %arg6[%c120_305, %c0_306] : memref<224x512xf32, #tpu.memory_space<vmem>>, vector<8x512xf32>
    tpu.vector_store %arg6[%c120_305, %c0_306], %380 {strides = array<i32>} : memref<224x512xf32, #tpu.memory_space<vmem>>, vector<8x512xf32>,
    %c504_i32_307 = arith.constant 504 : i32
    %382 = tpu.dynamic_rotate %305 by %c504_i32_307 dim 1 : vector<8x512xf32>, i32 -> vector<8x512xf32>
    %c15_308 = arith.constant 15 : index
    %c0_309 = arith.constant 0 : index
    %383 = vector.load %arg4[%c15_308, %c0_309] : memref<26x512xf32, #tpu.memory_space<vmem>>, vector<1x512xf32>
    %384 = vector.broadcast %383 : vector<1x512xf32> to vector<8x512xf32>
    %385 = arith.mulf %382, %384 : vector<8x512xf32>
    %c128_310 = arith.constant 128 : index
    %c0_311 = arith.constant 0 : index
    %386 = vector.load %arg6[%c128_310, %c0_311] : memref<224x512xf32, #tpu.memory_space<vmem>>, vector<8x512xf32>
    tpu.vector_store %arg6[%c128_310, %c0_311], %385 {strides = array<i32>} : memref<224x512xf32, #tpu.memory_space<vmem>>, vector<8x512xf32>,
    %c503_i32_312 = arith.constant 503 : i32
    %387 = tpu.dynamic_rotate %305 by %c503_i32_312 dim 1 : vector<8x512xf32>, i32 -> vector<8x512xf32>
    %c16_313 = arith.constant 16 : index
    %c0_314 = arith.constant 0 : index
    %388 = vector.load %arg4[%c16_313, %c0_314] : memref<26x512xf32, #tpu.memory_space<vmem>>, vector<1x512xf32>
    %389 = vector.broadcast %388 : vector<1x512xf32> to vector<8x512xf32>
    %390 = arith.mulf %387, %389 : vector<8x512xf32>
    %c136_315 = arith.constant 136 : index
    %c0_316 = arith.constant 0 : index
    %391 = vector.load %arg6[%c136_315, %c0_316] : memref<224x512xf32, #tpu.memory_space<vmem>>, vector<8x512xf32>
    tpu.vector_store %arg6[%c136_315, %c0_316], %390 {strides = array<i32>} : memref<224x512xf32, #tpu.memory_space<vmem>>, vector<8x512xf32>,
    %c457_i32_317 = arith.constant 457 : i32
    %392 = tpu.dynamic_rotate %305 by %c457_i32_317 dim 1 : vector<8x512xf32>, i32 -> vector<8x512xf32>
    %c17_318 = arith.constant 17 : index
    %c0_319 = arith.constant 0 : index
    %393 = vector.load %arg4[%c17_318, %c0_319] : memref<26x512xf32, #tpu.memory_space<vmem>>, vector<1x512xf32>
    %394 = vector.broadcast %393 : vector<1x512xf32> to vector<8x512xf32>
    %395 = arith.mulf %392, %394 : vector<8x512xf32>
    %c144_320 = arith.constant 144 : index
    %c0_321 = arith.constant 0 : index
    %396 = vector.load %arg6[%c144_320, %c0_321] : memref<224x512xf32, #tpu.memory_space<vmem>>, vector<8x512xf32>
    tpu.vector_store %arg6[%c144_320, %c0_321], %395 {strides = array<i32>} : memref<224x512xf32, #tpu.memory_space<vmem>>, vector<8x512xf32>,
    %c456_i32_322 = arith.constant 456 : i32
    %397 = tpu.dynamic_rotate %305 by %c456_i32_322 dim 1 : vector<8x512xf32>, i32 -> vector<8x512xf32>
    %c18_323 = arith.constant 18 : index
    %c0_324 = arith.constant 0 : index
    %398 = vector.load %arg4[%c18_323, %c0_324] : memref<26x512xf32, #tpu.memory_space<vmem>>, vector<1x512xf32>
    %399 = vector.broadcast %398 : vector<1x512xf32> to vector<8x512xf32>
    %400 = arith.mulf %397, %399 : vector<8x512xf32>
    %c152_325 = arith.constant 152 : index
    %c0_326 = arith.constant 0 : index
    %401 = vector.load %arg6[%c152_325, %c0_326] : memref<224x512xf32, #tpu.memory_space<vmem>>, vector<8x512xf32>
    tpu.vector_store %arg6[%c152_325, %c0_326], %400 {strides = array<i32>} : memref<224x512xf32, #tpu.memory_space<vmem>>, vector<8x512xf32>,
    %c455_i32_327 = arith.constant 455 : i32
    %402 = tpu.dynamic_rotate %305 by %c455_i32_327 dim 1 : vector<8x512xf32>, i32 -> vector<8x512xf32>
    %c19_328 = arith.constant 19 : index
    %c0_329 = arith.constant 0 : index
    %403 = vector.load %arg4[%c19_328, %c0_329] : memref<26x512xf32, #tpu.memory_space<vmem>>, vector<1x512xf32>
    %404 = vector.broadcast %403 : vector<1x512xf32> to vector<8x512xf32>
    %405 = arith.mulf %402, %404 : vector<8x512xf32>
    %c160_330 = arith.constant 160 : index
    %c0_331 = arith.constant 0 : index
    %406 = vector.load %arg6[%c160_330, %c0_331] : memref<224x512xf32, #tpu.memory_space<vmem>>, vector<8x512xf32>
    tpu.vector_store %arg6[%c160_330, %c0_331], %405 {strides = array<i32>} : memref<224x512xf32, #tpu.memory_space<vmem>>, vector<8x512xf32>,
    %c449_i32_332 = arith.constant 449 : i32
    %407 = tpu.dynamic_rotate %305 by %c449_i32_332 dim 1 : vector<8x512xf32>, i32 -> vector<8x512xf32>
    %c20_333 = arith.constant 20 : index
    %c0_334 = arith.constant 0 : index
    %408 = vector.load %arg4[%c20_333, %c0_334] : memref<26x512xf32, #tpu.memory_space<vmem>>, vector<1x512xf32>
    %409 = vector.broadcast %408 : vector<1x512xf32> to vector<8x512xf32>
    %410 = arith.mulf %407, %409 : vector<8x512xf32>
    %c168_335 = arith.constant 168 : index
    %c0_336 = arith.constant 0 : index
    %411 = vector.load %arg6[%c168_335, %c0_336] : memref<224x512xf32, #tpu.memory_space<vmem>>, vector<8x512xf32>
    tpu.vector_store %arg6[%c168_335, %c0_336], %410 {strides = array<i32>} : memref<224x512xf32, #tpu.memory_space<vmem>>, vector<8x512xf32>,
    %c448_i32_337 = arith.constant 448 : i32
    %412 = tpu.dynamic_rotate %305 by %c448_i32_337 dim 1 : vector<8x512xf32>, i32 -> vector<8x512xf32>
    %c21_338 = arith.constant 21 : index
    %c0_339 = arith.constant 0 : index
    %413 = vector.load %arg4[%c21_338, %c0_339] : memref<26x512xf32, #tpu.memory_space<vmem>>, vector<1x512xf32>
    %414 = vector.broadcast %413 : vector<1x512xf32> to vector<8x512xf32>
    %415 = arith.mulf %412, %414 : vector<8x512xf32>
    %c176_340 = arith.constant 176 : index
    %c0_341 = arith.constant 0 : index
    %416 = vector.load %arg6[%c176_340, %c0_341] : memref<224x512xf32, #tpu.memory_space<vmem>>, vector<8x512xf32>
    tpu.vector_store %arg6[%c176_340, %c0_341], %415 {strides = array<i32>} : memref<224x512xf32, #tpu.memory_space<vmem>>, vector<8x512xf32>,
    %c447_i32_342 = arith.constant 447 : i32
    %417 = tpu.dynamic_rotate %305 by %c447_i32_342 dim 1 : vector<8x512xf32>, i32 -> vector<8x512xf32>
    %c22_343 = arith.constant 22 : index
    %c0_344 = arith.constant 0 : index
    %418 = vector.load %arg4[%c22_343, %c0_344] : memref<26x512xf32, #tpu.memory_space<vmem>>, vector<1x512xf32>
    %419 = vector.broadcast %418 : vector<1x512xf32> to vector<8x512xf32>
    %420 = arith.mulf %417, %419 : vector<8x512xf32>
    %c184_345 = arith.constant 184 : index
    %c0_346 = arith.constant 0 : index
    %421 = vector.load %arg6[%c184_345, %c0_346] : memref<224x512xf32, #tpu.memory_space<vmem>>, vector<8x512xf32>
    tpu.vector_store %arg6[%c184_345, %c0_346], %420 {strides = array<i32>} : memref<224x512xf32, #tpu.memory_space<vmem>>, vector<8x512xf32>,
    %c441_i32_347 = arith.constant 441 : i32
    %422 = tpu.dynamic_rotate %305 by %c441_i32_347 dim 1 : vector<8x512xf32>, i32 -> vector<8x512xf32>
    %c23_348 = arith.constant 23 : index
    %c0_349 = arith.constant 0 : index
    %423 = vector.load %arg4[%c23_348, %c0_349] : memref<26x512xf32, #tpu.memory_space<vmem>>, vector<1x512xf32>
    %424 = vector.broadcast %423 : vector<1x512xf32> to vector<8x512xf32>
    %425 = arith.mulf %422, %424 : vector<8x512xf32>
    %c192_350 = arith.constant 192 : index
    %c0_351 = arith.constant 0 : index
    %426 = vector.load %arg6[%c192_350, %c0_351] : memref<224x512xf32, #tpu.memory_space<vmem>>, vector<8x512xf32>
    tpu.vector_store %arg6[%c192_350, %c0_351], %425 {strides = array<i32>} : memref<224x512xf32, #tpu.memory_space<vmem>>, vector<8x512xf32>,
    %c440_i32_352 = arith.constant 440 : i32
    %427 = tpu.dynamic_rotate %305 by %c440_i32_352 dim 1 : vector<8x512xf32>, i32 -> vector<8x512xf32>
    %c24_353 = arith.constant 24 : index
    %c0_354 = arith.constant 0 : index
    %428 = vector.load %arg4[%c24_353, %c0_354] : memref<26x512xf32, #tpu.memory_space<vmem>>, vector<1x512xf32>
    %429 = vector.broadcast %428 : vector<1x512xf32> to vector<8x512xf32>
    %430 = arith.mulf %427, %429 : vector<8x512xf32>
    %c200_355 = arith.constant 200 : index
    %c0_356 = arith.constant 0 : index
    %431 = vector.load %arg6[%c200_355, %c0_356] : memref<224x512xf32, #tpu.memory_space<vmem>>, vector<8x512xf32>
    tpu.vector_store %arg6[%c200_355, %c0_356], %430 {strides = array<i32>} : memref<224x512xf32, #tpu.memory_space<vmem>>, vector<8x512xf32>,
    %c439_i32_357 = arith.constant 439 : i32
    %432 = tpu.dynamic_rotate %305 by %c439_i32_357 dim 1 : vector<8x512xf32>, i32 -> vector<8x512xf32>
    %c25_358 = arith.constant 25 : index
    %c0_359 = arith.constant 0 : index
    %433 = vector.load %arg4[%c25_358, %c0_359] : memref<26x512xf32, #tpu.memory_space<vmem>>, vector<1x512xf32>
    %434 = vector.broadcast %433 : vector<1x512xf32> to vector<8x512xf32>
    %435 = arith.mulf %432, %434 : vector<8x512xf32>
    %c208_360 = arith.constant 208 : index
    %c0_361 = arith.constant 0 : index
    %436 = vector.load %arg6[%c208_360, %c0_361] : memref<224x512xf32, #tpu.memory_space<vmem>>, vector<8x512xf32>
    tpu.vector_store %arg6[%c208_360, %c0_361], %435 {strides = array<i32>} : memref<224x512xf32, #tpu.memory_space<vmem>>, vector<8x512xf32>,
    %c2_362 = arith.constant 2 : index
    %c0_363 = arith.constant 0 : index
    %c0_364 = arith.constant 0 : index
    %437 = vector.load %arg2[%c2_362, %c0_363, %c0_364] : memref<3x8x224xf32, #tpu.memory_space<vmem>>, vector<1x8x224xf32>
    %438 = vector.shape_cast %437 : vector<1x8x224xf32> to vector<8x224xf32>
    %c0_365 = arith.constant 0 : index
    %c0_366 = arith.constant 0 : index
    %439 = vector.load %arg6[%c0_365, %c0_366] : memref<224x512xf32, #tpu.memory_space<vmem>>, vector<224x512xf32>
    %cst_367 = arith.constant dense<0.000000e+00> : vector<8x512xf32>
    %440 = tpu.matmul %438, %439, %cst_367 {dimension_numbers = #tpu.dot_dimension_numbers<[1], [0], [0], [1], [0, 0, 1, 1], [], []>} : vector<8x224xf32>, vector<224x512xf32>, vector<8x512xf32> -> vector<8x512xf32>
    %cst_368 = arith.constant 0.000000e+00 : f32
    %441 = vector.broadcast %cst_368 : f32 to vector<8x512xf32>
    %442 = arith.maximumf %440, %441 : vector<8x512xf32>
    %c0_369 = arith.constant 0 : index
    %c0_370 = arith.constant 0 : index
    %c0_371 = arith.constant 0 : index
    %443 = vector.load %arg5[%c0_369, %c0_370, %c0_371] : memref<1x8x512xf32, #tpu.memory_space<vmem>>, vector<1x8x512xf32>
    %444 = vector.shape_cast %443 : vector<1x8x512xf32> to vector<8x512xf32>
    %445 = vector.shape_cast %442 : vector<8x512xf32> to vector<1x8x512xf32>
    tpu.vector_store %arg5[%c0_369, %c0_370, %c0_371], %445 {strides = array<i32>} : memref<1x8x512xf32, #tpu.memory_space<vmem>>, vector<1x8x512xf32>,
    return
  }
  func.func @transform_0(%arg0: i32) -> (i32, i32, i32) {
    %c0_i32 = arith.constant 0 : i32
    %c0_i32_0 = arith.constant 0 : i32
    %c0_i32_1 = arith.constant 0 : i32
    return %arg0, %c0_i32, %c0_i32_0 : i32, i32, i32
  }
  func.func @transform_1(%arg0: i32) -> (i32, i32, i32) {
    %c0_i32 = arith.constant 0 : i32
    %c0_i32_0 = arith.constant 0 : i32
    %c0_i32_1 = arith.constant 0 : i32
    %c0_i32_2 = arith.constant 0 : i32
    return %c0_i32, %c0_i32_0, %c0_i32_1 : i32, i32, i32
  }
  func.func @transform_2(%arg0: i32) -> (i32, i32, i32, i32) {
    %c0_i32 = arith.constant 0 : i32
    %c0_i32_0 = arith.constant 0 : i32
    %c0_i32_1 = arith.constant 0 : i32
    %c0_i32_2 = arith.constant 0 : i32
    %c0_i32_3 = arith.constant 0 : i32
    return %c0_i32, %c0_i32_0, %c0_i32_1, %c0_i32_2 : i32, i32, i32, i32
  }
  func.func @transform_3(%arg0: i32) -> (i32, i32) {
    %c0_i32 = arith.constant 0 : i32
    %c0_i32_0 = arith.constant 0 : i32
    %c0_i32_1 = arith.constant 0 : i32
    return %c0_i32, %c0_i32_0 : i32, i32
  }
  func.func @transform_4(%arg0: i32) -> (i32, i32, i32) {
    %c0_i32 = arith.constant 0 : i32
    %c0_i32_0 = arith.constant 0 : i32
    %c0_i32_1 = arith.constant 0 : i32
    return %arg0, %c0_i32, %c0_i32_0 : i32, i32, i32
  }
}

</mosaic_0001>

<llo_original>
// kernel: block3d_forward.1
$region0: #{block3d_forward.1}
  #allocation0 [shape = 'u32[]', space=smem, size = 0x4, offset = 0x4, fixed_abs, tag = 'smem constant byte address 0x4 - core index']
  #allocation1 [shape = 'u32[144,128]{1,0:T(1,128)}', space=vmem, size = 0x12000, scoped, tag = 'internal scratch']
  #allocation2 [shape = 'f32[224,512]{1,0:T(8,128)}', space=vmem, size = 0x70000, scoped, tag = 'scratch operand']
  %s0 = inlined_call_operand.vmem [shape: f32[2,8,512], index: 0, kind: input, shape index: {}]
  %s1 = inlined_call_operand.vmem [shape: f32[3,8,224], index: 1, kind: input, shape index: {}]
  %s2 = inlined_call_operand.vmem [shape: f32[3,2,8,1], index: 2, kind: input, shape index: {}]
  %s3 = inlined_call_operand.vmem [shape: f32[26,512], index: 3, kind: input, shape index: {}]
  %s4 = inlined_call_operand.vmem [shape: f32[2,8,512], index: 4, kind: output, shape index: {}]
  %s5 = sld [smem:[#allocation0]]
  $region49: #{block3d_forward.1} parent=0
    _
  %s7 = ssub.s32 1, %s5
  %s8 = scalar_select 0, %s7, %s5
  loop: start=0, step=1, limit=4
  $region2: #{block3d_forward.1} parent=0 // loop_pre_header
    _
  $region3: #{block3d_forward.1} parent=0 // loop_header
    %s10 = sphi 0, %s14
    %p11 = scmp.ge.s32.totalorder %s10, 4
    %s20 = sphi 0, %s22
    %s23 = sphi 0, %s20
    %s24 = sphi 0, %s23
    %s40 = sphi 0, %s24
    %s44 = sphi 0, %s44
    %s46 = sphi 0, %s44
    %s47 = sphi 0, %s46
    %s61 = sphi 0, %s47
    %s65 = sphi 0, %s65
    %s67 = sphi 0, %s65
    %s68 = sphi 0, %s67
    %s82 = sphi 0, %s68
    %s86 = sphi 0, %s86
    %s88 = sphi 0, %s86
    %s89 = sphi 0, %s88
    %s103 = sphi 0, %s89
    %s109 = sphi 0, %s111
    %s112 = sphi 0, %s109
    %s113 = sphi 0, %s112
    %s129 = sphi 0, %s113
  $region4: #{block3d_forward.1} parent=0 // loop_header_branch
    %13 = sbr.rel (%p11) target = $region8
  $region5: #{block3d_forward.1} parent=0 // loop_body
    %s15 = ssub.s32 %s10, 1
    %s16 = ssub.s32 %s10, 2
    %s17 = sadd.s32 %s10, 1
    %s18 = ssub.s32 %s10, %s17
    %p19 = scmp.eq.s32.totalorder %s18, 0
    %s21 = sadd.s32 %s20, 1
    %s22 = scalar_select %p19, %s20, %s21
    %p25 = pneg %p19
    %p26 = scmp.eq.s32.totalorder %s10, 1
    %p27 = por %p25, %p26
    %p28 = scmp.ne.s32.totalorder %s20, %s23
    %p29 = scmp.eq.s32.totalorder %s10, 0
    %p30 = por %p28, %p29
    %p31 = scmp.ne.s32.totalorder %s20, %s23
    %p32 = scmp.eq.s32.totalorder %s15, 1
    %p33 = por %p31, %p32
    %p34 = scmp.ne.s32.totalorder %s23, %s24
    %p35 = scmp.eq.s32.totalorder %s15, 0
    %p36 = por %p34, %p35
    %p37 = scmp.ne.s32.totalorder %s23, %s24
    %p38 = scmp.eq.s32.totalorder %s16, 1
    %p39 = por %p37, %p38
    %p41 = scmp.ne.s32.totalorder %s24, %s40
    %p42 = scmp.eq.s32.totalorder %s16, 0
    %p43 = por %p41, %p42
    %s45 = sadd.s32 %s44, 1
    %p48 = scmp.eq.s32.totalorder %s10, 1
    %p49 = scmp.ne.s32.totalorder %s44, %s46
    %p50 = scmp.eq.s32.totalorder %s10, 0
    %p51 = por %p49, %p50
    %p52 = scmp.ne.s32.totalorder %s44, %s46
    %p53 = scmp.eq.s32.totalorder %s15, 1
    %p54 = por %p52, %p53
    %p55 = scmp.ne.s32.totalorder %s46, %s47
    %p56 = scmp.eq.s32.totalorder %s15, 0
    %p57 = por %p55, %p56
    %p58 = scmp.ne.s32.totalorder %s46, %s47
    %p59 = scmp.eq.s32.totalorder %s16, 1
    %p60 = por %p58, %p59
    %p62 = scmp.ne.s32.totalorder %s47, %s61
    %p63 = scmp.eq.s32.totalorder %s16, 0
    %p64 = por %p62, %p63
    %s66 = sadd.s32 %s65, 1
    %p69 = scmp.eq.s32.totalorder %s10, 1
    %p70 = scmp.ne.s32.totalorder %s65, %s67
    %p71 = scmp.eq.s32.totalorder %s10, 0
    %p72 = por %p70, %p71
    %p73 = scmp.ne.s32.totalorder %s65, %s67
    %p74 = scmp.eq.s32.totalorder %s15, 1
    %p75 = por %p73, %p74
    %p76 = scmp.ne.s32.totalorder %s67, %s68
    %p77 = scmp.eq.s32.totalorder %s15, 0
    %p78 = por %p76, %p77
    %p79 = scmp.ne.s32.totalorder %s67, %s68
    %p80 = scmp.eq.s32.totalorder %s16, 1
    %p81 = por %p79, %p80
    %p83 = scmp.ne.s32.totalorder %s68, %s82
    %p84 = scmp.eq.s32.totalorder %s16, 0
    %p85 = por %p83, %p84
    %s87 = sadd.s32 %s86, 1
    %p90 = scmp.eq.s32.totalorder %s10, 1
    %p91 = scmp.ne.s32.totalorder %s86, %s88
    %p92 = scmp.eq.s32.totalorder %s10, 0
    %p93 = por %p91, %p92
    %p94 = scmp.ne.s32.totalorder %s86, %s88
    %p95 = scmp.eq.s32.totalorder %s15, 1
    %p96 = por %p94, %p95
    %p97 = scmp.ne.s32.totalorder %s88, %s89
    %p98 = scmp.eq.s32.totalorder %s15, 0
    %p99 = por %p97, %p98
    %p100 = scmp.ne.s32.totalorder %s88, %s89
    %p101 = scmp.eq.s32.totalorder %s16, 1
    %p102 = por %p100, %p101
    %p104 = scmp.ne.s32.totalorder %s89, %s103
    %p105 = scmp.eq.s32.totalorder %s16, 0
    %p106 = por %p104, %p105
    %s107 = ssub.s32 %s10, %s17
    %p108 = scmp.eq.s32.totalorder %s107, 0
    %s110 = sadd.s32 %s109, 1
    %s111 = scalar_select %p108, %s109, %s110
    %p114 = pneg %p108
    %p115 = scmp.eq.s32.totalorder %s10, 1
    %p116 = por %p114, %p115
    %p117 = scmp.ne.s32.totalorder %s109, %s112
    %p118 = scmp.eq.s32.totalorder %s10, 0
    %p119 = por %p117, %p118
    %p120 = scmp.ne.s32.totalorder %s109, %s112
    %p121 = scmp.eq.s32.totalorder %s15, 1
    %p122 = por %p120, %p121
    %p123 = scmp.ne.s32.totalorder %s112, %s113
    %p124 = scmp.eq.s32.totalorder %s15, 0
    %p125 = por %p123, %p124
    %p126 = scmp.ne.s32.totalorder %s112, %s113
    %p127 = scmp.eq.s32.totalorder %s16, 1
    %p128 = por %p126, %p127
    %p130 = scmp.ne.s32.totalorder %s113, %s129
    %p131 = scmp.eq.s32.totalorder %s16, 0
    %p132 = por %p130, %p131
    %p133 = scmp.le.s32.totalorder 1, %s10
    %p134 = scmp.lt.s32.totalorder %s10, 3
    %p135 = pnand %p133, %p134
    %p136 = pneg %p135
    // Predicated region
    $region9: #{block3d_forward.1} parent=5 // pred_check
      _
    $region10: #{block3d_forward.1} parent=5 // pred_check_branch
      %138 = sbr.rel (%p135) target = $region12
    $region11: #{block3d_forward.1} parent=5 // pred_region
      %s139 = ssub.s32 %s10, 1
      // Predicated region
      $region13: #{block3d_forward.1} parent=11 // pred_check
        %p140 = pneg %p57
      $region14: #{block3d_forward.1} parent=11 // pred_check_branch
        %142 = sbr.rel (%p140) target = $region16
      $region15: #{block3d_forward.1} parent=11 // pred_region
        _
      $region16: #{block3d_forward.1} parent=11 // pred_fallthru
        _
      // Predicated region
      $region17: #{block3d_forward.1} parent=11 // pred_check
        %p143 = pneg %p78
      $region18: #{block3d_forward.1} parent=11 // pred_check_branch
        %145 = sbr.rel (%p143) target = $region20
      $region19: #{block3d_forward.1} parent=11 // pred_region
        _
      $region20: #{block3d_forward.1} parent=11 // pred_fallthru
        _
      // Predicated region
      $region21: #{block3d_forward.1} parent=11 // pred_check
        %p146 = pneg %p99
      $region22: #{block3d_forward.1} parent=11 // pred_check_branch
        %148 = sbr.rel (%p146) target = $region24
      $region23: #{block3d_forward.1} parent=11 // pred_region
        _
      $region24: #{block3d_forward.1} parent=11 // pred_fallthru
        _
    $region12: #{block3d_forward.1} parent=5 // pred_fallthru
      _
    %p149 = scmp.lt.s32.totalorder %s10, 2
    // Predicated region
    $region25: #{block3d_forward.1} parent=5 // pred_check
      %p150 = pneg %p149
    $region26: #{block3d_forward.1} parent=5 // pred_check_branch
      %152 = sbr.rel (%p150) target = $region28
    $region27: #{block3d_forward.1} parent=5 // pred_region
      // Predicated region
      $region29: #{block3d_forward.1} parent=27 // pred_check
        %p153 = pneg %p30
      $region30: #{block3d_forward.1} parent=27 // pred_check_branch
        %155 = sbr.rel (%p153) target = $region32
      $region31: #{block3d_forward.1} parent=27 // pred_region
        %p156 = scmp.lt.s32.totalorder %s10, 1
        %s157 = scalar_select %p156, %s10, 1
        %s158 = smul.addr %s157, 4
        %s159 = smul.addr %s158, 8
        %s160 = scalar_lea.vmem %s0, %s159
      $region32: #{block3d_forward.1} parent=27 // pred_fallthru
        _
    $region28: #{block3d_forward.1} parent=5 // pred_fallthru
      _
    %p161 = scmp.le.s32.totalorder 1, %s10
    %p162 = scmp.lt.s32.totalorder %s10, 3
    %p163 = pnand %p161, %p162
    %p164 = pneg %p163
    // Predicated region
    $region33: #{block3d_forward.1} parent=5 // pred_check
      _
    $region34: #{block3d_forward.1} parent=5 // pred_check_branch
      %166 = sbr.rel (%p163) target = $region36
    $region35: #{block3d_forward.1} parent=5 // pred_region
      %s167 = ssub.s32 %s10, 1
      %p168 = scmp.lt.s32.totalorder %s15, 1
      %s169 = scalar_select %p168, %s15, 1
      %s170 = smul.addr %s169, 4
      %s171 = smul.addr %s170, 8
      %s172 = scalar_lea.vmem %s0, %s171
      %p173 = pneg %p36
      %p174 = pneg %p33
      %p175 = pneg %p57
      %p176 = pneg %p54
      %p177 = pneg %p78
      %p178 = pneg %p75
      %p179 = pneg %p99
      %p180 = pneg %p96
      %p181 = pneg %p125
      %p182 = pneg %p122
      %p183 = scmp.lt.s32.totalorder %s15, 1
      %s184 = scalar_select %p183, %s15, 1
      %s185 = smul.addr %s184, 4
      %s186 = smul.addr %s185, 8
      %s187 = scalar_lea.vmem %s4, %s186
      %p188 = scmp.lt.s32.totalorder %s15, 1
      %s189 = scalar_select %p188, %s15, 1
      %s190 = smul.addr %s189, 4
      %s191 = smul.addr %s190, 8
      %s192 = scalar_lea.vmem %s0, %s191
      %p193 = scmp.lt.s32.totalorder %s15, 1
      %s194 = scalar_select %p193, %s15, 1
      %s195 = smul.addr %s194, 4
      %s196 = smul.addr %s195, 8
      %s197 = scalar_lea.vmem %s4, %s196
      %v198 = vlaneseq
      %v199 = vshrl.u32 %v198, 7
      %vm200 = vcmp.eq.s32.totalorder %v199, 0
      %v201 = vsel %vm200, 1, 0
      %v202 = vcvt.s32.f32 %v201
      %203 = vst [vmem:[#allocation2 + $0x360] sm:$0xff] %v202
      %204 = vst [vmem:[#allocation2 + $0x368] sm:$0xff] %v202
      %205 = vst [vmem:[#allocation2 + $0x370] sm:$0xff] %v202
      %206 = vst [vmem:[#allocation2 + $0x378] sm:$0xff] %v202
      %v207 = vld [vmem:[%s192] sm:$0xff]
      %v208 = vld [vmem:[%s192 + $0x8] sm:$0xff]
      %v209 = vld [vmem:[%s192 + $0x10] sm:$0xff]
      %v210 = vld [vmem:[%s192 + $0x18] sm:$0xff]
      %v211 = vld [vmem:[%s2] sm:$0xff]
      %213 = vset.pattern.permute.xlu0 0
      %214 = vperm.xlu0 %213, %v211
      %v215 = vpop.permute.xlu0 %214
      %v217 = vmul.f32 %v207, %v215
      %v218 = vmul.f32 %v208, %v215
      %v219 = vmul.f32 %v209, %v215
      %v220 = vmul.f32 %v210, %v215
      %s221 = scalar_lea.vmem %s2, 8
      %v222 = vld [vmem:[%s221] sm:$0xff]
      %224 = vset.pattern.permute.xlu0 0
      %225 = vperm.xlu0 %224, %v222
      %v226 = vpop.permute.xlu0 %225
      %v228 = vadd.f32 %v217, %v226
      %v229 = vadd.f32 %v218, %v226
      %v230 = vadd.f32 %v219, %v226
      %v231 = vadd.f32 %v220, %v226
      %232 = vrot.lane.b32.xlu0 %v228, 73
      %v233 = vpop.permute.xlu0 %232
      %234 = vrot.lane.b32.xlu0 %v229, 73
      %v235 = vpop.permute.xlu0 %234
      %236 = vrot.lane.b32.xlu0 %v230, 73
      %v237 = vpop.permute.xlu0 %236
      %238 = vrot.lane.b32.xlu0 %v231, 73
      %v239 = vpop.permute.xlu0 %238
      %v240 = vlaneseq
      %v241 = vand.u32 %v240, 127
      %vm242 = vcmp.lt.s32.totalorder %v241, 73
      %v243 = vsel %vm242, %v237, %v239
      %v244 = vsel %vm242, %v235, %v237
      %v245 = vsel %vm242, %v233, %v235
      %v246 = vsel %vm242, %v239, %v233
      %v247 = vld [vmem:[%s3] ss:$8 sm:$0xf]
      %v249 = vlaneseq
      %v250 = vshrl.u32 %v249, 7
      %v251 = vsub.s32 0, %v250
      %v252 = vrot.slane %v247, %v251
      %v253 = vlaneseq
      %v254 = vshrl.u32 %v253, 7
      %v255 = vsub.s32 1, %v254
      %v256 = vrot.slane %v247, %v255
      %v257 = vlaneseq
      %v258 = vshrl.u32 %v257, 7
      %v259 = vsub.s32 2, %v258
      %v260 = vrot.slane %v247, %v259
      %v261 = vlaneseq
      %v262 = vshrl.u32 %v261, 7
      %v263 = vsub.s32 3, %v262
      %v264 = vrot.slane %v247, %v263
      %v269 = vmul.f32 %v246, %v252
      %v270 = vmul.f32 %v245, %v256
      %v271 = vmul.f32 %v244, %v260
      %v272 = vmul.f32 %v243, %v264
      %273 = vst [vmem:[#allocation2] sm:$0xff] %v269
      %274 = vst [vmem:[#allocation2 + $0x8] sm:$0xff] %v270
      %275 = vst [vmem:[#allocation2 + $0x10] sm:$0xff] %v271
      %276 = vst [vmem:[#allocation2 + $0x18] sm:$0xff] %v272
      %277 = vrot.lane.b32.xlu0 %v228, 72
      %v278 = vpop.permute.xlu0 %277
      %279 = vrot.lane.b32.xlu0 %v229, 72
      %v280 = vpop.permute.xlu0 %279
      %281 = vrot.lane.b32.xlu0 %v230, 72
      %v282 = vpop.permute.xlu0 %281
      %283 = vrot.lane.b32.xlu0 %v231, 72
      %v284 = vpop.permute.xlu0 %283
      %vm285 = vcmp.lt.s32.totalorder %v241, 72
      %v286 = vsel %vm285, %v282, %v284
      %v287 = vsel %vm285, %v280, %v282
      %v288 = vsel %vm285, %v278, %v280
      %v289 = vsel %vm285, %v284, %v278
      %s290 = scalar_lea.vmem %s3, 1
      %v291 = vld [vmem:[%s290] ss:$8 sm:$0xf]
      %v293 = vlaneseq
      %v294 = vshrl.u32 %v293, 7
      %v295 = vsub.s32 0, %v294
      %v296 = vrot.slane %v291, %v295
      %v297 = vlaneseq
      %v298 = vshrl.u32 %v297, 7
      %v299 = vsub.s32 1, %v298
      %v300 = vrot.slane %v291, %v299
      %v301 = vlaneseq
      %v302 = vshrl.u32 %v301, 7
      %v303 = vsub.s32 2, %v302
      %v304 = vrot.slane %v291, %v303
      %v305 = vlaneseq
      %v306 = vshrl.u32 %v305, 7
      %v307 = vsub.s32 3, %v306
      %v308 = vrot.slane %v291, %v307
      %v313 = vmul.f32 %v289, %v296
      %v314 = vmul.f32 %v288, %v300
      %v315 = vmul.f32 %v287, %v304
      %v316 = vmul.f32 %v286, %v308
      %317 = vst [vmem:[#allocation2 + $0x20] sm:$0xff] %v313
      %318 = vst [vmem:[#allocation2 + $0x28] sm:$0xff] %v314
      %319 = vst [vmem:[#allocation2 + $0x30] sm:$0xff] %v315
      %320 = vst [vmem:[#allocation2 + $0x38] sm:$0xff] %v316
      %321 = vrot.lane.b32.xlu0 %v228, 71
      %v322 = vpop.permute.xlu0 %321
      %323 = vrot.lane.b32.xlu0 %v229, 71
      %v324 = vpop.permute.xlu0 %323
      %325 = vrot.lane.b32.xlu0 %v230, 71
      %v326 = vpop.permute.xlu0 %325
      %327 = vrot.lane.b32.xlu0 %v231, 71
      %v328 = vpop.permute.xlu0 %327
      %vm329 = vcmp.lt.s32.totalorder %v241, 71
      %v330 = vsel %vm329, %v326, %v328
      %v331 = vsel %vm329, %v324, %v326
      %v332 = vsel %vm329, %v322, %v324
      %v333 = vsel %vm329, %v328, %v322
      %s334 = scalar_lea.vmem %s3, 2
      %v335 = vld [vmem:[%s334] ss:$8 sm:$0xf]
      %v337 = vlaneseq
      %v338 = vshrl.u32 %v337, 7
      %v339 = vsub.s32 0, %v338
      %v340 = vrot.slane %v335, %v339
      %v341 = vlaneseq
      %v342 = vshrl.u32 %v341, 7
      %v343 = vsub.s32 1, %v342
      %v344 = vrot.slane %v335, %v343
      %v345 = vlaneseq
      %v346 = vshrl.u32 %v345, 7
      %v347 = vsub.s32 2, %v346
      %v348 = vrot.slane %v335, %v347
      %v349 = vlaneseq
      %v350 = vshrl.u32 %v349, 7
      %v351 = vsub.s32 3, %v350
      %v352 = vrot.slane %v335, %v351
      %v357 = vmul.f32 %v333, %v340
      %v358 = vmul.f32 %v332, %v344
      %v359 = vmul.f32 %v331, %v348
      %v360 = vmul.f32 %v330, %v352
      %361 = vst [vmem:[#allocation2 + $0x40] sm:$0xff] %v357
      %362 = vst [vmem:[#allocation2 + $0x48] sm:$0xff] %v358
      %363 = vst [vmem:[#allocation2 + $0x50] sm:$0xff] %v359
      %364 = vst [vmem:[#allocation2 + $0x58] sm:$0xff] %v360
      %365 = vrot.lane.b32.xlu0 %v228, 65
      %v366 = vpop.permute.xlu0 %365
      %367 = vrot.lane.b32.xlu0 %v229, 65
      %v368 = vpop.permute.xlu0 %367
      %369 = vrot.lane.b32.xlu0 %v230, 65
      %v370 = vpop.permute.xlu0 %369
      %371 = vrot.lane.b32.xlu0 %v231, 65
      %v372 = vpop.permute.xlu0 %371
      %vm373 = vcmp.lt.s32.totalorder %v241, 65
      %v374 = vsel %vm373, %v370, %v372
      %v375 = vsel %vm373, %v368, %v370
      %v376 = vsel %vm373, %v366, %v368
      %v377 = vsel %vm373, %v372, %v366
      %s378 = scalar_lea.vmem %s3, 3
      %v379 = vld [vmem:[%s378] ss:$8 sm:$0xf]
      %v381 = vlaneseq
      %v382 = vshrl.u32 %v381, 7
      %v383 = vsub.s32 0, %v382
      %v384 = vrot.slane %v379, %v383
      %v385 = vlaneseq
      %v386 = vshrl.u32 %v385, 7
      %v387 = vsub.s32 1, %v386
      %v388 = vrot.slane %v379, %v387
      %v389 = vlaneseq
      %v390 = vshrl.u32 %v389, 7
      %v391 = vsub.s32 2, %v390
      %v392 = vrot.slane %v379, %v391
      %v393 = vlaneseq
      %v394 = vshrl.u32 %v393, 7
      %v395 = vsub.s32 3, %v394
      %v396 = vrot.slane %v379, %v395
      %v401 = vmul.f32 %v377, %v384
      %v402 = vmul.f32 %v376, %v388
      %v403 = vmul.f32 %v375, %v392
      %v404 = vmul.f32 %v374, %v396
      %405 = vst [vmem:[#allocation2 + $0x60] sm:$0xff] %v401
      %406 = vst [vmem:[#allocation2 + $0x68] sm:$0xff] %v402
      %407 = vst [vmem:[#allocation2 + $0x70] sm:$0xff] %v403
      %408 = vst [vmem:[#allocation2 + $0x78] sm:$0xff] %v404
      %409 = vrot.lane.b32.xlu0 %v228, 64
      %v410 = vpop.permute.xlu0 %409
      %411 = vrot.lane.b32.xlu0 %v229, 64
      %v412 = vpop.permute.xlu0 %411
      %413 = vrot.lane.b32.xlu0 %v230, 64
      %v414 = vpop.permute.xlu0 %413
      %415 = vrot.lane.b32.xlu0 %v231, 64
      %v416 = vpop.permute.xlu0 %415
      %vm417 = vcmp.lt.s32.totalorder %v241, 64
      %v418 = vsel %vm417, %v414, %v416
      %v419 = vsel %vm417, %v412, %v414
      %v420 = vsel %vm417, %v410, %v412
      %v421 = vsel %vm417, %v416, %v410
      %s422 = scalar_lea.vmem %s3, 4
      %v423 = vld [vmem:[%s422] ss:$8 sm:$0xf]
      %v425 = vlaneseq
      %v426 = vshrl.u32 %v425, 7
      %v427 = vsub.s32 0, %v426
      %v428 = vrot.slane %v423, %v427
      %v429 = vlaneseq
      %v430 = vshrl.u32 %v429, 7
      %v431 = vsub.s32 1, %v430
      %v432 = vrot.slane %v423, %v431
      %v433 = vlaneseq
      %v434 = vshrl.u32 %v433, 7
      %v435 = vsub.s32 2, %v434
      %v436 = vrot.slane %v423, %v435
      %v437 = vlaneseq
      %v438 = vshrl.u32 %v437, 7
      %v439 = vsub.s32 3, %v438
      %v440 = vrot.slane %v423, %v439
      %v445 = vmul.f32 %v421, %v428
      %v446 = vmul.f32 %v420, %v432
      %v447 = vmul.f32 %v419, %v436
      %v448 = vmul.f32 %v418, %v440
      %449 = vst [vmem:[#allocation2 + $0x80] sm:$0xff] %v445
      %450 = vst [vmem:[#allocation2 + $0x88] sm:$0xff] %v446
      %451 = vst [vmem:[#allocation2 + $0x90] sm:$0xff] %v447
      %452 = vst [vmem:[#allocation2 + $0x98] sm:$0xff] %v448
      %453 = vrot.lane.b32.xlu0 %v228, 63
      %v454 = vpop.permute.xlu0 %453
      %455 = vrot.lane.b32.xlu0 %v229, 63
      %v456 = vpop.permute.xlu0 %455
      %457 = vrot.lane.b32.xlu0 %v230, 63
      %v458 = vpop.permute.xlu0 %457
      %459 = vrot.lane.b32.xlu0 %v231, 63
      %v460 = vpop.permute.xlu0 %459
      %vm461 = vcmp.lt.s32.totalorder %v241, 63
      %v462 = vsel %vm461, %v458, %v460
      %v463 = vsel %vm461, %v456, %v458
      %v464 = vsel %vm461, %v454, %v456
      %v465 = vsel %vm461, %v460, %v454
      %s466 = scalar_lea.vmem %s3, 5
      %v467 = vld [vmem:[%s466] ss:$8 sm:$0xf]
      %v469 = vlaneseq
      %v470 = vshrl.u32 %v469, 7
      %v471 = vsub.s32 0, %v470
      %v472 = vrot.slane %v467, %v471
      %v473 = vlaneseq
      %v474 = vshrl.u32 %v473, 7
      %v475 = vsub.s32 1, %v474
      %v476 = vrot.slane %v467, %v475
      %v477 = vlaneseq
      %v478 = vshrl.u32 %v477, 7
      %v479 = vsub.s32 2, %v478
      %v480 = vrot.slane %v467, %v479
      %v481 = vlaneseq
      %v482 = vshrl.u32 %v481, 7
      %v483 = vsub.s32 3, %v482
      %v484 = vrot.slane %v467, %v483
      %v489 = vmul.f32 %v465, %v472
      %v490 = vmul.f32 %v464, %v476
      %v491 = vmul.f32 %v463, %v480
      %v492 = vmul.f32 %v462, %v484
      %493 = vst [vmem:[#allocation2 + $0xa0] sm:$0xff] %v489
      %494 = vst [vmem:[#allocation2 + $0xa8] sm:$0xff] %v490
      %495 = vst [vmem:[#allocation2 + $0xb0] sm:$0xff] %v491
      %496 = vst [vmem:[#allocation2 + $0xb8] sm:$0xff] %v492
      %497 = vrot.lane.b32.xlu0 %v228, 57
      %v498 = vpop.permute.xlu0 %497
      %499 = vrot.lane.b32.xlu0 %v229, 57
      %v500 = vpop.permute.xlu0 %499
      %501 = vrot.lane.b32.xlu0 %v230, 57
      %v502 = vpop.permute.xlu0 %501
      %503 = vrot.lane.b32.xlu0 %v231, 57
      %v504 = vpop.permute.xlu0 %503
      %vm505 = vcmp.lt.s32.totalorder %v241, 57
      %v506 = vsel %vm505, %v502, %v504
      %v507 = vsel %vm505, %v500, %v502
      %v508 = vsel %vm505, %v498, %v500
      %v509 = vsel %vm505, %v504, %v498
      %s510 = scalar_lea.vmem %s3, 6
      %v511 = vld [vmem:[%s510] ss:$8 sm:$0xf]
      %v513 = vlaneseq
      %v514 = vshrl.u32 %v513, 7
      %v515 = vsub.s32 0, %v514
      %v516 = vrot.slane %v511, %v515
      %v517 = vlaneseq
      %v518 = vshrl.u32 %v517, 7
      %v519 = vsub.s32 1, %v518
      %v520 = vrot.slane %v511, %v519
      %v521 = vlaneseq
      %v522 = vshrl.u32 %v521, 7
      %v523 = vsub.s32 2, %v522
      %v524 = vrot.slane %v511, %v523
      %v525 = vlaneseq
      %v526 = vshrl.u32 %v525, 7
      %v527 = vsub.s32 3, %v526
      %v528 = vrot.slane %v511, %v527
      %v533 = vmul.f32 %v509, %v516
      %v534 = vmul.f32 %v508, %v520
      %v535 = vmul.f32 %v507, %v524
      %v536 = vmul.f32 %v506, %v528
      %537 = vst [vmem:[#allocation2 + $0xc0] sm:$0xff] %v533
      %538 = vst [vmem:[#allocation2 + $0xc8] sm:$0xff] %v534
      %539 = vst [vmem:[#allocation2 + $0xd0] sm:$0xff] %v535
      %540 = vst [vmem:[#allocation2 + $0xd8] sm:$0xff] %v536
      %541 = vrot.lane.b32.xlu0 %v228, 56
      %v542 = vpop.permute.xlu0 %541
      %543 = vrot.lane.b32.xlu0 %v229, 56
      %v544 = vpop.permute.xlu0 %543
      %545 = vrot.lane.b32.xlu0 %v230, 56
      %v546 = vpop.permute.xlu0 %545
      %547 = vrot.lane.b32.xlu0 %v231, 56
      %v548 = vpop.permute.xlu0 %547
      %vm549 = vcmp.lt.s32.totalorder %v241, 56
      %v550 = vsel %vm549, %v546, %v548
      %v551 = vsel %vm549, %v544, %v546
      %v552 = vsel %vm549, %v542, %v544
      %v553 = vsel %vm549, %v548, %v542
      %s554 = scalar_lea.vmem %s3, 7
      %v555 = vld [vmem:[%s554] ss:$8 sm:$0xf]
      %v557 = vlaneseq
      %v558 = vshrl.u32 %v557, 7
      %v559 = vsub.s32 0, %v558
      %v560 = vrot.slane %v555, %v559
      %v561 = vlaneseq
      %v562 = vshrl.u32 %v561, 7
      %v563 = vsub.s32 1, %v562
      %v564 = vrot.slane %v555, %v563
      %v565 = vlaneseq
      %v566 = vshrl.u32 %v565, 7
      %v567 = vsub.s32 2, %v566
      %v568 = vrot.slane %v555, %v567
      %v569 = vlaneseq
      %v570 = vshrl.u32 %v569, 7
      %v571 = vsub.s32 3, %v570
      %v572 = vrot.slane %v555, %v571
      %v577 = vmul.f32 %v553, %v560
      %v578 = vmul.f32 %v552, %v564
      %v579 = vmul.f32 %v551, %v568
      %v580 = vmul.f32 %v550, %v572
      %581 = vst [vmem:[#allocation2 + $0xe0] sm:$0xff] %v577
      %582 = vst [vmem:[#allocation2 + $0xe8] sm:$0xff] %v578
      %583 = vst [vmem:[#allocation2 + $0xf0] sm:$0xff] %v579
      %584 = vst [vmem:[#allocation2 + $0xf8] sm:$0xff] %v580
      %585 = vrot.lane.b32.xlu0 %v228, 55
      %v586 = vpop.permute.xlu0 %585
      %587 = vrot.lane.b32.xlu0 %v229, 55
      %v588 = vpop.permute.xlu0 %587
      %589 = vrot.lane.b32.xlu0 %v230, 55
      %v590 = vpop.permute.xlu0 %589
      %591 = vrot.lane.b32.xlu0 %v231, 55
      %v592 = vpop.permute.xlu0 %591
      %vm593 = vcmp.lt.s32.totalorder %v241, 55
      %v594 = vsel %vm593, %v590, %v592
      %v595 = vsel %vm593, %v588, %v590
      %v596 = vsel %vm593, %v586, %v588
      %v597 = vsel %vm593, %v592, %v586
      %s598 = scalar_lea.vmem %s3, 32
      %v599 = vld [vmem:[%s598] ss:$8 sm:$0xf]
      %v601 = vlaneseq
      %v602 = vshrl.u32 %v601, 7
      %v603 = vsub.s32 0, %v602
      %v604 = vrot.slane %v599, %v603
      %v605 = vlaneseq
      %v606 = vshrl.u32 %v605, 7
      %v607 = vsub.s32 1, %v606
      %v608 = vrot.slane %v599, %v607
      %v609 = vlaneseq
      %v610 = vshrl.u32 %v609, 7
      %v611 = vsub.s32 2, %v610
      %v612 = vrot.slane %v599, %v611
      %v613 = vlaneseq
      %v614 = vshrl.u32 %v613, 7
      %v615 = vsub.s32 3, %v614
      %v616 = vrot.slane %v599, %v615
      %v621 = vmul.f32 %v597, %v604
      %v622 = vmul.f32 %v596, %v608
      %v623 = vmul.f32 %v595, %v612
      %v624 = vmul.f32 %v594, %v616
      %625 = vst [vmem:[#allocation2 + $0x100] sm:$0xff] %v621
      %626 = vst [vmem:[#allocation2 + $0x108] sm:$0xff] %v622
      %627 = vst [vmem:[#allocation2 + $0x110] sm:$0xff] %v623
      %628 = vst [vmem:[#allocation2 + $0x118] sm:$0xff] %v624
      %629 = vrot.lane.b32.xlu0 %v228, 9
      %v630 = vpop.permute.xlu0 %629
      %631 = vrot.lane.b32.xlu0 %v229, 9
      %v632 = vpop.permute.xlu0 %631
      %633 = vrot.lane.b32.xlu0 %v230, 9
      %v634 = vpop.permute.xlu0 %633
      %635 = vrot.lane.b32.xlu0 %v231, 9
      %v636 = vpop.permute.xlu0 %635
      %vm637 = vcmp.lt.s32.totalorder %v241, 9
      %v638 = vsel %vm637, %v634, %v636
      %v639 = vsel %vm637, %v632, %v634
      %v640 = vsel %vm637, %v630, %v632
      %v641 = vsel %vm637, %v636, %v630
      %s642 = scalar_lea.vmem %s3, 33
      %v643 = vld [vmem:[%s642] ss:$8 sm:$0xf]
      %v645 = vlaneseq
      %v646 = vshrl.u32 %v645, 7
      %v647 = vsub.s32 0, %v646
      %v648 = vrot.slane %v643, %v647
      %v649 = vlaneseq
      %v650 = vshrl.u32 %v649, 7
      %v651 = vsub.s32 1, %v650
      %v652 = vrot.slane %v643, %v651
      %v653 = vlaneseq
      %v654 = vshrl.u32 %v653, 7
      %v655 = vsub.s32 2, %v654
      %v656 = vrot.slane %v643, %v655
      %v657 = vlaneseq
      %v658 = vshrl.u32 %v657, 7
      %v659 = vsub.s32 3, %v658
      %v660 = vrot.slane %v643, %v659
      %v665 = vmul.f32 %v641, %v648
      %v666 = vmul.f32 %v640, %v652
      %v667 = vmul.f32 %v639, %v656
      %v668 = vmul.f32 %v638, %v660
      %669 = vst [vmem:[#allocation2 + $0x120] sm:$0xff] %v665
      %670 = vst [vmem:[#allocation2 + $0x128] sm:$0xff] %v666
      %671 = vst [vmem:[#allocation2 + $0x130] sm:$0xff] %v667
      %672 = vst [vmem:[#allocation2 + $0x138] sm:$0xff] %v668
      %673 = vrot.lane.b32.xlu0 %v228, 8
      %v674 = vpop.permute.xlu0 %673
      %675 = vrot.lane.b32.xlu0 %v229, 8
      %v676 = vpop.permute.xlu0 %675
      %677 = vrot.lane.b32.xlu0 %v230, 8
      %v678 = vpop.permute.xlu0 %677
      %679 = vrot.lane.b32.xlu0 %v231, 8
      %v680 = vpop.permute.xlu0 %679
      %vm681 = vcmp.lt.s32.totalorder %v241, 8
      %v682 = vsel %vm681, %v678, %v680
      %v683 = vsel %vm681, %v676, %v678
      %v684 = vsel %vm681, %v674, %v676
      %v685 = vsel %vm681, %v680, %v674
      %s686 = scalar_lea.vmem %s3, 34
      %v687 = vld [vmem:[%s686] ss:$8 sm:$0xf]
      %v689 = vlaneseq
      %v690 = vshrl.u32 %v689, 7
      %v691 = vsub.s32 0, %v690
      %v692 = vrot.slane %v687, %v691
      %v693 = vlaneseq
      %v694 = vshrl.u32 %v693, 7
      %v695 = vsub.s32 1, %v694
      %v696 = vrot.slane %v687, %v695
      %v697 = vlaneseq
      %v698 = vshrl.u32 %v697, 7
      %v699 = vsub.s32 2, %v698
      %v700 = vrot.slane %v687, %v699
      %v701 = vlaneseq
      %v702 = vshrl.u32 %v701, 7
      %v703 = vsub.s32 3, %v702
      %v704 = vrot.slane %v687, %v703
      %v709 = vmul.f32 %v685, %v692
      %v710 = vmul.f32 %v684, %v696
      %v711 = vmul.f32 %v683, %v700
      %v712 = vmul.f32 %v682, %v704
      %713 = vst [vmem:[#allocation2 + $0x140] sm:$0xff] %v709
      %714 = vst [vmem:[#allocation2 + $0x148] sm:$0xff] %v710
      %715 = vst [vmem:[#allocation2 + $0x150] sm:$0xff] %v711
      %716 = vst [vmem:[#allocation2 + $0x158] sm:$0xff] %v712
      %717 = vrot.lane.b32.xlu0 %v228, 7
      %v718 = vpop.permute.xlu0 %717
      %719 = vrot.lane.b32.xlu0 %v229, 7
      %v720 = vpop.permute.xlu0 %719
      %721 = vrot.lane.b32.xlu0 %v230, 7
      %v722 = vpop.permute.xlu0 %721
      %723 = vrot.lane.b32.xlu0 %v231, 7
      %v724 = vpop.permute.xlu0 %723
      %vm725 = vcmp.lt.s32.totalorder %v241, 7
      %v726 = vsel %vm725, %v722, %v724
      %v727 = vsel %vm725, %v720, %v722
      %v728 = vsel %vm725, %v718, %v720
      %v729 = vsel %vm725, %v724, %v718
      %s730 = scalar_lea.vmem %s3, 35
      %v731 = vld [vmem:[%s730] ss:$8 sm:$0xf]
      %v733 = vlaneseq
      %v734 = vshrl.u32 %v733, 7
      %v735 = vsub.s32 0, %v734
      %v736 = vrot.slane %v731, %v735
      %v737 = vlaneseq
      %v738 = vshrl.u32 %v737, 7
      %v739 = vsub.s32 1, %v738
      %v740 = vrot.slane %v731, %v739
      %v741 = vlaneseq
      %v742 = vshrl.u32 %v741, 7
      %v743 = vsub.s32 2, %v742
      %v744 = vrot.slane %v731, %v743
      %v745 = vlaneseq
      %v746 = vshrl.u32 %v745, 7
      %v747 = vsub.s32 3, %v746
      %v748 = vrot.slane %v731, %v747
      %v753 = vmul.f32 %v729, %v736
      %v754 = vmul.f32 %v728, %v740
      %v755 = vmul.f32 %v727, %v744
      %v756 = vmul.f32 %v726, %v748
      %757 = vst [vmem:[#allocation2 + $0x160] sm:$0xff] %v753
      %758 = vst [vmem:[#allocation2 + $0x168] sm:$0xff] %v754
      %759 = vst [vmem:[#allocation2 + $0x170] sm:$0xff] %v755
      %760 = vst [vmem:[#allocation2 + $0x178] sm:$0xff] %v756
      %761 = vrot.lane.b32.xlu0 %v228, 1
      %v762 = vpop.permute.xlu0 %761
      %763 = vrot.lane.b32.xlu0 %v229, 1
      %v764 = vpop.permute.xlu0 %763
      %765 = vrot.lane.b32.xlu0 %v230, 1
      %v766 = vpop.permute.xlu0 %765
      %767 = vrot.lane.b32.xlu0 %v231, 1
      %v768 = vpop.permute.xlu0 %767
      %vm769 = vcmp.lt.s32.totalorder %v241, 1
      %v770 = vsel %vm769, %v766, %v768
      %v771 = vsel %vm769, %v764, %v766
      %v772 = vsel %vm769, %v762, %v764
      %v773 = vsel %vm769, %v768, %v762
      %s774 = scalar_lea.vmem %s3, 36
      %v775 = vld [vmem:[%s774] ss:$8 sm:$0xf]
      %v777 = vlaneseq
      %v778 = vshrl.u32 %v777, 7
      %v779 = vsub.s32 0, %v778
      %v780 = vrot.slane %v775, %v779
      %v781 = vlaneseq
      %v782 = vshrl.u32 %v781, 7
      %v783 = vsub.s32 1, %v782
      %v784 = vrot.slane %v775, %v783
      %v785 = vlaneseq
      %v786 = vshrl.u32 %v785, 7
      %v787 = vsub.s32 2, %v786
      %v788 = vrot.slane %v775, %v787
      %v789 = vlaneseq
      %v790 = vshrl.u32 %v789, 7
      %v791 = vsub.s32 3, %v790
      %v792 = vrot.slane %v775, %v791
      %v797 = vmul.f32 %v773, %v780
      %v798 = vmul.f32 %v772, %v784
      %v799 = vmul.f32 %v771, %v788
      %v800 = vmul.f32 %v770, %v792
      %801 = vst [vmem:[#allocation2 + $0x180] sm:$0xff] %v797
      %802 = vst [vmem:[#allocation2 + $0x188] sm:$0xff] %v798
      %803 = vst [vmem:[#allocation2 + $0x190] sm:$0xff] %v799
      %804 = vst [vmem:[#allocation2 + $0x198] sm:$0xff] %v800
      %805 = vst [vmem:[#allocation2 + $0x1a0] sm:$0xff] %v228
      %806 = vst [vmem:[#allocation2 + $0x1a8] sm:$0xff] %v229
      %807 = vst [vmem:[#allocation2 + $0x1b0] sm:$0xff] %v230
      %808 = vst [vmem:[#allocation2 + $0x1b8] sm:$0xff] %v231
      %809 = vrot.lane.b32.xlu0 %v228, 127
      %v810 = vpop.permute.xlu0 %809
      %811 = vrot.lane.b32.xlu0 %v229, 127
      %v812 = vpop.permute.xlu0 %811
      %813 = vrot.lane.b32.xlu0 %v230, 127
      %v814 = vpop.permute.xlu0 %813
      %815 = vrot.lane.b32.xlu0 %v231, 127
      %v816 = vpop.permute.xlu0 %815
      %vm817 = vcmp.lt.s32.totalorder %v241, 127
      %v818 = vsel %vm817, %v814, %v816
      %v819 = vsel %vm817, %v812, %v814
      %v820 = vsel %vm817, %v810, %v812
      %v821 = vsel %vm817, %v816, %v810
      %s822 = scalar_lea.vmem %s3, 37
      %v823 = vld [vmem:[%s822] ss:$8 sm:$0xf]
      %v825 = vlaneseq
      %v826 = vshrl.u32 %v825, 7
      %v827 = vsub.s32 0, %v826
      %v828 = vrot.slane %v823, %v827
      %v829 = vlaneseq
      %v830 = vshrl.u32 %v829, 7
      %v831 = vsub.s32 1, %v830
      %v832 = vrot.slane %v823, %v831
      %v833 = vlaneseq
      %v834 = vshrl.u32 %v833, 7
      %v835 = vsub.s32 2, %v834
      %v836 = vrot.slane %v823, %v835
      %v837 = vlaneseq
      %v838 = vshrl.u32 %v837, 7
      %v839 = vsub.s32 3, %v838
      %v840 = vrot.slane %v823, %v839
      %v845 = vmul.f32 %v820, %v828
      %v846 = vmul.f32 %v819, %v832
      %v847 = vmul.f32 %v818, %v836
      %v848 = vmul.f32 %v821, %v840
      %849 = vst [vmem:[#allocation2 + $0x1c0] sm:$0xff] %v845
      %850 = vst [vmem:[#allocation2 + $0x1c8] sm:$0xff] %v846
      %851 = vst [vmem:[#allocation2 + $0x1d0] sm:$0xff] %v847
      %852 = vst [vmem:[#allocation2 + $0x1d8] sm:$0xff] %v848
      %853 = vrot.lane.b32.xlu0 %v228, 121
      %v854 = vpop.permute.xlu0 %853
      %855 = vrot.lane.b32.xlu0 %v229, 121
      %v856 = vpop.permute.xlu0 %855
      %857 = vrot.lane.b32.xlu0 %v230, 121
      %v858 = vpop.permute.xlu0 %857
      %859 = vrot.lane.b32.xlu0 %v231, 121
      %v860 = vpop.permute.xlu0 %859
      %vm861 = vcmp.lt.s32.totalorder %v241, 121
      %v862 = vsel %vm861, %v858, %v860
      %v863 = vsel %vm861, %v856, %v858
      %v864 = vsel %vm861, %v854, %v856
      %v865 = vsel %vm861, %v860, %v854
      %s866 = scalar_lea.vmem %s3, 38
      %v867 = vld [vmem:[%s866] ss:$8 sm:$0xf]
      %v869 = vlaneseq
      %v870 = vshrl.u32 %v869, 7
      %v871 = vsub.s32 0, %v870
      %v872 = vrot.slane %v867, %v871
      %v873 = vlaneseq
      %v874 = vshrl.u32 %v873, 7
      %v875 = vsub.s32 1, %v874
      %v876 = vrot.slane %v867, %v875
      %v877 = vlaneseq
      %v878 = vshrl.u32 %v877, 7
      %v879 = vsub.s32 2, %v878
      %v880 = vrot.slane %v867, %v879
      %v881 = vlaneseq
      %v882 = vshrl.u32 %v881, 7
      %v883 = vsub.s32 3, %v882
      %v884 = vrot.slane %v867, %v883
      %v889 = vmul.f32 %v864, %v872
      %v890 = vmul.f32 %v863, %v876
      %v891 = vmul.f32 %v862, %v880
      %v892 = vmul.f32 %v865, %v884
      %893 = vst [vmem:[#allocation2 + $0x1e0] sm:$0xff] %v889
      %894 = vst [vmem:[#allocation2 + $0x1e8] sm:$0xff] %v890
      %895 = vst [vmem:[#allocation2 + $0x1f0] sm:$0xff] %v891
      %896 = vst [vmem:[#allocation2 + $0x1f8] sm:$0xff] %v892
      %897 = vrot.lane.b32.xlu0 %v228, 120
      %v898 = vpop.permute.xlu0 %897
      %899 = vrot.lane.b32.xlu0 %v229, 120
      %v900 = vpop.permute.xlu0 %899
      %901 = vrot.lane.b32.xlu0 %v230, 120
      %v902 = vpop.permute.xlu0 %901
      %903 = vrot.lane.b32.xlu0 %v231, 120
      %v904 = vpop.permute.xlu0 %903
      %vm905 = vcmp.lt.s32.totalorder %v241, 120
      %v906 = vsel %vm905, %v902, %v904
      %v907 = vsel %vm905, %v900, %v902
      %v908 = vsel %vm905, %v898, %v900
      %v909 = vsel %vm905, %v904, %v898
      %s910 = scalar_lea.vmem %s3, 39
      %v911 = vld [vmem:[%s910] ss:$8 sm:$0xf]
      %v913 = vlaneseq
      %v914 = vshrl.u32 %v913, 7
      %v915 = vsub.s32 0, %v914
      %v916 = vrot.slane %v911, %v915
      %v917 = vlaneseq
      %v918 = vshrl.u32 %v917, 7
      %v919 = vsub.s32 1, %v918
      %v920 = vrot.slane %v911, %v919
      %v921 = vlaneseq
      %v922 = vshrl.u32 %v921, 7
      %v923 = vsub.s32 2, %v922
      %v924 = vrot.slane %v911, %v923
      %v925 = vlaneseq
      %v926 = vshrl.u32 %v925, 7
      %v927 = vsub.s32 3, %v926
      %v928 = vrot.slane %v911, %v927
      %v933 = vmul.f32 %v908, %v916
      %v934 = vmul.f32 %v907, %v920
      %v935 = vmul.f32 %v906, %v924
      %v936 = vmul.f32 %v909, %v928
      %937 = vst [vmem:[#allocation2 + $0x200] sm:$0xff] %v933
      %938 = vst [vmem:[#allocation2 + $0x208] sm:$0xff] %v934
      %939 = vst [vmem:[#allocation2 + $0x210] sm:$0xff] %v935
      %940 = vst [vmem:[#allocation2 + $0x218] sm:$0xff] %v936
      %941 = vrot.lane.b32.xlu0 %v228, 119
      %v942 = vpop.permute.xlu0 %941
      %943 = vrot.lane.b32.xlu0 %v229, 119
      %v944 = vpop.permute.xlu0 %943
      %945 = vrot.lane.b32.xlu0 %v230, 119
      %v946 = vpop.permute.xlu0 %945
      %947 = vrot.lane.b32.xlu0 %v231, 119
      %v948 = vpop.permute.xlu0 %947
      %vm949 = vcmp.lt.s32.totalorder %v241, 119
      %v950 = vsel %vm949, %v946, %v948
      %v951 = vsel %vm949, %v944, %v946
      %v952 = vsel %vm949, %v942, %v944
      %v953 = vsel %vm949, %v948, %v942
      %s954 = scalar_lea.vmem %s3, 64
      %v955 = vld [vmem:[%s954] ss:$8 sm:$0xf]
      %v957 = vlaneseq
      %v958 = vshrl.u32 %v957, 7
      %v959 = vsub.s32 0, %v958
      %v960 = vrot.slane %v955, %v959
      %v961 = vlaneseq
      %v962 = vshrl.u32 %v961, 7
      %v963 = vsub.s32 1, %v962
      %v964 = vrot.slane %v955, %v963
      %v965 = vlaneseq
      %v966 = vshrl.u32 %v965, 7
      %v967 = vsub.s32 2, %v966
      %v968 = vrot.slane %v955, %v967
      %v969 = vlaneseq
      %v970 = vshrl.u32 %v969, 7
      %v971 = vsub.s32 3, %v970
      %v972 = vrot.slane %v955, %v971
      %v977 = vmul.f32 %v952, %v960
      %v978 = vmul.f32 %v951, %v964
      %v979 = vmul.f32 %v950, %v968
      %v980 = vmul.f32 %v953, %v972
      %981 = vst [vmem:[#allocation2 + $0x220] sm:$0xff] %v977
      %982 = vst [vmem:[#allocation2 + $0x228] sm:$0xff] %v978
      %983 = vst [vmem:[#allocation2 + $0x230] sm:$0xff] %v979
      %984 = vst [vmem:[#allocation2 + $0x238] sm:$0xff] %v980
      %s985 = scalar_lea.vmem %s3, 65
      %v986 = vld [vmem:[%s985] ss:$8 sm:$0xf]
      %v988 = vlaneseq
      %v989 = vshrl.u32 %v988, 7
      %v990 = vsub.s32 0, %v989
      %v991 = vrot.slane %v986, %v990
      %v992 = vlaneseq
      %v993 = vshrl.u32 %v992, 7
      %v994 = vsub.s32 1, %v993
      %v995 = vrot.slane %v986, %v994
      %v996 = vlaneseq
      %v997 = vshrl.u32 %v996, 7
      %v998 = vsub.s32 2, %v997
      %v999 = vrot.slane %v986, %v998
      %v1000 = vlaneseq
      %v1001 = vshrl.u32 %v1000, 7
      %v1002 = vsub.s32 3, %v1001
      %v1003 = vrot.slane %v986, %v1002
      %v1008 = vmul.f32 %v245, %v991
      %v1009 = vmul.f32 %v244, %v995
      %v1010 = vmul.f32 %v243, %v999
      %v1011 = vmul.f32 %v246, %v1003
      %1012 = vst [vmem:[#allocation2 + $0x240] sm:$0xff] %v1008
      %1013 = vst [vmem:[#allocation2 + $0x248] sm:$0xff] %v1009
      %1014 = vst [vmem:[#allocation2 + $0x250] sm:$0xff] %v1010
      %1015 = vst [vmem:[#allocation2 + $0x258] sm:$0xff] %v1011
      %s1016 = scalar_lea.vmem %s3, 66
      %v1017 = vld [vmem:[%s1016] ss:$8 sm:$0xf]
      %v1019 = vlaneseq
      %v1020 = vshrl.u32 %v1019, 7
      %v1021 = vsub.s32 0, %v1020
      %v1022 = vrot.slane %v1017, %v1021
      %v1023 = vlaneseq
      %v1024 = vshrl.u32 %v1023, 7
      %v1025 = vsub.s32 1, %v1024
      %v1026 = vrot.slane %v1017, %v1025
      %v1027 = vlaneseq
      %v1028 = vshrl.u32 %v1027, 7
      %v1029 = vsub.s32 2, %v1028
      %v1030 = vrot.slane %v1017, %v1029
      %v1031 = vlaneseq
      %v1032 = vshrl.u32 %v1031, 7
      %v1033 = vsub.s32 3, %v1032
      %v1034 = vrot.slane %v1017, %v1033
      %v1039 = vmul.f32 %v288, %v1022
      %v1040 = vmul.f32 %v287, %v1026
      %v1041 = vmul.f32 %v286, %v1030
      %v1042 = vmul.f32 %v289, %v1034
      %1043 = vst [vmem:[#allocation2 + $0x260] sm:$0xff] %v1039
      %1044 = vst [vmem:[#allocation2 + $0x268] sm:$0xff] %v1040
      %1045 = vst [vmem:[#allocation2 + $0x270] sm:$0xff] %v1041
      %1046 = vst [vmem:[#allocation2 + $0x278] sm:$0xff] %v1042
      %s1047 = scalar_lea.vmem %s3, 67
      %v1048 = vld [vmem:[%s1047] ss:$8 sm:$0xf]
      %v1050 = vlaneseq
      %v1051 = vshrl.u32 %v1050, 7
      %v1052 = vsub.s32 0, %v1051
      %v1053 = vrot.slane %v1048, %v1052
      %v1054 = vlaneseq
      %v1055 = vshrl.u32 %v1054, 7
      %v1056 = vsub.s32 1, %v1055
      %v1057 = vrot.slane %v1048, %v1056
      %v1058 = vlaneseq
      %v1059 = vshrl.u32 %v1058, 7
      %v1060 = vsub.s32 2, %v1059
      %v1061 = vrot.slane %v1048, %v1060
      %v1062 = vlaneseq
      %v1063 = vshrl.u32 %v1062, 7
      %v1064 = vsub.s32 3, %v1063
      %v1065 = vrot.slane %v1048, %v1064
      %v1070 = vmul.f32 %v332, %v1053
      %v1071 = vmul.f32 %v331, %v1057
      %v1072 = vmul.f32 %v330, %v1061
      %v1073 = vmul.f32 %v333, %v1065
      %1074 = vst [vmem:[#allocation2 + $0x280] sm:$0xff] %v1070
      %1075 = vst [vmem:[#allocation2 + $0x288] sm:$0xff] %v1071
      %1076 = vst [vmem:[#allocation2 + $0x290] sm:$0xff] %v1072
      %1077 = vst [vmem:[#allocation2 + $0x298] sm:$0xff] %v1073
      %s1078 = scalar_lea.vmem %s3, 68
      %v1079 = vld [vmem:[%s1078] ss:$8 sm:$0xf]
      %v1081 = vlaneseq
      %v1082 = vshrl.u32 %v1081, 7
      %v1083 = vsub.s32 0, %v1082
      %v1084 = vrot.slane %v1079, %v1083
      %v1085 = vlaneseq
      %v1086 = vshrl.u32 %v1085, 7
      %v1087 = vsub.s32 1, %v1086
      %v1088 = vrot.slane %v1079, %v1087
      %v1089 = vlaneseq
      %v1090 = vshrl.u32 %v1089, 7
      %v1091 = vsub.s32 2, %v1090
      %v1092 = vrot.slane %v1079, %v1091
      %v1093 = vlaneseq
      %v1094 = vshrl.u32 %v1093, 7
      %v1095 = vsub.s32 3, %v1094
      %v1096 = vrot.slane %v1079, %v1095
      %v1101 = vmul.f32 %v376, %v1084
      %v1102 = vmul.f32 %v375, %v1088
      %v1103 = vmul.f32 %v374, %v1092
      %v1104 = vmul.f32 %v377, %v1096
      %1105 = vst [vmem:[#allocation2 + $0x2a0] sm:$0xff] %v1101
      %1106 = vst [vmem:[#allocation2 + $0x2a8] sm:$0xff] %v1102
      %1107 = vst [vmem:[#allocation2 + $0x2b0] sm:$0xff] %v1103
      %1108 = vst [vmem:[#allocation2 + $0x2b8] sm:$0xff] %v1104
      %s1109 = scalar_lea.vmem %s3, 69
      %v1110 = vld [vmem:[%s1109] ss:$8 sm:$0xf]
      %v1112 = vlaneseq
      %v1113 = vshrl.u32 %v1112, 7
      %v1114 = vsub.s32 0, %v1113
      %v1115 = vrot.slane %v1110, %v1114
      %v1116 = vlaneseq
      %v1117 = vshrl.u32 %v1116, 7
      %v1118 = vsub.s32 1, %v1117
      %v1119 = vrot.slane %v1110, %v1118
      %v1120 = vlaneseq
      %v1121 = vshrl.u32 %v1120, 7
      %v1122 = vsub.s32 2, %v1121
      %v1123 = vrot.slane %v1110, %v1122
      %v1124 = vlaneseq
      %v1125 = vshrl.u32 %v1124, 7
      %v1126 = vsub.s32 3, %v1125
      %v1127 = vrot.slane %v1110, %v1126
      %v1132 = vmul.f32 %v420, %v1115
      %v1133 = vmul.f32 %v419, %v1119
      %v1134 = vmul.f32 %v418, %v1123
      %v1135 = vmul.f32 %v421, %v1127
      %1136 = vst [vmem:[#allocation2 + $0x2c0] sm:$0xff] %v1132
      %1137 = vst [vmem:[#allocation2 + $0x2c8] sm:$0xff] %v1133
      %1138 = vst [vmem:[#allocation2 + $0x2d0] sm:$0xff] %v1134
      %1139 = vst [vmem:[#allocation2 + $0x2d8] sm:$0xff] %v1135
      %s1140 = scalar_lea.vmem %s3, 70
      %v1141 = vld [vmem:[%s1140] ss:$8 sm:$0xf]
      %v1143 = vlaneseq
      %v1144 = vshrl.u32 %v1143, 7
      %v1145 = vsub.s32 0, %v1144
      %v1146 = vrot.slane %v1141, %v1145
      %v1147 = vlaneseq
      %v1148 = vshrl.u32 %v1147, 7
      %v1149 = vsub.s32 1, %v1148
      %v1150 = vrot.slane %v1141, %v1149
      %v1151 = vlaneseq
      %v1152 = vshrl.u32 %v1151, 7
      %v1153 = vsub.s32 2, %v1152
      %v1154 = vrot.slane %v1141, %v1153
      %v1155 = vlaneseq
      %v1156 = vshrl.u32 %v1155, 7
      %v1157 = vsub.s32 3, %v1156
      %v1158 = vrot.slane %v1141, %v1157
      %v1163 = vmul.f32 %v464, %v1146
      %v1164 = vmul.f32 %v463, %v1150
      %v1165 = vmul.f32 %v462, %v1154
      %v1166 = vmul.f32 %v465, %v1158
      %1167 = vst [vmem:[#allocation2 + $0x2e0] sm:$0xff] %v1163
      %1168 = vst [vmem:[#allocation2 + $0x2e8] sm:$0xff] %v1164
      %1169 = vst [vmem:[#allocation2 + $0x2f0] sm:$0xff] %v1165
      %1170 = vst [vmem:[#allocation2 + $0x2f8] sm:$0xff] %v1166
      %s1171 = scalar_lea.vmem %s3, 71
      %v1172 = vld [vmem:[%s1171] ss:$8 sm:$0xf]
      %v1174 = vlaneseq
      %v1175 = vshrl.u32 %v1174, 7
      %v1176 = vsub.s32 0, %v1175
      %v1177 = vrot.slane %v1172, %v1176
      %v1178 = vlaneseq
      %v1179 = vshrl.u32 %v1178, 7
      %v1180 = vsub.s32 1, %v1179
      %v1181 = vrot.slane %v1172, %v1180
      %v1182 = vlaneseq
      %v1183 = vshrl.u32 %v1182, 7
      %v1184 = vsub.s32 2, %v1183
      %v1185 = vrot.slane %v1172, %v1184
      %v1186 = vlaneseq
      %v1187 = vshrl.u32 %v1186, 7
      %v1188 = vsub.s32 3, %v1187
      %v1189 = vrot.slane %v1172, %v1188
      %v1194 = vmul.f32 %v508, %v1177
      %v1195 = vmul.f32 %v507, %v1181
      %v1196 = vmul.f32 %v506, %v1185
      %v1197 = vmul.f32 %v509, %v1189
      %1198 = vst [vmem:[#allocation2 + $0x300] sm:$0xff] %v1194
      %1199 = vst [vmem:[#allocation2 + $0x308] sm:$0xff] %v1195
      %1200 = vst [vmem:[#allocation2 + $0x310] sm:$0xff] %v1196
      %1201 = vst [vmem:[#allocation2 + $0x318] sm:$0xff] %v1197
      %s1202 = scalar_lea.vmem %s3, 96
      %v1203 = vld [vmem:[%s1202] ss:$8 sm:$0xf]
      %v1205 = vlaneseq
      %v1206 = vshrl.u32 %v1205, 7
      %v1207 = vsub.s32 0, %v1206
      %v1208 = vrot.slane %v1203, %v1207
      %v1209 = vlaneseq
      %v1210 = vshrl.u32 %v1209, 7
      %v1211 = vsub.s32 1, %v1210
      %v1212 = vrot.slane %v1203, %v1211
      %v1213 = vlaneseq
      %v1214 = vshrl.u32 %v1213, 7
      %v1215 = vsub.s32 2, %v1214
      %v1216 = vrot.slane %v1203, %v1215
      %v1217 = vlaneseq
      %v1218 = vshrl.u32 %v1217, 7
      %v1219 = vsub.s32 3, %v1218
      %v1220 = vrot.slane %v1203, %v1219
      %v1225 = vmul.f32 %v552, %v1208
      %v1226 = vmul.f32 %v551, %v1212
      %v1227 = vmul.f32 %v550, %v1216
      %v1228 = vmul.f32 %v553, %v1220
      %1229 = vst [vmem:[#allocation2 + $0x320] sm:$0xff] %v1225
      %1230 = vst [vmem:[#allocation2 + $0x328] sm:$0xff] %v1226
      %1231 = vst [vmem:[#allocation2 + $0x330] sm:$0xff] %v1227
      %1232 = vst [vmem:[#allocation2 + $0x338] sm:$0xff] %v1228
      %s1233 = scalar_lea.vmem %s3, 97
      %v1234 = vld [vmem:[%s1233] ss:$8 sm:$0xf]
      %v1236 = vlaneseq
      %v1237 = vshrl.u32 %v1236, 7
      %v1238 = vsub.s32 0, %v1237
      %v1239 = vrot.slane %v1234, %v1238
      %v1240 = vlaneseq
      %v1241 = vshrl.u32 %v1240, 7
      %v1242 = vsub.s32 1, %v1241
      %v1243 = vrot.slane %v1234, %v1242
      %v1244 = vlaneseq
      %v1245 = vshrl.u32 %v1244, 7
      %v1246 = vsub.s32 2, %v1245
      %v1247 = vrot.slane %v1234, %v1246
      %v1248 = vlaneseq
      %v1249 = vshrl.u32 %v1248, 7
      %v1250 = vsub.s32 3, %v1249
      %v1251 = vrot.slane %v1234, %v1250
      %v1256 = vmul.f32 %v596, %v1239
      %v1257 = vmul.f32 %v595, %v1243
      %v1258 = vmul.f32 %v594, %v1247
      %v1259 = vmul.f32 %v597, %v1251
      %1260 = vst [vmem:[#allocation2 + $0x340] sm:$0xff] %v1256
      %1261 = vst [vmem:[#allocation2 + $0x348] sm:$0xff] %v1257
      %1262 = vst [vmem:[#allocation2 + $0x350] sm:$0xff] %v1258
      %1263 = vst [vmem:[#allocation2 + $0x358] sm:$0xff] %v1259
      %v1264 = vld [vmem:[%s1] sm:$0xff]
      %v1265 = vld [vmem:[%s1 + $0x8] sm:$0xff]
      %v1266 = vld [vmem:[#allocation2] sm:$0xff]
      %v1267 = vld [vmem:[#allocation2 + $0x8] sm:$0xff]
      %v1268 = vld [vmem:[#allocation2 + $0x10] sm:$0xff]
      %v1269 = vld [vmem:[#allocation2 + $0x18] sm:$0xff]
      %v1270 = vld [vmem:[#allocation2 + $0x20] sm:$0xff]
      %v1271 = vld [vmem:[#allocation2 + $0x28] sm:$0xff]
      %v1272 = vld [vmem:[#allocation2 + $0x30] sm:$0xff]
      %v1273 = vld [vmem:[#allocation2 + $0x38] sm:$0xff]
      %v1274 = vld [vmem:[#allocation2 + $0x40] sm:$0xff]
      %v1275 = vld [vmem:[#allocation2 + $0x48] sm:$0xff]
      %v1276 = vld [vmem:[#allocation2 + $0x50] sm:$0xff]
      %v1277 = vld [vmem:[#allocation2 + $0x58] sm:$0xff]
      %v1278 = vld [vmem:[#allocation2 + $0x60] sm:$0xff]
      %v1279 = vld [vmem:[#allocation2 + $0x68] sm:$0xff]
      %v1280 = vld [vmem:[#allocation2 + $0x70] sm:$0xff]
      %v1281 = vld [vmem:[#allocation2 + $0x78] sm:$0xff]
      %v1282 = vld [vmem:[#allocation2 + $0x80] sm:$0xff]
      %v1283 = vld [vmem:[#allocation2 + $0x88] sm:$0xff]
      %v1284 = vld [vmem:[#allocation2 + $0x90] sm:$0xff]
      %v1285 = vld [vmem:[#allocation2 + $0x98] sm:$0xff]
      %v1286 = vld [vmem:[#allocation2 + $0xa0] sm:$0xff]
      %v1287 = vld [vmem:[#allocation2 + $0xa8] sm:$0xff]
      %v1288 = vld [vmem:[#allocation2 + $0xb0] sm:$0xff]
      %v1289 = vld [vmem:[#allocation2 + $0xb8] sm:$0xff]
      %v1290 = vld [vmem:[#allocation2 + $0xc0] sm:$0xff]
      %v1291 = vld [vmem:[#allocation2 + $0xc8] sm:$0xff]
      %v1292 = vld [vmem:[#allocation2 + $0xd0] sm:$0xff]
      %v1293 = vld [vmem:[#allocation2 + $0xd8] sm:$0xff]
      %v1294 = vld [vmem:[#allocation2 + $0xe0] sm:$0xff]
      %v1295 = vld [vmem:[#allocation2 + $0xe8] sm:$0xff]
      %v1296 = vld [vmem:[#allocation2 + $0xf0] sm:$0xff]
      %v1297 = vld [vmem:[#allocation2 + $0xf8] sm:$0xff]
      %v1298 = vld [vmem:[#allocation2 + $0x100] sm:$0xff]
      %v1299 = vld [vmem:[#allocation2 + $0x108] sm:$0xff]
      %v1300 = vld [vmem:[#allocation2 + $0x110] sm:$0xff]
      %v1301 = vld [vmem:[#allocation2 + $0x118] sm:$0xff]
      %v1302 = vld [vmem:[#allocation2 + $0x120] sm:$0xff]
      %v1303 = vld [vmem:[#allocation2 + $0x128] sm:$0xff]
      %v1304 = vld [vmem:[#allocation2 + $0x130] sm:$0xff]
      %v1305 = vld [vmem:[#allocation2 + $0x138] sm:$0xff]
      %v1306 = vld [vmem:[#allocation2 + $0x140] sm:$0xff]
      %v1307 = vld [vmem:[#allocation2 + $0x148] sm:$0xff]
      %v1308 = vld [vmem:[#allocation2 + $0x150] sm:$0xff]
      %v1309 = vld [vmem:[#allocation2 + $0x158] sm:$0xff]
      %v1310 = vld [vmem:[#allocation2 + $0x160] sm:$0xff]
      %v1311 = vld [vmem:[#allocation2 + $0x168] sm:$0xff]
      %v1312 = vld [vmem:[#allocation2 + $0x170] sm:$0xff]
      %v1313 = vld [vmem:[#allocation2 + $0x178] sm:$0xff]
      %v1314 = vld [vmem:[#allocation2 + $0x180] sm:$0xff]
      %v1315 = vld [vmem:[#allocation2 + $0x188] sm:$0xff]
      %v1316 = vld [vmem:[#allocation2 + $0x190] sm:$0xff]
      %v1317 = vld [vmem:[#allocation2 + $0x198] sm:$0xff]
      %v1318 = vld [vmem:[#allocation2 + $0x1a0] sm:$0xff]
      %v1319 = vld [vmem:[#allocation2 + $0x1a8] sm:$0xff]
      %v1320 = vld [vmem:[#allocation2 + $0x1b0] sm:$0xff]
      %v1321 = vld [vmem:[#allocation2 + $0x1b8] sm:$0xff]
      %v1322 = vld [vmem:[#allocation2 + $0x1c0] sm:$0xff]
      %v1323 = vld [vmem:[#allocation2 + $0x1c8] sm:$0xff]
      %v1324 = vld [vmem:[#allocation2 + $0x1d0] sm:$0xff]
      %v1325 = vld [vmem:[#allocation2 + $0x1d8] sm:$0xff]
      %v1326 = vld [vmem:[#allocation2 + $0x1e0] sm:$0xff]
      %v1327 = vld [vmem:[#allocation2 + $0x1e8] sm:$0xff]
      %v1328 = vld [vmem:[#allocation2 + $0x1f0] sm:$0xff]
      %v1329 = vld [vmem:[#allocation2 + $0x1f8] sm:$0xff]
      %v1330 = vld [vmem:[#allocation2 + $0x200] sm:$0xff]
      %v1331 = vld [vmem:[#allocation2 + $0x208] sm:$0xff]
      %v1332 = vld [vmem:[#allocation2 + $0x210] sm:$0xff]
      %v1333 = vld [vmem:[#allocation2 + $0x218] sm:$0xff]
      %v1334 = vld [vmem:[#allocation2 + $0x220] sm:$0xff]
      %v1335 = vld [vmem:[#allocation2 + $0x228] sm:$0xff]
      %v1336 = vld [vmem:[#allocation2 + $0x230] sm:$0xff]
      %v1337 = vld [vmem:[#allocation2 + $0x238] sm:$0xff]
      %v1338 = vld [vmem:[#allocation2 + $0x240] sm:$0xff]
      %v1339 = vld [vmem:[#allocation2 + $0x248] sm:$0xff]
      %v1340 = vld [vmem:[#allocation2 + $0x250] sm:$0xff]
      %v1341 = vld [vmem:[#allocation2 + $0x258] sm:$0xff]
      %v1342 = vld [vmem:[#allocation2 + $0x260] sm:$0xff]
      %v1343 = vld [vmem:[#allocation2 + $0x268] sm:$0xff]
      %v1344 = vld [vmem:[#allocation2 + $0x270] sm:$0xff]
      %v1345 = vld [vmem:[#allocation2 + $0x278] sm:$0xff]
      %v1346 = vld [vmem:[#allocation2 + $0x280] sm:$0xff]
      %v1347 = vld [vmem:[#allocation2 + $0x288] sm:$0xff]
      %v1348 = vld [vmem:[#allocation2 + $0x290] sm:$0xff]
      %v1349 = vld [vmem:[#allocation2 + $0x298] sm:$0xff]
      %v1350 = vld [vmem:[#allocation2 + $0x2a0] sm:$0xff]
      %v1351 = vld [vmem:[#allocation2 + $0x2a8] sm:$0xff]
      %v1352 = vld [vmem:[#allocation2 + $0x2b0] sm:$0xff]
      %v1353 = vld [vmem:[#allocation2 + $0x2b8] sm:$0xff]
      %v1354 = vld [vmem:[#allocation2 + $0x2c0] sm:$0xff]
      %v1355 = vld [vmem:[#allocation2 + $0x2c8] sm:$0xff]
      %v1356 = vld [vmem:[#allocation2 + $0x2d0] sm:$0xff]
      %v1357 = vld [vmem:[#allocation2 + $0x2d8] sm:$0xff]
      %v1358 = vld [vmem:[#allocation2 + $0x2e0] sm:$0xff]
      %v1359 = vld [vmem:[#allocation2 + $0x2e8] sm:$0xff]
      %v1360 = vld [vmem:[#allocation2 + $0x2f0] sm:$0xff]
      %v1361 = vld [vmem:[#allocation2 + $0x2f8] sm:$0xff]
      %v1362 = vld [vmem:[#allocation2 + $0x300] sm:$0xff]
      %v1363 = vld [vmem:[#allocation2 + $0x308] sm:$0xff]
      %v1364 = vld [vmem:[#allocation2 + $0x310] sm:$0xff]
      %v1365 = vld [vmem:[#allocation2 + $0x318] sm:$0xff]
      %v1366 = vld [vmem:[#allocation2 + $0x320] sm:$0xff]
      %v1367 = vld [vmem:[#allocation2 + $0x328] sm:$0xff]
      %v1368 = vld [vmem:[#allocation2 + $0x330] sm:$0xff]
      %v1369 = vld [vmem:[#allocation2 + $0x338] sm:$0xff]
      %v1370 = vld [vmem:[#allocation2 + $0x340] sm:$0xff]
      %v1371 = vld [vmem:[#allocation2 + $0x348] sm:$0xff]
      %v1372 = vld [vmem:[#allocation2 + $0x350] sm:$0xff]
      %v1373 = vld [vmem:[#allocation2 + $0x358] sm:$0xff]
      %v1374 = vld [vmem:[#allocation2 + $0x360] sm:$0xff]
      %v1375 = vld [vmem:[#allocation2 + $0x368] sm:$0xff]
      %v1376 = vld [vmem:[#allocation2 + $0x370] sm:$0xff]
      %v1377 = vld [vmem:[#allocation2 + $0x378] sm:$0xff]
      %vm1378 = vcmask 785408
      %v1380 = vsel %vm1378, %v1265, 0
      %1382 = vmatprep.subr.mxu0 %v1327
      %1383 = vmatpush1.msra.mxu0 %v1326
      %1384 = vmatprep.subr.mxu0 %v1323
      %1385 = vmatpush1.msra.mxu0 %v1322
      %1386 = vmatprep.subr.mxu0 %v1319
      %1387 = vmatpush1.msra.mxu0 %v1318
      %1388 = vmatprep.subr.mxu0 %v1315
      %1389 = vmatpush1.msra.mxu0 %v1314
      %1390 = vmatprep.subr.mxu0 %v1311
      %1391 = vmatpush1.msra.mxu0 %v1310
      %1392 = vmatprep.subr.mxu0 %v1307
      %1393 = vmatpush1.msra.mxu0 %v1306
      %1394 = vmatprep.subr.mxu0 %v1303
      %1395 = vmatpush1.msra.mxu0 %v1302
      %1396 = vmatprep.subr.mxu0 %v1299
      %1397 = vmatpush1.msra.mxu0 %v1298
      %1398 = vmatprep.subr.mxu0 %v1295
      %1399 = vmatpush1.msra.mxu0 %v1294
      %1400 = vmatprep.subr.mxu0 %v1291
      %1401 = vmatpush1.msra.mxu0 %v1290
      %1402 = vmatprep.subr.mxu0 %v1287
      %1403 = vmatpush1.msra.mxu0 %v1286
      %1404 = vmatprep.subr.mxu0 %v1283
      %1405 = vmatpush1.msra.mxu0 %v1282
      %1406 = vmatprep.subr.mxu0 %v1279
      %1407 = vmatpush1.msra.mxu0 %v1278
      %1408 = vmatprep.subr.mxu0 %v1275
      %1409 = vmatpush1.msra.mxu0 %v1274
      %1410 = vmatprep.subr.mxu0 %v1271
      %1411 = vmatpush1.msra.mxu0 %v1270
      %1412 = vmatprep.subr.mxu0 %v1267
      %1413 = vmatpush1.msra.mxu0 %v1266
      %1414 = vmatprep.subr.mxu0 0.0
      %1415 = vmatpush2.msra.mxu0 0.0
      %1416 = vmatprep.subr.mxu0 0.0
      %1417 = vmatpush2.msra.mxu0 0.0
      %1418 = vmatprep.subr.mxu0 0.0
      %1419 = vmatpush2.msra.mxu0 0.0
      %1420 = vmatprep.subr.mxu0 0.0
      %1421 = vmatpush2.msra.mxu0 0.0
      %1422 = vmatprep.subr.mxu0 %v1375
      %1423 = vmatpush2.msra.mxu0 %v1374
      %1424 = vmatprep.subr.mxu0 %v1371
      %1425 = vmatpush2.msra.mxu0 %v1370
      %1426 = vmatprep.subr.mxu0 %v1367
      %1427 = vmatpush2.msra.mxu0 %v1366
      %1428 = vmatprep.subr.mxu0 %v1363
      %1429 = vmatpush2.msra.mxu0 %v1362
      %1430 = vmatprep.subr.mxu0 %v1359
      %1431 = vmatpush2.msra.mxu0 %v1358
      %1432 = vmatprep.subr.mxu0 %v1355
      %1433 = vmatpush2.msra.mxu0 %v1354
      %1434 = vmatprep.subr.mxu0 %v1351
      %1435 = vmatpush2.msra.mxu0 %v1350
      %1436 = vmatprep.subr.mxu0 %v1347
      %1437 = vmatpush2.msra.mxu0 %v1346
      %1438 = vmatprep.subr.mxu0 %v1343
      %1439 = vmatpush2.msra.mxu0 %v1342
      %1440 = vmatprep.subr.mxu0 %v1339
      %1441 = vmatpush2.msra.mxu0 %v1338
      %1442 = vmatprep.subr.mxu0 %v1335
      %1443 = vmatpush2.msra.mxu0 %v1334
      %1444 = vmatprep.subr.mxu0 %v1331
      %1445 = vmatpush2.msra.mxu0 %v1330
      %1446 = vmatprep.mubr.f32.mxu0 %v1380
      %1447 = vmatmul.mubr.f32.gmra.mxu0 %v1264
      %v1448 = vpop.f32.mrf.mxu0
      %v1449 = vadd.f32 0.0, %v1448
      %v1450 = vpop.f32.mrf.mxu0
      %v1451 = vadd.f32 0.0, %v1450
      %1452 = vdwg.mxu0
      %1453 = vmatprep.subr.mxu0 %v1329
      %1454 = vmatpush1.msra.mxu0 %v1328
      %1455 = vmatprep.subr.mxu0 %v1325
      %1456 = vmatpush1.msra.mxu0 %v1324
      %1457 = vmatprep.subr.mxu0 %v1321
      %1458 = vmatpush1.msra.mxu0 %v1320
      %1459 = vmatprep.subr.mxu0 %v1317
      %1460 = vmatpush1.msra.mxu0 %v1316
      %1461 = vmatprep.subr.mxu0 %v1313
      %1462 = vmatpush1.msra.mxu0 %v1312
      %1463 = vmatprep.subr.mxu0 %v1309
      %1464 = vmatpush1.msra.mxu0 %v1308
      %1465 = vmatprep.subr.mxu0 %v1305
      %1466 = vmatpush1.msra.mxu0 %v1304
      %1467 = vmatprep.subr.mxu0 %v1301
      %1468 = vmatpush1.msra.mxu0 %v1300
      %1469 = vmatprep.subr.mxu0 %v1297
      %1470 = vmatpush1.msra.mxu0 %v1296
      %1471 = vmatprep.subr.mxu0 %v1293
      %1472 = vmatpush1.msra.mxu0 %v1292
      %1473 = vmatprep.subr.mxu0 %v1289
      %1474 = vmatpush1.msra.mxu0 %v1288
      %1475 = vmatprep.subr.mxu0 %v1285
      %1476 = vmatpush1.msra.mxu0 %v1284
      %1477 = vmatprep.subr.mxu0 %v1281
      %1478 = vmatpush1.msra.mxu0 %v1280
      %1479 = vmatprep.subr.mxu0 %v1277
      %1480 = vmatpush1.msra.mxu0 %v1276
      %1481 = vmatprep.subr.mxu0 %v1273
      %1482 = vmatpush1.msra.mxu0 %v1272
      %1483 = vmatprep.subr.mxu0 %v1269
      %1484 = vmatpush1.msra.mxu0 %v1268
      %1485 = vmatprep.subr.mxu0 0.0
      %1486 = vmatpush2.msra.mxu0 0.0
      %1487 = vmatprep.subr.mxu0 0.0
      %1488 = vmatpush2.msra.mxu0 0.0
      %1489 = vmatprep.subr.mxu0 0.0
      %1490 = vmatpush2.msra.mxu0 0.0
      %1491 = vmatprep.subr.mxu0 0.0
      %1492 = vmatpush2.msra.mxu0 0.0
      %1493 = vmatprep.subr.mxu0 %v1377
      %1494 = vmatpush2.msra.mxu0 %v1376
      %1495 = vmatprep.subr.mxu0 %v1373
      %1496 = vmatpush2.msra.mxu0 %v1372
      %1497 = vmatprep.subr.mxu0 %v1369
      %1498 = vmatpush2.msra.mxu0 %v1368
      %1499 = vmatprep.subr.mxu0 %v1365
      %1500 = vmatpush2.msra.mxu0 %v1364
      %1501 = vmatprep.subr.mxu0 %v1361
      %1502 = vmatpush2.msra.mxu0 %v1360
      %1503 = vmatprep.subr.mxu0 %v1357
      %1504 = vmatpush2.msra.mxu0 %v1356
      %1505 = vmatprep.subr.mxu0 %v1353
      %1506 = vmatpush2.msra.mxu0 %v1352
      %1507 = vmatprep.subr.mxu0 %v1349
      %1508 = vmatpush2.msra.mxu0 %v1348
      %1509 = vmatprep.subr.mxu0 %v1345
      %1510 = vmatpush2.msra.mxu0 %v1344
      %1511 = vmatprep.subr.mxu0 %v1341
      %1512 = vmatpush2.msra.mxu0 %v1340
      %1513 = vmatprep.subr.mxu0 %v1337
      %1514 = vmatpush2.msra.mxu0 %v1336
      %1515 = vmatprep.subr.mxu0 %v1333
      %1516 = vmatpush2.msra.mxu0 %v1332
      %1517 = vmatprep.mubr.f32.mxu0 %v1380
      %1518 = vmatmul.mubr.f32.gmra.mxu0 %v1264
      %v1519 = vpop.f32.mrf.mxu0
      %v1520 = vadd.f32 0.0, %v1519
      %v1521 = vpop.f32.mrf.mxu0
      %v1522 = vadd.f32 0.0, %v1521
      %1523 = vdwg.mxu0
      %v1524 = vmax.f32 %v1449, 0.0
      %v1525 = vmax.f32 %v1451, 0.0
      %v1526 = vmax.f32 %v1520, 0.0
      %v1527 = vmax.f32 %v1522, 0.0
      %s1528 = scalar_lea.vmem %s2, 16
      %v1529 = vld [vmem:[%s1528] sm:$0xff]
      %1531 = vset.pattern.permute.xlu0 0
      %1532 = vperm.xlu0 %1531, %v1529
      %v1533 = vpop.permute.xlu0 %1532
      %v1535 = vmul.f32 %v1524, %v1533
      %v1536 = vmul.f32 %v1525, %v1533
      %v1537 = vmul.f32 %v1526, %v1533
      %v1538 = vmul.f32 %v1527, %v1533
      %s1539 = scalar_lea.vmem %s2, 24
      %v1540 = vld [vmem:[%s1539] sm:$0xff]
      %1542 = vset.pattern.permute.xlu0 0
      %1543 = vperm.xlu0 %1542, %v1540
      %v1544 = vpop.permute.xlu0 %1543
      %v1546 = vadd.f32 %v1535, %v1544
      %v1547 = vadd.f32 %v1536, %v1544
      %v1548 = vadd.f32 %v1537, %v1544
      %v1549 = vadd.f32 %v1538, %v1544
      %1550 = vrot.lane.b32.xlu0 %v1546, 73
      %v1551 = vpop.permute.xlu0 %1550
      %1552 = vrot.lane.b32.xlu0 %v1547, 73
      %v1553 = vpop.permute.xlu0 %1552
      %1554 = vrot.lane.b32.xlu0 %v1548, 73
      %v1555 = vpop.permute.xlu0 %1554
      %1556 = vrot.lane.b32.xlu0 %v1549, 73
      %v1557 = vpop.permute.xlu0 %1556
      %v1558 = vsel %vm242, %v1555, %v1557
      %v1559 = vsel %vm242, %v1553, %v1555
      %v1560 = vsel %vm242, %v1551, %v1553
      %v1561 = vsel %vm242, %v1557, %v1551
      %v1562 = vld [vmem:[%s3] ss:$8 sm:$0xf]
      %v1564 = vlaneseq
      %v1565 = vshrl.u32 %v1564, 7
      %v1566 = vsub.s32 0, %v1565
      %v1567 = vrot.slane %v1562, %v1566
      %v1568 = vlaneseq
      %v1569 = vshrl.u32 %v1568, 7
      %v1570 = vsub.s32 1, %v1569
      %v1571 = vrot.slane %v1562, %v1570
      %v1572 = vlaneseq
      %v1573 = vshrl.u32 %v1572, 7
      %v1574 = vsub.s32 2, %v1573
      %v1575 = vrot.slane %v1562, %v1574
      %v1576 = vlaneseq
      %v1577 = vshrl.u32 %v1576, 7
      %v1578 = vsub.s32 3, %v1577
      %v1579 = vrot.slane %v1562, %v1578
      %v1584 = vmul.f32 %v1561, %v1567
      %v1585 = vmul.f32 %v1560, %v1571
      %v1586 = vmul.f32 %v1559, %v1575
      %v1587 = vmul.f32 %v1558, %v1579
      %1588 = vst [vmem:[#allocation2] sm:$0xff] %v1584
      %1589 = vst [vmem:[#allocation2 + $0x8] sm:$0xff] %v1585
      %1590 = vst [vmem:[#allocation2 + $0x10] sm:$0xff] %v1586
      %1591 = vst [vmem:[#allocation2 + $0x18] sm:$0xff] %v1587
      %1592 = vrot.lane.b32.xlu0 %v1546, 72
      %v1593 = vpop.permute.xlu0 %1592
      %1594 = vrot.lane.b32.xlu0 %v1547, 72
      %v1595 = vpop.permute.xlu0 %1594
      %1596 = vrot.lane.b32.xlu0 %v1548, 72
      %v1597 = vpop.permute.xlu0 %1596
      %1598 = vrot.lane.b32.xlu0 %v1549, 72
      %v1599 = vpop.permute.xlu0 %1598
      %v1600 = vsel %vm285, %v1597, %v1599
      %v1601 = vsel %vm285, %v1595, %v1597
      %v1602 = vsel %vm285, %v1593, %v1595
      %v1603 = vsel %vm285, %v1599, %v1593
      %v1604 = vld [vmem:[%s290] ss:$8 sm:$0xf]
      %v1606 = vlaneseq
      %v1607 = vshrl.u32 %v1606, 7
      %v1608 = vsub.s32 0, %v1607
      %v1609 = vrot.slane %v1604, %v1608
      %v1610 = vlaneseq
      %v1611 = vshrl.u32 %v1610, 7
      %v1612 = vsub.s32 1, %v1611
      %v1613 = vrot.slane %v1604, %v1612
      %v1614 = vlaneseq
      %v1615 = vshrl.u32 %v1614, 7
      %v1616 = vsub.s32 2, %v1615
      %v1617 = vrot.slane %v1604, %v1616
      %v1618 = vlaneseq
      %v1619 = vshrl.u32 %v1618, 7
      %v1620 = vsub.s32 3, %v1619
      %v1621 = vrot.slane %v1604, %v1620
      %v1626 = vmul.f32 %v1603, %v1609
      %v1627 = vmul.f32 %v1602, %v1613
      %v1628 = vmul.f32 %v1601, %v1617
      %v1629 = vmul.f32 %v1600, %v1621
      %1630 = vst [vmem:[#allocation2 + $0x20] sm:$0xff] %v1626
      %1631 = vst [vmem:[#allocation2 + $0x28] sm:$0xff] %v1627
      %1632 = vst [vmem:[#allocation2 + $0x30] sm:$0xff] %v1628
      %1633 = vst [vmem:[#allocation2 + $0x38] sm:$0xff] %v1629
      %1634 = vrot.lane.b32.xlu0 %v1546, 71
      %v1635 = vpop.permute.xlu0 %1634
      %1636 = vrot.lane.b32.xlu0 %v1547, 71
      %v1637 = vpop.permute.xlu0 %1636
      %1638 = vrot.lane.b32.xlu0 %v1548, 71
      %v1639 = vpop.permute.xlu0 %1638
      %1640 = vrot.lane.b32.xlu0 %v1549, 71
      %v1641 = vpop.permute.xlu0 %1640
      %v1642 = vsel %vm329, %v1639, %v1641
      %v1643 = vsel %vm329, %v1637, %v1639
      %v1644 = vsel %vm329, %v1635, %v1637
      %v1645 = vsel %vm329, %v1641, %v1635
      %v1646 = vld [vmem:[%s334] ss:$8 sm:$0xf]
      %v1648 = vlaneseq
      %v1649 = vshrl.u32 %v1648, 7
      %v1650 = vsub.s32 0, %v1649
      %v1651 = vrot.slane %v1646, %v1650
      %v1652 = vlaneseq
      %v1653 = vshrl.u32 %v1652, 7
      %v1654 = vsub.s32 1, %v1653
      %v1655 = vrot.slane %v1646, %v1654
      %v1656 = vlaneseq
      %v1657 = vshrl.u32 %v1656, 7
      %v1658 = vsub.s32 2, %v1657
      %v1659 = vrot.slane %v1646, %v1658
      %v1660 = vlaneseq
      %v1661 = vshrl.u32 %v1660, 7
      %v1662 = vsub.s32 3, %v1661
      %v1663 = vrot.slane %v1646, %v1662
      %v1668 = vmul.f32 %v1645, %v1651
      %v1669 = vmul.f32 %v1644, %v1655
      %v1670 = vmul.f32 %v1643, %v1659
      %v1671 = vmul.f32 %v1642, %v1663
      %1672 = vst [vmem:[#allocation2 + $0x40] sm:$0xff] %v1668
      %1673 = vst [vmem:[#allocation2 + $0x48] sm:$0xff] %v1669
      %1674 = vst [vmem:[#allocation2 + $0x50] sm:$0xff] %v1670
      %1675 = vst [vmem:[#allocation2 + $0x58] sm:$0xff] %v1671
      %1676 = vrot.lane.b32.xlu0 %v1546, 65
      %v1677 = vpop.permute.xlu0 %1676
      %1678 = vrot.lane.b32.xlu0 %v1547, 65
      %v1679 = vpop.permute.xlu0 %1678
      %1680 = vrot.lane.b32.xlu0 %v1548, 65
      %v1681 = vpop.permute.xlu0 %1680
      %1682 = vrot.lane.b32.xlu0 %v1549, 65
      %v1683 = vpop.permute.xlu0 %1682
      %v1684 = vsel %vm373, %v1681, %v1683
      %v1685 = vsel %vm373, %v1679, %v1681
      %v1686 = vsel %vm373, %v1677, %v1679
      %v1687 = vsel %vm373, %v1683, %v1677
      %v1688 = vld [vmem:[%s378] ss:$8 sm:$0xf]
      %v1690 = vlaneseq
      %v1691 = vshrl.u32 %v1690, 7
      %v1692 = vsub.s32 0, %v1691
      %v1693 = vrot.slane %v1688, %v1692
      %v1694 = vlaneseq
      %v1695 = vshrl.u32 %v1694, 7
      %v1696 = vsub.s32 1, %v1695
      %v1697 = vrot.slane %v1688, %v1696
      %v1698 = vlaneseq
      %v1699 = vshrl.u32 %v1698, 7
      %v1700 = vsub.s32 2, %v1699
      %v1701 = vrot.slane %v1688, %v1700
      %v1702 = vlaneseq
      %v1703 = vshrl.u32 %v1702, 7
      %v1704 = vsub.s32 3, %v1703
      %v1705 = vrot.slane %v1688, %v1704
      %v1710 = vmul.f32 %v1687, %v1693
      %v1711 = vmul.f32 %v1686, %v1697
      %v1712 = vmul.f32 %v1685, %v1701
      %v1713 = vmul.f32 %v1684, %v1705
      %1714 = vst [vmem:[#allocation2 + $0x60] sm:$0xff] %v1710
      %1715 = vst [vmem:[#allocation2 + $0x68] sm:$0xff] %v1711
      %1716 = vst [vmem:[#allocation2 + $0x70] sm:$0xff] %v1712
      %1717 = vst [vmem:[#allocation2 + $0x78] sm:$0xff] %v1713
      %1718 = vrot.lane.b32.xlu0 %v1546, 64
      %v1719 = vpop.permute.xlu0 %1718
      %1720 = vrot.lane.b32.xlu0 %v1547, 64
      %v1721 = vpop.permute.xlu0 %1720
      %1722 = vrot.lane.b32.xlu0 %v1548, 64
      %v1723 = vpop.permute.xlu0 %1722
      %1724 = vrot.lane.b32.xlu0 %v1549, 64
      %v1725 = vpop.permute.xlu0 %1724
      %v1726 = vsel %vm417, %v1723, %v1725
      %v1727 = vsel %vm417, %v1721, %v1723
      %v1728 = vsel %vm417, %v1719, %v1721
      %v1729 = vsel %vm417, %v1725, %v1719
      %v1730 = vld [vmem:[%s422] ss:$8 sm:$0xf]
      %v1732 = vlaneseq
      %v1733 = vshrl.u32 %v1732, 7
      %v1734 = vsub.s32 0, %v1733
      %v1735 = vrot.slane %v1730, %v1734
      %v1736 = vlaneseq
      %v1737 = vshrl.u32 %v1736, 7
      %v1738 = vsub.s32 1, %v1737
      %v1739 = vrot.slane %v1730, %v1738
      %v1740 = vlaneseq
      %v1741 = vshrl.u32 %v1740, 7
      %v1742 = vsub.s32 2, %v1741
      %v1743 = vrot.slane %v1730, %v1742
      %v1744 = vlaneseq
      %v1745 = vshrl.u32 %v1744, 7
      %v1746 = vsub.s32 3, %v1745
      %v1747 = vrot.slane %v1730, %v1746
      %v1752 = vmul.f32 %v1729, %v1735
      %v1753 = vmul.f32 %v1728, %v1739
      %v1754 = vmul.f32 %v1727, %v1743
      %v1755 = vmul.f32 %v1726, %v1747
      %1756 = vst [vmem:[#allocation2 + $0x80] sm:$0xff] %v1752
      %1757 = vst [vmem:[#allocation2 + $0x88] sm:$0xff] %v1753
      %1758 = vst [vmem:[#allocation2 + $0x90] sm:$0xff] %v1754
      %1759 = vst [vmem:[#allocation2 + $0x98] sm:$0xff] %v1755
      %1760 = vrot.lane.b32.xlu0 %v1546, 63
      %v1761 = vpop.permute.xlu0 %1760
      %1762 = vrot.lane.b32.xlu0 %v1547, 63
      %v1763 = vpop.permute.xlu0 %1762
      %1764 = vrot.lane.b32.xlu0 %v1548, 63
      %v1765 = vpop.permute.xlu0 %1764
      %1766 = vrot.lane.b32.xlu0 %v1549, 63
      %v1767 = vpop.permute.xlu0 %1766
      %v1768 = vsel %vm461, %v1765, %v1767
      %v1769 = vsel %vm461, %v1763, %v1765
      %v1770 = vsel %vm461, %v1761, %v1763
      %v1771 = vsel %vm461, %v1767, %v1761
      %v1772 = vld [vmem:[%s466] ss:$8 sm:$0xf]
      %v1774 = vlaneseq
      %v1775 = vshrl.u32 %v1774, 7
      %v1776 = vsub.s32 0, %v1775
      %v1777 = vrot.slane %v1772, %v1776
      %v1778 = vlaneseq
      %v1779 = vshrl.u32 %v1778, 7
      %v1780 = vsub.s32 1, %v1779
      %v1781 = vrot.slane %v1772, %v1780
      %v1782 = vlaneseq
      %v1783 = vshrl.u32 %v1782, 7
      %v1784 = vsub.s32 2, %v1783
      %v1785 = vrot.slane %v1772, %v1784
      %v1786 = vlaneseq
      %v1787 = vshrl.u32 %v1786, 7
      %v1788 = vsub.s32 3, %v1787
      %v1789 = vrot.slane %v1772, %v1788
      %v1794 = vmul.f32 %v1771, %v1777
      %v1795 = vmul.f32 %v1770, %v1781
      %v1796 = vmul.f32 %v1769, %v1785
      %v1797 = vmul.f32 %v1768, %v1789
      %1798 = vst [vmem:[#allocation2 + $0xa0] sm:$0xff] %v1794
      %1799 = vst [vmem:[#allocation2 + $0xa8] sm:$0xff] %v1795
      %1800 = vst [vmem:[#allocation2 + $0xb0] sm:$0xff] %v1796
      %1801 = vst [vmem:[#allocation2 + $0xb8] sm:$0xff] %v1797
      %1802 = vrot.lane.b32.xlu0 %v1546, 57
      %v1803 = vpop.permute.xlu0 %1802
      %1804 = vrot.lane.b32.xlu0 %v1547, 57
      %v1805 = vpop.permute.xlu0 %1804
      %1806 = vrot.lane.b32.xlu0 %v1548, 57
      %v1807 = vpop.permute.xlu0 %1806
      %1808 = vrot.lane.b32.xlu0 %v1549, 57
      %v1809 = vpop.permute.xlu0 %1808
      %v1810 = vsel %vm505, %v1807, %v1809
      %v1811 = vsel %vm505, %v1805, %v1807
      %v1812 = vsel %vm505, %v1803, %v1805
      %v1813 = vsel %vm505, %v1809, %v1803
      %v1814 = vld [vmem:[%s510] ss:$8 sm:$0xf]
      %v1816 = vlaneseq
      %v1817 = vshrl.u32 %v1816, 7
      %v1818 = vsub.s32 0, %v1817
      %v1819 = vrot.slane %v1814, %v1818
      %v1820 = vlaneseq
      %v1821 = vshrl.u32 %v1820, 7
      %v1822 = vsub.s32 1, %v1821
      %v1823 = vrot.slane %v1814, %v1822
      %v1824 = vlaneseq
      %v1825 = vshrl.u32 %v1824, 7
      %v1826 = vsub.s32 2, %v1825
      %v1827 = vrot.slane %v1814, %v1826
      %v1828 = vlaneseq
      %v1829 = vshrl.u32 %v1828, 7
      %v1830 = vsub.s32 3, %v1829
      %v1831 = vrot.slane %v1814, %v1830
      %v1836 = vmul.f32 %v1813, %v1819
      %v1837 = vmul.f32 %v1812, %v1823
      %v1838 = vmul.f32 %v1811, %v1827
      %v1839 = vmul.f32 %v1810, %v1831
      %1840 = vst [vmem:[#allocation2 + $0xc0] sm:$0xff] %v1836
      %1841 = vst [vmem:[#allocation2 + $0xc8] sm:$0xff] %v1837
      %1842 = vst [vmem:[#allocation2 + $0xd0] sm:$0xff] %v1838
      %1843 = vst [vmem:[#allocation2 + $0xd8] sm:$0xff] %v1839
      %1844 = vrot.lane.b32.xlu0 %v1546, 56
      %v1845 = vpop.permute.xlu0 %1844
      %1846 = vrot.lane.b32.xlu0 %v1547, 56
      %v1847 = vpop.permute.xlu0 %1846
      %1848 = vrot.lane.b32.xlu0 %v1548, 56
      %v1849 = vpop.permute.xlu0 %1848
      %1850 = vrot.lane.b32.xlu0 %v1549, 56
      %v1851 = vpop.permute.xlu0 %1850
      %v1852 = vsel %vm549, %v1849, %v1851
      %v1853 = vsel %vm549, %v1847, %v1849
      %v1854 = vsel %vm549, %v1845, %v1847
      %v1855 = vsel %vm549, %v1851, %v1845
      %v1856 = vld [vmem:[%s554] ss:$8 sm:$0xf]
      %v1858 = vlaneseq
      %v1859 = vshrl.u32 %v1858, 7
      %v1860 = vsub.s32 0, %v1859
      %v1861 = vrot.slane %v1856, %v1860
      %v1862 = vlaneseq
      %v1863 = vshrl.u32 %v1862, 7
      %v1864 = vsub.s32 1, %v1863
      %v1865 = vrot.slane %v1856, %v1864
      %v1866 = vlaneseq
      %v1867 = vshrl.u32 %v1866, 7
      %v1868 = vsub.s32 2, %v1867
      %v1869 = vrot.slane %v1856, %v1868
      %v1870 = vlaneseq
      %v1871 = vshrl.u32 %v1870, 7
      %v1872 = vsub.s32 3, %v1871
      %v1873 = vrot.slane %v1856, %v1872
      %v1878 = vmul.f32 %v1855, %v1861
      %v1879 = vmul.f32 %v1854, %v1865
      %v1880 = vmul.f32 %v1853, %v1869
      %v1881 = vmul.f32 %v1852, %v1873
      %1882 = vst [vmem:[#allocation2 + $0xe0] sm:$0xff] %v1878
      %1883 = vst [vmem:[#allocation2 + $0xe8] sm:$0xff] %v1879
      %1884 = vst [vmem:[#allocation2 + $0xf0] sm:$0xff] %v1880
      %1885 = vst [vmem:[#allocation2 + $0xf8] sm:$0xff] %v1881
      %1886 = vrot.lane.b32.xlu0 %v1546, 55
      %v1887 = vpop.permute.xlu0 %1886
      %1888 = vrot.lane.b32.xlu0 %v1547, 55
      %v1889 = vpop.permute.xlu0 %1888
      %1890 = vrot.lane.b32.xlu0 %v1548, 55
      %v1891 = vpop.permute.xlu0 %1890
      %1892 = vrot.lane.b32.xlu0 %v1549, 55
      %v1893 = vpop.permute.xlu0 %1892
      %v1894 = vsel %vm593, %v1891, %v1893
      %v1895 = vsel %vm593, %v1889, %v1891
      %v1896 = vsel %vm593, %v1887, %v1889
      %v1897 = vsel %vm593, %v1893, %v1887
      %v1898 = vld [vmem:[%s598] ss:$8 sm:$0xf]
      %v1900 = vlaneseq
      %v1901 = vshrl.u32 %v1900, 7
      %v1902 = vsub.s32 0, %v1901
      %v1903 = vrot.slane %v1898, %v1902
      %v1904 = vlaneseq
      %v1905 = vshrl.u32 %v1904, 7
      %v1906 = vsub.s32 1, %v1905
      %v1907 = vrot.slane %v1898, %v1906
      %v1908 = vlaneseq
      %v1909 = vshrl.u32 %v1908, 7
      %v1910 = vsub.s32 2, %v1909
      %v1911 = vrot.slane %v1898, %v1910
      %v1912 = vlaneseq
      %v1913 = vshrl.u32 %v1912, 7
      %v1914 = vsub.s32 3, %v1913
      %v1915 = vrot.slane %v1898, %v1914
      %v1920 = vmul.f32 %v1897, %v1903
      %v1921 = vmul.f32 %v1896, %v1907
      %v1922 = vmul.f32 %v1895, %v1911
      %v1923 = vmul.f32 %v1894, %v1915
      %1924 = vst [vmem:[#allocation2 + $0x100] sm:$0xff] %v1920
      %1925 = vst [vmem:[#allocation2 + $0x108] sm:$0xff] %v1921
      %1926 = vst [vmem:[#allocation2 + $0x110] sm:$0xff] %v1922
      %1927 = vst [vmem:[#allocation2 + $0x118] sm:$0xff] %v1923
      %1928 = vrot.lane.b32.xlu0 %v1546, 9
      %v1929 = vpop.permute.xlu0 %1928
      %1930 = vrot.lane.b32.xlu0 %v1547, 9
      %v1931 = vpop.permute.xlu0 %1930
      %1932 = vrot.lane.b32.xlu0 %v1548, 9
      %v1933 = vpop.permute.xlu0 %1932
      %1934 = vrot.lane.b32.xlu0 %v1549, 9
      %v1935 = vpop.permute.xlu0 %1934
      %v1936 = vsel %vm637, %v1933, %v1935
      %v1937 = vsel %vm637, %v1931, %v1933
      %v1938 = vsel %vm637, %v1929, %v1931
      %v1939 = vsel %vm637, %v1935, %v1929
      %v1940 = vld [vmem:[%s642] ss:$8 sm:$0xf]
      %v1942 = vlaneseq
      %v1943 = vshrl.u32 %v1942, 7
      %v1944 = vsub.s32 0, %v1943
      %v1945 = vrot.slane %v1940, %v1944
      %v1946 = vlaneseq
      %v1947 = vshrl.u32 %v1946, 7
      %v1948 = vsub.s32 1, %v1947
      %v1949 = vrot.slane %v1940, %v1948
      %v1950 = vlaneseq
      %v1951 = vshrl.u32 %v1950, 7
      %v1952 = vsub.s32 2, %v1951
      %v1953 = vrot.slane %v1940, %v1952
      %v1954 = vlaneseq
      %v1955 = vshrl.u32 %v1954, 7
      %v1956 = vsub.s32 3, %v1955
      %v1957 = vrot.slane %v1940, %v1956
      %v1962 = vmul.f32 %v1939, %v1945
      %v1963 = vmul.f32 %v1938, %v1949
      %v1964 = vmul.f32 %v1937, %v1953
      %v1965 = vmul.f32 %v1936, %v1957
      %1966 = vst [vmem:[#allocation2 + $0x120] sm:$0xff] %v1962
      %1967 = vst [vmem:[#allocation2 + $0x128] sm:$0xff] %v1963
      %1968 = vst [vmem:[#allocation2 + $0x130] sm:$0xff] %v1964
      %1969 = vst [vmem:[#allocation2 + $0x138] sm:$0xff] %v1965
      %1970 = vrot.lane.b32.xlu0 %v1546, 8
      %v1971 = vpop.permute.xlu0 %1970
      %1972 = vrot.lane.b32.xlu0 %v1547, 8
      %v1973 = vpop.permute.xlu0 %1972
      %1974 = vrot.lane.b32.xlu0 %v1548, 8
      %v1975 = vpop.permute.xlu0 %1974
      %1976 = vrot.lane.b32.xlu0 %v1549, 8
      %v1977 = vpop.permute.xlu0 %1976
      %v1978 = vsel %vm681, %v1975, %v1977
      %v1979 = vsel %vm681, %v1973, %v1975
      %v1980 = vsel %vm681, %v1971, %v1973
      %v1981 = vsel %vm681, %v1977, %v1971
      %v1982 = vld [vmem:[%s686] ss:$8 sm:$0xf]
      %v1984 = vlaneseq
      %v1985 = vshrl.u32 %v1984, 7
      %v1986 = vsub.s32 0, %v1985
      %v1987 = vrot.slane %v1982, %v1986
      %v1988 = vlaneseq
      %v1989 = vshrl.u32 %v1988, 7
      %v1990 = vsub.s32 1, %v1989
      %v1991 = vrot.slane %v1982, %v1990
      %v1992 = vlaneseq
      %v1993 = vshrl.u32 %v1992, 7
      %v1994 = vsub.s32 2, %v1993
      %v1995 = vrot.slane %v1982, %v1994
      %v1996 = vlaneseq
      %v1997 = vshrl.u32 %v1996, 7
      %v1998 = vsub.s32 3, %v1997
      %v1999 = vrot.slane %v1982, %v1998
      %v2004 = vmul.f32 %v1981, %v1987
      %v2005 = vmul.f32 %v1980, %v1991
      %v2006 = vmul.f32 %v1979, %v1995
      %v2007 = vmul.f32 %v1978, %v1999
      %2008 = vst [vmem:[#allocation2 + $0x140] sm:$0xff] %v2004
      %2009 = vst [vmem:[#allocation2 + $0x148] sm:$0xff] %v2005
      %2010 = vst [vmem:[#allocation2 + $0x150] sm:$0xff] %v2006
      %2011 = vst [vmem:[#allocation2 + $0x158] sm:$0xff] %v2007
      %2012 = vrot.lane.b32.xlu0 %v1546, 7
      %v2013 = vpop.permute.xlu0 %2012
      %2014 = vrot.lane.b32.xlu0 %v1547, 7
      %v2015 = vpop.permute.xlu0 %2014
      %2016 = vrot.lane.b32.xlu0 %v1548, 7
      %v2017 = vpop.permute.xlu0 %2016
      %2018 = vrot.lane.b32.xlu0 %v1549, 7
      %v2019 = vpop.permute.xlu0 %2018
      %v2020 = vsel %vm725, %v2017, %v2019
      %v2021 = vsel %vm725, %v2015, %v2017
      %v2022 = vsel %vm725, %v2013, %v2015
      %v2023 = vsel %vm725, %v2019, %v2013
      %v2024 = vld [vmem:[%s730] ss:$8 sm:$0xf]
      %v2026 = vlaneseq
      %v2027 = vshrl.u32 %v2026, 7
      %v2028 = vsub.s32 0, %v2027
      %v2029 = vrot.slane %v2024, %v2028
      %v2030 = vlaneseq
      %v2031 = vshrl.u32 %v2030, 7
      %v2032 = vsub.s32 1, %v2031
      %v2033 = vrot.slane %v2024, %v2032
      %v2034 = vlaneseq
      %v2035 = vshrl.u32 %v2034, 7
      %v2036 = vsub.s32 2, %v2035
      %v2037 = vrot.slane %v2024, %v2036
      %v2038 = vlaneseq
      %v2039 = vshrl.u32 %v2038, 7
      %v2040 = vsub.s32 3, %v2039
      %v2041 = vrot.slane %v2024, %v2040
      %v2046 = vmul.f32 %v2023, %v2029
      %v2047 = vmul.f32 %v2022, %v2033
      %v2048 = vmul.f32 %v2021, %v2037
      %v2049 = vmul.f32 %v2020, %v2041
      %2050 = vst [vmem:[#allocation2 + $0x160] sm:$0xff] %v2046
      %2051 = vst [vmem:[#allocation2 + $0x168] sm:$0xff] %v2047
      %2052 = vst [vmem:[#allocation2 + $0x170] sm:$0xff] %v2048
      %2053 = vst [vmem:[#allocation2 + $0x178] sm:$0xff] %v2049
      %2054 = vrot.lane.b32.xlu0 %v1546, 1
      %v2055 = vpop.permute.xlu0 %2054
      %2056 = vrot.lane.b32.xlu0 %v1547, 1
      %v2057 = vpop.permute.xlu0 %2056
      %2058 = vrot.lane.b32.xlu0 %v1548, 1
      %v2059 = vpop.permute.xlu0 %2058
      %2060 = vrot.lane.b32.xlu0 %v1549, 1
      %v2061 = vpop.permute.xlu0 %2060
      %v2062 = vsel %vm769, %v2059, %v2061
      %v2063 = vsel %vm769, %v2057, %v2059
      %v2064 = vsel %vm769, %v2055, %v2057
      %v2065 = vsel %vm769, %v2061, %v2055
      %v2066 = vld [vmem:[%s774] ss:$8 sm:$0xf]
      %v2068 = vlaneseq
      %v2069 = vshrl.u32 %v2068, 7
      %v2070 = vsub.s32 0, %v2069
      %v2071 = vrot.slane %v2066, %v2070
      %v2072 = vlaneseq
      %v2073 = vshrl.u32 %v2072, 7
      %v2074 = vsub.s32 1, %v2073
      %v2075 = vrot.slane %v2066, %v2074
      %v2076 = vlaneseq
      %v2077 = vshrl.u32 %v2076, 7
      %v2078 = vsub.s32 2, %v2077
      %v2079 = vrot.slane %v2066, %v2078
      %v2080 = vlaneseq
      %v2081 = vshrl.u32 %v2080, 7
      %v2082 = vsub.s32 3, %v2081
      %v2083 = vrot.slane %v2066, %v2082
      %v2088 = vmul.f32 %v2065, %v2071
      %v2089 = vmul.f32 %v2064, %v2075
      %v2090 = vmul.f32 %v2063, %v2079
      %v2091 = vmul.f32 %v2062, %v2083
      %2092 = vst [vmem:[#allocation2 + $0x180] sm:$0xff] %v2088
      %2093 = vst [vmem:[#allocation2 + $0x188] sm:$0xff] %v2089
      %2094 = vst [vmem:[#allocation2 + $0x190] sm:$0xff] %v2090
      %2095 = vst [vmem:[#allocation2 + $0x198] sm:$0xff] %v2091
      %2096 = vst [vmem:[#allocation2 + $0x1a0] sm:$0xff] %v1546
      %2097 = vst [vmem:[#allocation2 + $0x1a8] sm:$0xff] %v1547
      %2098 = vst [vmem:[#allocation2 + $0x1b0] sm:$0xff] %v1548
      %2099 = vst [vmem:[#allocation2 + $0x1b8] sm:$0xff] %v1549
      %2100 = vrot.lane.b32.xlu0 %v1546, 127
      %v2101 = vpop.permute.xlu0 %2100
      %2102 = vrot.lane.b32.xlu0 %v1547, 127
      %v2103 = vpop.permute.xlu0 %2102
      %2104 = vrot.lane.b32.xlu0 %v1548, 127
      %v2105 = vpop.permute.xlu0 %2104
      %2106 = vrot.lane.b32.xlu0 %v1549, 127
      %v2107 = vpop.permute.xlu0 %2106
      %v2108 = vsel %vm817, %v2105, %v2107
      %v2109 = vsel %vm817, %v2103, %v2105
      %v2110 = vsel %vm817, %v2101, %v2103
      %v2111 = vsel %vm817, %v2107, %v2101
      %v2112 = vld [vmem:[%s822] ss:$8 sm:$0xf]
      %v2114 = vlaneseq
      %v2115 = vshrl.u32 %v2114, 7
      %v2116 = vsub.s32 0, %v2115
      %v2117 = vrot.slane %v2112, %v2116
      %v2118 = vlaneseq
      %v2119 = vshrl.u32 %v2118, 7
      %v2120 = vsub.s32 1, %v2119
      %v2121 = vrot.slane %v2112, %v2120
      %v2122 = vlaneseq
      %v2123 = vshrl.u32 %v2122, 7
      %v2124 = vsub.s32 2, %v2123
      %v2125 = vrot.slane %v2112, %v2124
      %v2126 = vlaneseq
      %v2127 = vshrl.u32 %v2126, 7
      %v2128 = vsub.s32 3, %v2127
      %v2129 = vrot.slane %v2112, %v2128
      %v2134 = vmul.f32 %v2110, %v2117
      %v2135 = vmul.f32 %v2109, %v2121
      %v2136 = vmul.f32 %v2108, %v2125
      %v2137 = vmul.f32 %v2111, %v2129
      %2138 = vst [vmem:[#allocation2 + $0x1c0] sm:$0xff] %v2134
      %2139 = vst [vmem:[#allocation2 + $0x1c8] sm:$0xff] %v2135
      %2140 = vst [vmem:[#allocation2 + $0x1d0] sm:$0xff] %v2136
      %2141 = vst [vmem:[#allocation2 + $0x1d8] sm:$0xff] %v2137
      %2142 = vrot.lane.b32.xlu0 %v1546, 121
      %v2143 = vpop.permute.xlu0 %2142
      %2144 = vrot.lane.b32.xlu0 %v1547, 121
      %v2145 = vpop.permute.xlu0 %2144
      %2146 = vrot.lane.b32.xlu0 %v1548, 121
      %v2147 = vpop.permute.xlu0 %2146
      %2148 = vrot.lane.b32.xlu0 %v1549, 121
      %v2149 = vpop.permute.xlu0 %2148
      %v2150 = vsel %vm861, %v2147, %v2149
      %v2151 = vsel %vm861, %v2145, %v2147
      %v2152 = vsel %vm861, %v2143, %v2145
      %v2153 = vsel %vm861, %v2149, %v2143
      %v2154 = vld [vmem:[%s866] ss:$8 sm:$0xf]
      %v2156 = vlaneseq
      %v2157 = vshrl.u32 %v2156, 7
      %v2158 = vsub.s32 0, %v2157
      %v2159 = vrot.slane %v2154, %v2158
      %v2160 = vlaneseq
      %v2161 = vshrl.u32 %v2160, 7
      %v2162 = vsub.s32 1, %v2161
      %v2163 = vrot.slane %v2154, %v2162
      %v2164 = vlaneseq
      %v2165 = vshrl.u32 %v2164, 7
      %v2166 = vsub.s32 2, %v2165
      %v2167 = vrot.slane %v2154, %v2166
      %v2168 = vlaneseq
      %v2169 = vshrl.u32 %v2168, 7
      %v2170 = vsub.s32 3, %v2169
      %v2171 = vrot.slane %v2154, %v2170
      %v2176 = vmul.f32 %v2152, %v2159
      %v2177 = vmul.f32 %v2151, %v2163
      %v2178 = vmul.f32 %v2150, %v2167
      %v2179 = vmul.f32 %v2153, %v2171
      %2180 = vst [vmem:[#allocation2 + $0x1e0] sm:$0xff] %v2176
      %2181 = vst [vmem:[#allocation2 + $0x1e8] sm:$0xff] %v2177
      %2182 = vst [vmem:[#allocation2 + $0x1f0] sm:$0xff] %v2178
      %2183 = vst [vmem:[#allocation2 + $0x1f8] sm:$0xff] %v2179
      %2184 = vrot.lane.b32.xlu0 %v1546, 120
      %v2185 = vpop.permute.xlu0 %2184
      %2186 = vrot.lane.b32.xlu0 %v1547, 120
      %v2187 = vpop.permute.xlu0 %2186
      %2188 = vrot.lane.b32.xlu0 %v1548, 120
      %v2189 = vpop.permute.xlu0 %2188
      %2190 = vrot.lane.b32.xlu0 %v1549, 120
      %v2191 = vpop.permute.xlu0 %2190
      %v2192 = vsel %vm905, %v2189, %v2191
      %v2193 = vsel %vm905, %v2187, %v2189
      %v2194 = vsel %vm905, %v2185, %v2187
      %v2195 = vsel %vm905, %v2191, %v2185
      %v2196 = vld [vmem:[%s910] ss:$8 sm:$0xf]
      %v2198 = vlaneseq
      %v2199 = vshrl.u32 %v2198, 7
      %v2200 = vsub.s32 0, %v2199
      %v2201 = vrot.slane %v2196, %v2200
      %v2202 = vlaneseq
      %v2203 = vshrl.u32 %v2202, 7
      %v2204 = vsub.s32 1, %v2203
      %v2205 = vrot.slane %v2196, %v2204
      %v2206 = vlaneseq
      %v2207 = vshrl.u32 %v2206, 7
      %v2208 = vsub.s32 2, %v2207
      %v2209 = vrot.slane %v2196, %v2208
      %v2210 = vlaneseq
      %v2211 = vshrl.u32 %v2210, 7
      %v2212 = vsub.s32 3, %v2211
      %v2213 = vrot.slane %v2196, %v2212
      %v2218 = vmul.f32 %v2194, %v2201
      %v2219 = vmul.f32 %v2193, %v2205
      %v2220 = vmul.f32 %v2192, %v2209
      %v2221 = vmul.f32 %v2195, %v2213
      %2222 = vst [vmem:[#allocation2 + $0x200] sm:$0xff] %v2218
      %2223 = vst [vmem:[#allocation2 + $0x208] sm:$0xff] %v2219
      %2224 = vst [vmem:[#allocation2 + $0x210] sm:$0xff] %v2220
      %2225 = vst [vmem:[#allocation2 + $0x218] sm:$0xff] %v2221
      %2226 = vrot.lane.b32.xlu0 %v1546, 119
      %v2227 = vpop.permute.xlu0 %2226
      %2228 = vrot.lane.b32.xlu0 %v1547, 119
      %v2229 = vpop.permute.xlu0 %2228
      %2230 = vrot.lane.b32.xlu0 %v1548, 119
      %v2231 = vpop.permute.xlu0 %2230
      %2232 = vrot.lane.b32.xlu0 %v1549, 119
      %v2233 = vpop.permute.xlu0 %2232
      %v2234 = vsel %vm949, %v2231, %v2233
      %v2235 = vsel %vm949, %v2229, %v2231
      %v2236 = vsel %vm949, %v2227, %v2229
      %v2237 = vsel %vm949, %v2233, %v2227
      %v2238 = vld [vmem:[%s954] ss:$8 sm:$0xf]
      %v2240 = vlaneseq
      %v2241 = vshrl.u32 %v2240, 7
      %v2242 = vsub.s32 0, %v2241
      %v2243 = vrot.slane %v2238, %v2242
      %v2244 = vlaneseq
      %v2245 = vshrl.u32 %v2244, 7
      %v2246 = vsub.s32 1, %v2245
      %v2247 = vrot.slane %v2238, %v2246
      %v2248 = vlaneseq
      %v2249 = vshrl.u32 %v2248, 7
      %v2250 = vsub.s32 2, %v2249
      %v2251 = vrot.slane %v2238, %v2250
      %v2252 = vlaneseq
      %v2253 = vshrl.u32 %v2252, 7
      %v2254 = vsub.s32 3, %v2253
      %v2255 = vrot.slane %v2238, %v2254
      %v2260 = vmul.f32 %v2236, %v2243
      %v2261 = vmul.f32 %v2235, %v2247
      %v2262 = vmul.f32 %v2234, %v2251
      %v2263 = vmul.f32 %v2237, %v2255
      %2264 = vst [vmem:[#allocation2 + $0x220] sm:$0xff] %v2260
      %2265 = vst [vmem:[#allocation2 + $0x228] sm:$0xff] %v2261
      %2266 = vst [vmem:[#allocation2 + $0x230] sm:$0xff] %v2262
      %2267 = vst [vmem:[#allocation2 + $0x238] sm:$0xff] %v2263
      %v2268 = vld [vmem:[%s985] ss:$8 sm:$0xf]
      %v2270 = vlaneseq
      %v2271 = vshrl.u32 %v2270, 7
      %v2272 = vsub.s32 0, %v2271
      %v2273 = vrot.slane %v2268, %v2272
      %v2274 = vlaneseq
      %v2275 = vshrl.u32 %v2274, 7
      %v2276 = vsub.s32 1, %v2275
      %v2277 = vrot.slane %v2268, %v2276
      %v2278 = vlaneseq
      %v2279 = vshrl.u32 %v2278, 7
      %v2280 = vsub.s32 2, %v2279
      %v2281 = vrot.slane %v2268, %v2280
      %v2282 = vlaneseq
      %v2283 = vshrl.u32 %v2282, 7
      %v2284 = vsub.s32 3, %v2283
      %v2285 = vrot.slane %v2268, %v2284
      %v2290 = vmul.f32 %v1560, %v2273
      %v2291 = vmul.f32 %v1559, %v2277
      %v2292 = vmul.f32 %v1558, %v2281
      %v2293 = vmul.f32 %v1561, %v2285
      %2294 = vst [vmem:[#allocation2 + $0x240] sm:$0xff] %v2290
      %2295 = vst [vmem:[#allocation2 + $0x248] sm:$0xff] %v2291
      %2296 = vst [vmem:[#allocation2 + $0x250] sm:$0xff] %v2292
      %2297 = vst [vmem:[#allocation2 + $0x258] sm:$0xff] %v2293
      %v2298 = vld [vmem:[%s1016] ss:$8 sm:$0xf]
      %v2300 = vlaneseq
      %v2301 = vshrl.u32 %v2300, 7
      %v2302 = vsub.s32 0, %v2301
      %v2303 = vrot.slane %v2298, %v2302
      %v2304 = vlaneseq
      %v2305 = vshrl.u32 %v2304, 7
      %v2306 = vsub.s32 1, %v2305
      %v2307 = vrot.slane %v2298, %v2306
      %v2308 = vlaneseq
      %v2309 = vshrl.u32 %v2308, 7
      %v2310 = vsub.s32 2, %v2309
      %v2311 = vrot.slane %v2298, %v2310
      %v2312 = vlaneseq
      %v2313 = vshrl.u32 %v2312, 7
      %v2314 = vsub.s32 3, %v2313
      %v2315 = vrot.slane %v2298, %v2314
      %v2320 = vmul.f32 %v1602, %v2303
      %v2321 = vmul.f32 %v1601, %v2307
      %v2322 = vmul.f32 %v1600, %v2311
      %v2323 = vmul.f32 %v1603, %v2315
      %2324 = vst [vmem:[#allocation2 + $0x260] sm:$0xff] %v2320
      %2325 = vst [vmem:[#allocation2 + $0x268] sm:$0xff] %v2321
      %2326 = vst [vmem:[#allocation2 + $0x270] sm:$0xff] %v2322
      %2327 = vst [vmem:[#allocation2 + $0x278] sm:$0xff] %v2323
      %v2328 = vld [vmem:[%s1047] ss:$8 sm:$0xf]
      %v2330 = vlaneseq
      %v2331 = vshrl.u32 %v2330, 7
      %v2332 = vsub.s32 0, %v2331
      %v2333 = vrot.slane %v2328, %v2332
      %v2334 = vlaneseq
      %v2335 = vshrl.u32 %v2334, 7
      %v2336 = vsub.s32 1, %v2335
      %v2337 = vrot.slane %v2328, %v2336
      %v2338 = vlaneseq
      %v2339 = vshrl.u32 %v2338, 7
      %v2340 = vsub.s32 2, %v2339
      %v2341 = vrot.slane %v2328, %v2340
      %v2342 = vlaneseq
      %v2343 = vshrl.u32 %v2342, 7
      %v2344 = vsub.s32 3, %v2343
      %v2345 = vrot.slane %v2328, %v2344
      %v2350 = vmul.f32 %v1644, %v2333
      %v2351 = vmul.f32 %v1643, %v2337
      %v2352 = vmul.f32 %v1642, %v2341
      %v2353 = vmul.f32 %v1645, %v2345
      %2354 = vst [vmem:[#allocation2 + $0x280] sm:$0xff] %v2350
      %2355 = vst [vmem:[#allocation2 + $0x288] sm:$0xff] %v2351
      %2356 = vst [vmem:[#allocation2 + $0x290] sm:$0xff] %v2352
      %2357 = vst [vmem:[#allocation2 + $0x298] sm:$0xff] %v2353
      %v2358 = vld [vmem:[%s1078] ss:$8 sm:$0xf]
      %v2360 = vlaneseq
      %v2361 = vshrl.u32 %v2360, 7
      %v2362 = vsub.s32 0, %v2361
      %v2363 = vrot.slane %v2358, %v2362
      %v2364 = vlaneseq
      %v2365 = vshrl.u32 %v2364, 7
      %v2366 = vsub.s32 1, %v2365
      %v2367 = vrot.slane %v2358, %v2366
      %v2368 = vlaneseq
      %v2369 = vshrl.u32 %v2368, 7
      %v2370 = vsub.s32 2, %v2369
      %v2371 = vrot.slane %v2358, %v2370
      %v2372 = vlaneseq
      %v2373 = vshrl.u32 %v2372, 7
      %v2374 = vsub.s32 3, %v2373
      %v2375 = vrot.slane %v2358, %v2374
      %v2380 = vmul.f32 %v1686, %v2363
      %v2381 = vmul.f32 %v1685, %v2367
      %v2382 = vmul.f32 %v1684, %v2371
      %v2383 = vmul.f32 %v1687, %v2375
      %2384 = vst [vmem:[#allocation2 + $0x2a0] sm:$0xff] %v2380
      %2385 = vst [vmem:[#allocation2 + $0x2a8] sm:$0xff] %v2381
      %2386 = vst [vmem:[#allocation2 + $0x2b0] sm:$0xff] %v2382
      %2387 = vst [vmem:[#allocation2 + $0x2b8] sm:$0xff] %v2383
      %v2388 = vld [vmem:[%s1109] ss:$8 sm:$0xf]
      %v2390 = vlaneseq
      %v2391 = vshrl.u32 %v2390, 7
      %v2392 = vsub.s32 0, %v2391
      %v2393 = vrot.slane %v2388, %v2392
      %v2394 = vlaneseq
      %v2395 = vshrl.u32 %v2394, 7
      %v2396 = vsub.s32 1, %v2395
      %v2397 = vrot.slane %v2388, %v2396
      %v2398 = vlaneseq
      %v2399 = vshrl.u32 %v2398, 7
      %v2400 = vsub.s32 2, %v2399
      %v2401 = vrot.slane %v2388, %v2400
      %v2402 = vlaneseq
      %v2403 = vshrl.u32 %v2402, 7
      %v2404 = vsub.s32 3, %v2403
      %v2405 = vrot.slane %v2388, %v2404
      %v2410 = vmul.f32 %v1728, %v2393
      %v2411 = vmul.f32 %v1727, %v2397
      %v2412 = vmul.f32 %v1726, %v2401
      %v2413 = vmul.f32 %v1729, %v2405
      %2414 = vst [vmem:[#allocation2 + $0x2c0] sm:$0xff] %v2410
      %2415 = vst [vmem:[#allocation2 + $0x2c8] sm:$0xff] %v2411
      %2416 = vst [vmem:[#allocation2 + $0x2d0] sm:$0xff] %v2412
      %2417 = vst [vmem:[#allocation2 + $0x2d8] sm:$0xff] %v2413
      %v2418 = vld [vmem:[%s1140] ss:$8 sm:$0xf]
      %v2420 = vlaneseq
      %v2421 = vshrl.u32 %v2420, 7
      %v2422 = vsub.s32 0, %v2421
      %v2423 = vrot.slane %v2418, %v2422
      %v2424 = vlaneseq
      %v2425 = vshrl.u32 %v2424, 7
      %v2426 = vsub.s32 1, %v2425
      %v2427 = vrot.slane %v2418, %v2426
      %v2428 = vlaneseq
      %v2429 = vshrl.u32 %v2428, 7
      %v2430 = vsub.s32 2, %v2429
      %v2431 = vrot.slane %v2418, %v2430
      %v2432 = vlaneseq
      %v2433 = vshrl.u32 %v2432, 7
      %v2434 = vsub.s32 3, %v2433
      %v2435 = vrot.slane %v2418, %v2434
      %v2440 = vmul.f32 %v1770, %v2423
      %v2441 = vmul.f32 %v1769, %v2427
      %v2442 = vmul.f32 %v1768, %v2431
      %v2443 = vmul.f32 %v1771, %v2435
      %2444 = vst [vmem:[#allocation2 + $0x2e0] sm:$0xff] %v2440
      %2445 = vst [vmem:[#allocation2 + $0x2e8] sm:$0xff] %v2441
      %2446 = vst [vmem:[#allocation2 + $0x2f0] sm:$0xff] %v2442
      %2447 = vst [vmem:[#allocation2 + $0x2f8] sm:$0xff] %v2443
      %v2448 = vld [vmem:[%s1171] ss:$8 sm:$0xf]
      %v2450 = vlaneseq
      %v2451 = vshrl.u32 %v2450, 7
      %v2452 = vsub.s32 0, %v2451
      %v2453 = vrot.slane %v2448, %v2452
      %v2454 = vlaneseq
      %v2455 = vshrl.u32 %v2454, 7
      %v2456 = vsub.s32 1, %v2455
      %v2457 = vrot.slane %v2448, %v2456
      %v2458 = vlaneseq
      %v2459 = vshrl.u32 %v2458, 7
      %v2460 = vsub.s32 2, %v2459
      %v2461 = vrot.slane %v2448, %v2460
      %v2462 = vlaneseq
      %v2463 = vshrl.u32 %v2462, 7
      %v2464 = vsub.s32 3, %v2463
      %v2465 = vrot.slane %v2448, %v2464
      %v2470 = vmul.f32 %v1812, %v2453
      %v2471 = vmul.f32 %v1811, %v2457
      %v2472 = vmul.f32 %v1810, %v2461
      %v2473 = vmul.f32 %v1813, %v2465
      %2474 = vst [vmem:[#allocation2 + $0x300] sm:$0xff] %v2470
      %2475 = vst [vmem:[#allocation2 + $0x308] sm:$0xff] %v2471
      %2476 = vst [vmem:[#allocation2 + $0x310] sm:$0xff] %v2472
      %2477 = vst [vmem:[#allocation2 + $0x318] sm:$0xff] %v2473
      %v2478 = vld [vmem:[%s1202] ss:$8 sm:$0xf]
      %v2480 = vlaneseq
      %v2481 = vshrl.u32 %v2480, 7
      %v2482 = vsub.s32 0, %v2481
      %v2483 = vrot.slane %v2478, %v2482
      %v2484 = vlaneseq
      %v2485 = vshrl.u32 %v2484, 7
      %v2486 = vsub.s32 1, %v2485
      %v2487 = vrot.slane %v2478, %v2486
      %v2488 = vlaneseq
      %v2489 = vshrl.u32 %v2488, 7
      %v2490 = vsub.s32 2, %v2489
      %v2491 = vrot.slane %v2478, %v2490
      %v2492 = vlaneseq
      %v2493 = vshrl.u32 %v2492, 7
      %v2494 = vsub.s32 3, %v2493
      %v2495 = vrot.slane %v2478, %v2494
      %v2500 = vmul.f32 %v1854, %v2483
      %v2501 = vmul.f32 %v1853, %v2487
      %v2502 = vmul.f32 %v1852, %v2491
      %v2503 = vmul.f32 %v1855, %v2495
      %2504 = vst [vmem:[#allocation2 + $0x320] sm:$0xff] %v2500
      %2505 = vst [vmem:[#allocation2 + $0x328] sm:$0xff] %v2501
      %2506 = vst [vmem:[#allocation2 + $0x330] sm:$0xff] %v2502
      %2507 = vst [vmem:[#allocation2 + $0x338] sm:$0xff] %v2503
      %v2508 = vld [vmem:[%s1233] ss:$8 sm:$0xf]
      %v2510 = vlaneseq
      %v2511 = vshrl.u32 %v2510, 7
      %v2512 = vsub.s32 0, %v2511
      %v2513 = vrot.slane %v2508, %v2512
      %v2514 = vlaneseq
      %v2515 = vshrl.u32 %v2514, 7
      %v2516 = vsub.s32 1, %v2515
      %v2517 = vrot.slane %v2508, %v2516
      %v2518 = vlaneseq
      %v2519 = vshrl.u32 %v2518, 7
      %v2520 = vsub.s32 2, %v2519
      %v2521 = vrot.slane %v2508, %v2520
      %v2522 = vlaneseq
      %v2523 = vshrl.u32 %v2522, 7
      %v2524 = vsub.s32 3, %v2523
      %v2525 = vrot.slane %v2508, %v2524
      %v2530 = vmul.f32 %v1896, %v2513
      %v2531 = vmul.f32 %v1895, %v2517
      %v2532 = vmul.f32 %v1894, %v2521
      %v2533 = vmul.f32 %v1897, %v2525
      %2534 = vst [vmem:[#allocation2 + $0x340] sm:$0xff] %v2530
      %2535 = vst [vmem:[#allocation2 + $0x348] sm:$0xff] %v2531
      %2536 = vst [vmem:[#allocation2 + $0x350] sm:$0xff] %v2532
      %2537 = vst [vmem:[#allocation2 + $0x358] sm:$0xff] %v2533
      %s2538 = scalar_lea.vmem %s1, 16
      %v2539 = vld [vmem:[%s2538] sm:$0xff]
      %v2540 = vld [vmem:[%s2538 + $0x8] sm:$0xff]
      %v2541 = vld [vmem:[#allocation2] sm:$0xff]
      %v2542 = vld [vmem:[#allocation2 + $0x8] sm:$0xff]
      %v2543 = vld [vmem:[#allocation2 + $0x10] sm:$0xff]
      %v2544 = vld [vmem:[#allocation2 + $0x18] sm:$0xff]
      %v2545 = vld [vmem:[#allocation2 + $0x20] sm:$0xff]
      %v2546 = vld [vmem:[#allocation2 + $0x28] sm:$0xff]
      %v2547 = vld [vmem:[#allocation2 + $0x30] sm:$0xff]
      %v2548 = vld [vmem:[#allocation2 + $0x38] sm:$0xff]
      %v2549 = vld [vmem:[#allocation2 + $0x40] sm:$0xff]
      %v2550 = vld [vmem:[#allocation2 + $0x48] sm:$0xff]
      %v2551 = vld [vmem:[#allocation2 + $0x50] sm:$0xff]
      %v2552 = vld [vmem:[#allocation2 + $0x58] sm:$0xff]
      %v2553 = vld [vmem:[#allocation2 + $0x60] sm:$0xff]
      %v2554 = vld [vmem:[#allocation2 + $0x68] sm:$0xff]
      %v2555 = vld [vmem:[#allocation2 + $0x70] sm:$0xff]
      %v2556 = vld [vmem:[#allocation2 + $0x78] sm:$0xff]
      %v2557 = vld [vmem:[#allocation2 + $0x80] sm:$0xff]
      %v2558 = vld [vmem:[#allocation2 + $0x88] sm:$0xff]
      %v2559 = vld [vmem:[#allocation2 + $0x90] sm:$0xff]
      %v2560 = vld [vmem:[#allocation2 + $0x98] sm:$0xff]
      %v2561 = vld [vmem:[#allocation2 + $0xa0] sm:$0xff]
      %v2562 = vld [vmem:[#allocation2 + $0xa8] sm:$0xff]
      %v2563 = vld [vmem:[#allocation2 + $0xb0] sm:$0xff]
      %v2564 = vld [vmem:[#allocation2 + $0xb8] sm:$0xff]
      %v2565 = vld [vmem:[#allocation2 + $0xc0] sm:$0xff]
      %v2566 = vld [vmem:[#allocation2 + $0xc8] sm:$0xff]
      %v2567 = vld [vmem:[#allocation2 + $0xd0] sm:$0xff]
      %v2568 = vld [vmem:[#allocation2 + $0xd8] sm:$0xff]
      %v2569 = vld [vmem:[#allocation2 + $0xe0] sm:$0xff]
      %v2570 = vld [vmem:[#allocation2 + $0xe8] sm:$0xff]
      %v2571 = vld [vmem:[#allocation2 + $0xf0] sm:$0xff]
      %v2572 = vld [vmem:[#allocation2 + $0xf8] sm:$0xff]
      %v2573 = vld [vmem:[#allocation2 + $0x100] sm:$0xff]
      %v2574 = vld [vmem:[#allocation2 + $0x108] sm:$0xff]
      %v2575 = vld [vmem:[#allocation2 + $0x110] sm:$0xff]
      %v2576 = vld [vmem:[#allocation2 + $0x118] sm:$0xff]
      %v2577 = vld [vmem:[#allocation2 + $0x120] sm:$0xff]
      %v2578 = vld [vmem:[#allocation2 + $0x128] sm:$0xff]
      %v2579 = vld [vmem:[#allocation2 + $0x130] sm:$0xff]
      %v2580 = vld [vmem:[#allocation2 + $0x138] sm:$0xff]
      %v2581 = vld [vmem:[#allocation2 + $0x140] sm:$0xff]
      %v2582 = vld [vmem:[#allocation2 + $0x148] sm:$0xff]
      %v2583 = vld [vmem:[#allocation2 + $0x150] sm:$0xff]
      %v2584 = vld [vmem:[#allocation2 + $0x158] sm:$0xff]
      %v2585 = vld [vmem:[#allocation2 + $0x160] sm:$0xff]
      %v2586 = vld [vmem:[#allocation2 + $0x168] sm:$0xff]
      %v2587 = vld [vmem:[#allocation2 + $0x170] sm:$0xff]
      %v2588 = vld [vmem:[#allocation2 + $0x178] sm:$0xff]
      %v2589 = vld [vmem:[#allocation2 + $0x180] sm:$0xff]
      %v2590 = vld [vmem:[#allocation2 + $0x188] sm:$0xff]
      %v2591 = vld [vmem:[#allocation2 + $0x190] sm:$0xff]
      %v2592 = vld [vmem:[#allocation2 + $0x198] sm:$0xff]
      %v2593 = vld [vmem:[#allocation2 + $0x1a0] sm:$0xff]
      %v2594 = vld [vmem:[#allocation2 + $0x1a8] sm:$0xff]
      %v2595 = vld [vmem:[#allocation2 + $0x1b0] sm:$0xff]
      %v2596 = vld [vmem:[#allocation2 + $0x1b8] sm:$0xff]
      %v2597 = vld [vmem:[#allocation2 + $0x1c0] sm:$0xff]
      %v2598 = vld [vmem:[#allocation2 + $0x1c8] sm:$0xff]
      %v2599 = vld [vmem:[#allocation2 + $0x1d0] sm:$0xff]
      %v2600 = vld [vmem:[#allocation2 + $0x1d8] sm:$0xff]
      %v2601 = vld [vmem:[#allocation2 + $0x1e0] sm:$0xff]
      %v2602 = vld [vmem:[#allocation2 + $0x1e8] sm:$0xff]
      %v2603 = vld [vmem:[#allocation2 + $0x1f0] sm:$0xff]
      %v2604 = vld [vmem:[#allocation2 + $0x1f8] sm:$0xff]
      %v2605 = vld [vmem:[#allocation2 + $0x200] sm:$0xff]
      %v2606 = vld [vmem:[#allocation2 + $0x208] sm:$0xff]
      %v2607 = vld [vmem:[#allocation2 + $0x210] sm:$0xff]
      %v2608 = vld [vmem:[#allocation2 + $0x218] sm:$0xff]
      %v2609 = vld [vmem:[#allocation2 + $0x220] sm:$0xff]
      %v2610 = vld [vmem:[#allocation2 + $0x228] sm:$0xff]
      %v2611 = vld [vmem:[#allocation2 + $0x230] sm:$0xff]
      %v2612 = vld [vmem:[#allocation2 + $0x238] sm:$0xff]
      %v2613 = vld [vmem:[#allocation2 + $0x240] sm:$0xff]
      %v2614 = vld [vmem:[#allocation2 + $0x248] sm:$0xff]
      %v2615 = vld [vmem:[#allocation2 + $0x250] sm:$0xff]
      %v2616 = vld [vmem:[#allocation2 + $0x258] sm:$0xff]
      %v2617 = vld [vmem:[#allocation2 + $0x260] sm:$0xff]
      %v2618 = vld [vmem:[#allocation2 + $0x268] sm:$0xff]
      %v2619 = vld [vmem:[#allocation2 + $0x270] sm:$0xff]
      %v2620 = vld [vmem:[#allocation2 + $0x278] sm:$0xff]
      %v2621 = vld [vmem:[#allocation2 + $0x280] sm:$0xff]
      %v2622 = vld [vmem:[#allocation2 + $0x288] sm:$0xff]
      %v2623 = vld [vmem:[#allocation2 + $0x290] sm:$0xff]
      %v2624 = vld [vmem:[#allocation2 + $0x298] sm:$0xff]
      %v2625 = vld [vmem:[#allocation2 + $0x2a0] sm:$0xff]
      %v2626 = vld [vmem:[#allocation2 + $0x2a8] sm:$0xff]
      %v2627 = vld [vmem:[#allocation2 + $0x2b0] sm:$0xff]
      %v2628 = vld [vmem:[#allocation2 + $0x2b8] sm:$0xff]
      %v2629 = vld [vmem:[#allocation2 + $0x2c0] sm:$0xff]
      %v2630 = vld [vmem:[#allocation2 + $0x2c8] sm:$0xff]
      %v2631 = vld [vmem:[#allocation2 + $0x2d0] sm:$0xff]
      %v2632 = vld [vmem:[#allocation2 + $0x2d8] sm:$0xff]
      %v2633 = vld [vmem:[#allocation2 + $0x2e0] sm:$0xff]
      %v2634 = vld [vmem:[#allocation2 + $0x2e8] sm:$0xff]
      %v2635 = vld [vmem:[#allocation2 + $0x2f0] sm:$0xff]
      %v2636 = vld [vmem:[#allocation2 + $0x2f8] sm:$0xff]
      %v2637 = vld [vmem:[#allocation2 + $0x300] sm:$0xff]
      %v2638 = vld [vmem:[#allocation2 + $0x308] sm:$0xff]
      %v2639 = vld [vmem:[#allocation2 + $0x310] sm:$0xff]
      %v2640 = vld [vmem:[#allocation2 + $0x318] sm:$0xff]
      %v2641 = vld [vmem:[#allocation2 + $0x320] sm:$0xff]
      %v2642 = vld [vmem:[#allocation2 + $0x328] sm:$0xff]
      %v2643 = vld [vmem:[#allocation2 + $0x330] sm:$0xff]
      %v2644 = vld [vmem:[#allocation2 + $0x338] sm:$0xff]
      %v2645 = vld [vmem:[#allocation2 + $0x340] sm:$0xff]
      %v2646 = vld [vmem:[#allocation2 + $0x348] sm:$0xff]
      %v2647 = vld [vmem:[#allocation2 + $0x350] sm:$0xff]
      %v2648 = vld [vmem:[#allocation2 + $0x358] sm:$0xff]
      %v2649 = vld [vmem:[#allocation2 + $0x360] sm:$0xff]
      %v2650 = vld [vmem:[#allocation2 + $0x368] sm:$0xff]
      %v2651 = vld [vmem:[#allocation2 + $0x370] sm:$0xff]
      %v2652 = vld [vmem:[#allocation2 + $0x378] sm:$0xff]
      %v2654 = vsel %vm1378, %v2540, 0
      %2656 = vmatprep.subr.mxu0 %v2602
      %2657 = vmatpush1.msra.mxu0 %v2601
      %2658 = vmatprep.subr.mxu0 %v2598
      %2659 = vmatpush1.msra.mxu0 %v2597
      %2660 = vmatprep.subr.mxu0 %v2594
      %2661 = vmatpush1.msra.mxu0 %v2593
      %2662 = vmatprep.subr.mxu0 %v2590
      %2663 = vmatpush1.msra.mxu0 %v2589
      %2664 = vmatprep.subr.mxu0 %v2586
      %2665 = vmatpush1.msra.mxu0 %v2585
      %2666 = vmatprep.subr.mxu0 %v2582
      %2667 = vmatpush1.msra.mxu0 %v2581
      %2668 = vmatprep.subr.mxu0 %v2578
      %2669 = vmatpush1.msra.mxu0 %v2577
      %2670 = vmatprep.subr.mxu0 %v2574
      %2671 = vmatpush1.msra.mxu0 %v2573
      %2672 = vmatprep.subr.mxu0 %v2570
      %2673 = vmatpush1.msra.mxu0 %v2569
      %2674 = vmatprep.subr.mxu0 %v2566
      %2675 = vmatpush1.msra.mxu0 %v2565
      %2676 = vmatprep.subr.mxu0 %v2562
      %2677 = vmatpush1.msra.mxu0 %v2561
      %2678 = vmatprep.subr.mxu0 %v2558
      %2679 = vmatpush1.msra.mxu0 %v2557
      %2680 = vmatprep.subr.mxu0 %v2554
      %2681 = vmatpush1.msra.mxu0 %v2553
      %2682 = vmatprep.subr.mxu0 %v2550
      %2683 = vmatpush1.msra.mxu0 %v2549
      %2684 = vmatprep.subr.mxu0 %v2546
      %2685 = vmatpush1.msra.mxu0 %v2545
      %2686 = vmatprep.subr.mxu0 %v2542
      %2687 = vmatpush1.msra.mxu0 %v2541
      %2688 = vmatprep.subr.mxu0 0.0
      %2689 = vmatpush2.msra.mxu0 0.0
      %2690 = vmatprep.subr.mxu0 0.0
      %2691 = vmatpush2.msra.mxu0 0.0
      %2692 = vmatprep.subr.mxu0 0.0
      %2693 = vmatpush2.msra.mxu0 0.0
      %2694 = vmatprep.subr.mxu0 0.0
      %2695 = vmatpush2.msra.mxu0 0.0
      %2696 = vmatprep.subr.mxu0 %v2650
      %2697 = vmatpush2.msra.mxu0 %v2649
      %2698 = vmatprep.subr.mxu0 %v2646
      %2699 = vmatpush2.msra.mxu0 %v2645
      %2700 = vmatprep.subr.mxu0 %v2642
      %2701 = vmatpush2.msra.mxu0 %v2641
      %2702 = vmatprep.subr.mxu0 %v2638
      %2703 = vmatpush2.msra.mxu0 %v2637
      %2704 = vmatprep.subr.mxu0 %v2634
      %2705 = vmatpush2.msra.mxu0 %v2633
      %2706 = vmatprep.subr.mxu0 %v2630
      %2707 = vmatpush2.msra.mxu0 %v2629
      %2708 = vmatprep.subr.mxu0 %v2626
      %2709 = vmatpush2.msra.mxu0 %v2625
      %2710 = vmatprep.subr.mxu0 %v2622
      %2711 = vmatpush2.msra.mxu0 %v2621
      %2712 = vmatprep.subr.mxu0 %v2618
      %2713 = vmatpush2.msra.mxu0 %v2617
      %2714 = vmatprep.subr.mxu0 %v2614
      %2715 = vmatpush2.msra.mxu0 %v2613
      %2716 = vmatprep.subr.mxu0 %v2610
      %2717 = vmatpush2.msra.mxu0 %v2609
      %2718 = vmatprep.subr.mxu0 %v2606
      %2719 = vmatpush2.msra.mxu0 %v2605
      %2720 = vmatprep.mubr.f32.mxu0 %v2654
      %2721 = vmatmul.mubr.f32.gmra.mxu0 %v2539
      %v2722 = vpop.f32.mrf.mxu0
      %v2723 = vadd.f32 0.0, %v2722
      %v2724 = vpop.f32.mrf.mxu0
      %v2725 = vadd.f32 0.0, %v2724
      %2726 = vdwg.mxu0
      %2727 = vmatprep.subr.mxu0 %v2604
      %2728 = vmatpush1.msra.mxu0 %v2603
      %2729 = vmatprep.subr.mxu0 %v2600
      %2730 = vmatpush1.msra.mxu0 %v2599
      %2731 = vmatprep.subr.mxu0 %v2596
      %2732 = vmatpush1.msra.mxu0 %v2595
      %2733 = vmatprep.subr.mxu0 %v2592
      %2734 = vmatpush1.msra.mxu0 %v2591
      %2735 = vmatprep.subr.mxu0 %v2588
      %2736 = vmatpush1.msra.mxu0 %v2587
      %2737 = vmatprep.subr.mxu0 %v2584
      %2738 = vmatpush1.msra.mxu0 %v2583
      %2739 = vmatprep.subr.mxu0 %v2580
      %2740 = vmatpush1.msra.mxu0 %v2579
      %2741 = vmatprep.subr.mxu0 %v2576
      %2742 = vmatpush1.msra.mxu0 %v2575
      %2743 = vmatprep.subr.mxu0 %v2572
      %2744 = vmatpush1.msra.mxu0 %v2571
      %2745 = vmatprep.subr.mxu0 %v2568
      %2746 = vmatpush1.msra.mxu0 %v2567
      %2747 = vmatprep.subr.mxu0 %v2564
      %2748 = vmatpush1.msra.mxu0 %v2563
      %2749 = vmatprep.subr.mxu0 %v2560
      %2750 = vmatpush1.msra.mxu0 %v2559
      %2751 = vmatprep.subr.mxu0 %v2556
      %2752 = vmatpush1.msra.mxu0 %v2555
      %2753 = vmatprep.subr.mxu0 %v2552
      %2754 = vmatpush1.msra.mxu0 %v2551
      %2755 = vmatprep.subr.mxu0 %v2548
      %2756 = vmatpush1.msra.mxu0 %v2547
      %2757 = vmatprep.subr.mxu0 %v2544
      %2758 = vmatpush1.msra.mxu0 %v2543
      %2759 = vmatprep.subr.mxu0 0.0
      %2760 = vmatpush2.msra.mxu0 0.0
      %2761 = vmatprep.subr.mxu0 0.0
      %2762 = vmatpush2.msra.mxu0 0.0
      %2763 = vmatprep.subr.mxu0 0.0
      %2764 = vmatpush2.msra.mxu0 0.0
      %2765 = vmatprep.subr.mxu0 0.0
      %2766 = vmatpush2.msra.mxu0 0.0
      %2767 = vmatprep.subr.mxu0 %v2652
      %2768 = vmatpush2.msra.mxu0 %v2651
      %2769 = vmatprep.subr.mxu0 %v2648
      %2770 = vmatpush2.msra.mxu0 %v2647
      %2771 = vmatprep.subr.mxu0 %v2644
      %2772 = vmatpush2.msra.mxu0 %v2643
      %2773 = vmatprep.subr.mxu0 %v2640
      %2774 = vmatpush2.msra.mxu0 %v2639
      %2775 = vmatprep.subr.mxu0 %v2636
      %2776 = vmatpush2.msra.mxu0 %v2635
      %2777 = vmatprep.subr.mxu0 %v2632
      %2778 = vmatpush2.msra.mxu0 %v2631
      %2779 = vmatprep.subr.mxu0 %v2628
      %2780 = vmatpush2.msra.mxu0 %v2627
      %2781 = vmatprep.subr.mxu0 %v2624
      %2782 = vmatpush2.msra.mxu0 %v2623
      %2783 = vmatprep.subr.mxu0 %v2620
      %2784 = vmatpush2.msra.mxu0 %v2619
      %2785 = vmatprep.subr.mxu0 %v2616
      %2786 = vmatpush2.msra.mxu0 %v2615
      %2787 = vmatprep.subr.mxu0 %v2612
      %2788 = vmatpush2.msra.mxu0 %v2611
      %2789 = vmatprep.subr.mxu0 %v2608
      %2790 = vmatpush2.msra.mxu0 %v2607
      %2791 = vmatprep.mubr.f32.mxu0 %v2654
      %2792 = vmatmul.mubr.f32.gmra.mxu0 %v2539
      %v2793 = vpop.f32.mrf.mxu0
      %v2794 = vadd.f32 0.0, %v2793
      %v2795 = vpop.f32.mrf.mxu0
      %v2796 = vadd.f32 0.0, %v2795
      %2797 = vdwg.mxu0
      %v2798 = vmax.f32 %v2723, 0.0
      %v2799 = vmax.f32 %v2725, 0.0
      %v2800 = vmax.f32 %v2794, 0.0
      %v2801 = vmax.f32 %v2796, 0.0
      %s2802 = scalar_lea.vmem %s2, 32
      %v2803 = vld [vmem:[%s2802] sm:$0xff]
      %2805 = vset.pattern.permute.xlu0 0
      %2806 = vperm.xlu0 %2805, %v2803
      %v2807 = vpop.permute.xlu0 %2806
      %v2809 = vmul.f32 %v2798, %v2807
      %v2810 = vmul.f32 %v2799, %v2807
      %v2811 = vmul.f32 %v2800, %v2807
      %v2812 = vmul.f32 %v2801, %v2807
      %s2813 = scalar_lea.vmem %s2, 40
      %v2814 = vld [vmem:[%s2813] sm:$0xff]
      %2816 = vset.pattern.permute.xlu0 0
      %2817 = vperm.xlu0 %2816, %v2814
      %v2818 = vpop.permute.xlu0 %2817
      %v2820 = vadd.f32 %v2809, %v2818
      %v2821 = vadd.f32 %v2810, %v2818
      %v2822 = vadd.f32 %v2811, %v2818
      %v2823 = vadd.f32 %v2812, %v2818
      %2824 = vrot.lane.b32.xlu0 %v2820, 73
      %v2825 = vpop.permute.xlu0 %2824
      %2826 = vrot.lane.b32.xlu0 %v2821, 73
      %v2827 = vpop.permute.xlu0 %2826
      %2828 = vrot.lane.b32.xlu0 %v2822, 73
      %v2829 = vpop.permute.xlu0 %2828
      %2830 = vrot.lane.b32.xlu0 %v2823, 73
      %v2831 = vpop.permute.xlu0 %2830
      %v2832 = vsel %vm242, %v2829, %v2831
      %v2833 = vsel %vm242, %v2827, %v2829
      %v2834 = vsel %vm242, %v2825, %v2827
      %v2835 = vsel %vm242, %v2831, %v2825
      %v2836 = vld [vmem:[%s3] ss:$8 sm:$0xf]
      %v2838 = vlaneseq
      %v2839 = vshrl.u32 %v2838, 7
      %v2840 = vsub.s32 0, %v2839
      %v2841 = vrot.slane %v2836, %v2840
      %v2842 = vlaneseq
      %v2843 = vshrl.u32 %v2842, 7
      %v2844 = vsub.s32 1, %v2843
      %v2845 = vrot.slane %v2836, %v2844
      %v2846 = vlaneseq
      %v2847 = vshrl.u32 %v2846, 7
      %v2848 = vsub.s32 2, %v2847
      %v2849 = vrot.slane %v2836, %v2848
      %v2850 = vlaneseq
      %v2851 = vshrl.u32 %v2850, 7
      %v2852 = vsub.s32 3, %v2851
      %v2853 = vrot.slane %v2836, %v2852
      %v2858 = vmul.f32 %v2835, %v2841
      %v2859 = vmul.f32 %v2834, %v2845
      %v2860 = vmul.f32 %v2833, %v2849
      %v2861 = vmul.f32 %v2832, %v2853
      %2862 = vst [vmem:[#allocation2] sm:$0xff] %v2858
      %2863 = vst [vmem:[#allocation2 + $0x8] sm:$0xff] %v2859
      %2864 = vst [vmem:[#allocation2 + $0x10] sm:$0xff] %v2860
      %2865 = vst [vmem:[#allocation2 + $0x18] sm:$0xff] %v2861
      %2866 = vrot.lane.b32.xlu0 %v2820, 72
      %v2867 = vpop.permute.xlu0 %2866
      %2868 = vrot.lane.b32.xlu0 %v2821, 72
      %v2869 = vpop.permute.xlu0 %2868
      %2870 = vrot.lane.b32.xlu0 %v2822, 72
      %v2871 = vpop.permute.xlu0 %2870
      %2872 = vrot.lane.b32.xlu0 %v2823, 72
      %v2873 = vpop.permute.xlu0 %2872
      %v2874 = vsel %vm285, %v2871, %v2873
      %v2875 = vsel %vm285, %v2869, %v2871
      %v2876 = vsel %vm285, %v2867, %v2869
      %v2877 = vsel %vm285, %v2873, %v2867
      %v2878 = vld [vmem:[%s290] ss:$8 sm:$0xf]
      %v2880 = vlaneseq
      %v2881 = vshrl.u32 %v2880, 7
      %v2882 = vsub.s32 0, %v2881
      %v2883 = vrot.slane %v2878, %v2882
      %v2884 = vlaneseq
      %v2885 = vshrl.u32 %v2884, 7
      %v2886 = vsub.s32 1, %v2885
      %v2887 = vrot.slane %v2878, %v2886
      %v2888 = vlaneseq
      %v2889 = vshrl.u32 %v2888, 7
      %v2890 = vsub.s32 2, %v2889
      %v2891 = vrot.slane %v2878, %v2890
      %v2892 = vlaneseq
      %v2893 = vshrl.u32 %v2892, 7
      %v2894 = vsub.s32 3, %v2893
      %v2895 = vrot.slane %v2878, %v2894
      %v2900 = vmul.f32 %v2877, %v2883
      %v2901 = vmul.f32 %v2876, %v2887
      %v2902 = vmul.f32 %v2875, %v2891
      %v2903 = vmul.f32 %v2874, %v2895
      %2904 = vst [vmem:[#allocation2 + $0x20] sm:$0xff] %v2900
      %2905 = vst [vmem:[#allocation2 + $0x28] sm:$0xff] %v2901
      %2906 = vst [vmem:[#allocation2 + $0x30] sm:$0xff] %v2902
      %2907 = vst [vmem:[#allocation2 + $0x38] sm:$0xff] %v2903
      %2908 = vrot.lane.b32.xlu0 %v2820, 71
      %v2909 = vpop.permute.xlu0 %2908
      %2910 = vrot.lane.b32.xlu0 %v2821, 71
      %v2911 = vpop.permute.xlu0 %2910
      %2912 = vrot.lane.b32.xlu0 %v2822, 71
      %v2913 = vpop.permute.xlu0 %2912
      %2914 = vrot.lane.b32.xlu0 %v2823, 71
      %v2915 = vpop.permute.xlu0 %2914
      %v2916 = vsel %vm329, %v2913, %v2915
      %v2917 = vsel %vm329, %v2911, %v2913
      %v2918 = vsel %vm329, %v2909, %v2911
      %v2919 = vsel %vm329, %v2915, %v2909
      %v2920 = vld [vmem:[%s334] ss:$8 sm:$0xf]
      %v2922 = vlaneseq
      %v2923 = vshrl.u32 %v2922, 7
      %v2924 = vsub.s32 0, %v2923
      %v2925 = vrot.slane %v2920, %v2924
      %v2926 = vlaneseq
      %v2927 = vshrl.u32 %v2926, 7
      %v2928 = vsub.s32 1, %v2927
      %v2929 = vrot.slane %v2920, %v2928
      %v2930 = vlaneseq
      %v2931 = vshrl.u32 %v2930, 7
      %v2932 = vsub.s32 2, %v2931
      %v2933 = vrot.slane %v2920, %v2932
      %v2934 = vlaneseq
      %v2935 = vshrl.u32 %v2934, 7
      %v2936 = vsub.s32 3, %v2935
      %v2937 = vrot.slane %v2920, %v2936
      %v2942 = vmul.f32 %v2919, %v2925
      %v2943 = vmul.f32 %v2918, %v2929
      %v2944 = vmul.f32 %v2917, %v2933
      %v2945 = vmul.f32 %v2916, %v2937
      %2946 = vst [vmem:[#allocation2 + $0x40] sm:$0xff] %v2942
      %2947 = vst [vmem:[#allocation2 + $0x48] sm:$0xff] %v2943
      %2948 = vst [vmem:[#allocation2 + $0x50] sm:$0xff] %v2944
      %2949 = vst [vmem:[#allocation2 + $0x58] sm:$0xff] %v2945
      %2950 = vrot.lane.b32.xlu0 %v2820, 65
      %v2951 = vpop.permute.xlu0 %2950
      %2952 = vrot.lane.b32.xlu0 %v2821, 65
      %v2953 = vpop.permute.xlu0 %2952
      %2954 = vrot.lane.b32.xlu0 %v2822, 65
      %v2955 = vpop.permute.xlu0 %2954
      %2956 = vrot.lane.b32.xlu0 %v2823, 65
      %v2957 = vpop.permute.xlu0 %2956
      %v2958 = vsel %vm373, %v2955, %v2957
      %v2959 = vsel %vm373, %v2953, %v2955
      %v2960 = vsel %vm373, %v2951, %v2953
      %v2961 = vsel %vm373, %v2957, %v2951
      %v2962 = vld [vmem:[%s378] ss:$8 sm:$0xf]
      %v2964 = vlaneseq
      %v2965 = vshrl.u32 %v2964, 7
      %v2966 = vsub.s32 0, %v2965
      %v2967 = vrot.slane %v2962, %v2966
      %v2968 = vlaneseq
      %v2969 = vshrl.u32 %v2968, 7
      %v2970 = vsub.s32 1, %v2969
      %v2971 = vrot.slane %v2962, %v2970
      %v2972 = vlaneseq
      %v2973 = vshrl.u32 %v2972, 7
      %v2974 = vsub.s32 2, %v2973
      %v2975 = vrot.slane %v2962, %v2974
      %v2976 = vlaneseq
      %v2977 = vshrl.u32 %v2976, 7
      %v2978 = vsub.s32 3, %v2977
      %v2979 = vrot.slane %v2962, %v2978
      %v2984 = vmul.f32 %v2961, %v2967
      %v2985 = vmul.f32 %v2960, %v2971
      %v2986 = vmul.f32 %v2959, %v2975
      %v2987 = vmul.f32 %v2958, %v2979
      %2988 = vst [vmem:[#allocation2 + $0x60] sm:$0xff] %v2984
      %2989 = vst [vmem:[#allocation2 + $0x68] sm:$0xff] %v2985
      %2990 = vst [vmem:[#allocation2 + $0x70] sm:$0xff] %v2986
      %2991 = vst [vmem:[#allocation2 + $0x78] sm:$0xff] %v2987
      %2992 = vrot.lane.b32.xlu0 %v2820, 64
      %v2993 = vpop.permute.xlu0 %2992
      %2994 = vrot.lane.b32.xlu0 %v2821, 64
      %v2995 = vpop.permute.xlu0 %2994
      %2996 = vrot.lane.b32.xlu0 %v2822, 64
      %v2997 = vpop.permute.xlu0 %2996
      %2998 = vrot.lane.b32.xlu0 %v2823, 64
      %v2999 = vpop.permute.xlu0 %2998
      %v3000 = vsel %vm417, %v2997, %v2999
      %v3001 = vsel %vm417, %v2995, %v2997
      %v3002 = vsel %vm417, %v2993, %v2995
      %v3003 = vsel %vm417, %v2999, %v2993
      %v3004 = vld [vmem:[%s422] ss:$8 sm:$0xf]
      %v3006 = vlaneseq
      %v3007 = vshrl.u32 %v3006, 7
      %v3008 = vsub.s32 0, %v3007
      %v3009 = vrot.slane %v3004, %v3008
      %v3010 = vlaneseq
      %v3011 = vshrl.u32 %v3010, 7
      %v3012 = vsub.s32 1, %v3011
      %v3013 = vrot.slane %v3004, %v3012
      %v3014 = vlaneseq
      %v3015 = vshrl.u32 %v3014, 7
      %v3016 = vsub.s32 2, %v3015
      %v3017 = vrot.slane %v3004, %v3016
      %v3018 = vlaneseq
      %v3019 = vshrl.u32 %v3018, 7
      %v3020 = vsub.s32 3, %v3019
      %v3021 = vrot.slane %v3004, %v3020
      %v3026 = vmul.f32 %v3003, %v3009
      %v3027 = vmul.f32 %v3002, %v3013
      %v3028 = vmul.f32 %v3001, %v3017
      %v3029 = vmul.f32 %v3000, %v3021
      %3030 = vst [vmem:[#allocation2 + $0x80] sm:$0xff] %v3026
      %3031 = vst [vmem:[#allocation2 + $0x88] sm:$0xff] %v3027
      %3032 = vst [vmem:[#allocation2 + $0x90] sm:$0xff] %v3028
      %3033 = vst [vmem:[#allocation2 + $0x98] sm:$0xff] %v3029
      %3034 = vrot.lane.b32.xlu0 %v2820, 63
      %v3035 = vpop.permute.xlu0 %3034
      %3036 = vrot.lane.b32.xlu0 %v2821, 63
      %v3037 = vpop.permute.xlu0 %3036
      %3038 = vrot.lane.b32.xlu0 %v2822, 63
      %v3039 = vpop.permute.xlu0 %3038
      %3040 = vrot.lane.b32.xlu0 %v2823, 63
      %v3041 = vpop.permute.xlu0 %3040
      %v3042 = vsel %vm461, %v3039, %v3041
      %v3043 = vsel %vm461, %v3037, %v3039
      %v3044 = vsel %vm461, %v3035, %v3037
      %v3045 = vsel %vm461, %v3041, %v3035
      %v3046 = vld [vmem:[%s466] ss:$8 sm:$0xf]
      %v3048 = vlaneseq
      %v3049 = vshrl.u32 %v3048, 7
      %v3050 = vsub.s32 0, %v3049
      %v3051 = vrot.slane %v3046, %v3050
      %v3052 = vlaneseq
      %v3053 = vshrl.u32 %v3052, 7
      %v3054 = vsub.s32 1, %v3053
      %v3055 = vrot.slane %v3046, %v3054
      %v3056 = vlaneseq
      %v3057 = vshrl.u32 %v3056, 7
      %v3058 = vsub.s32 2, %v3057
      %v3059 = vrot.slane %v3046, %v3058
      %v3060 = vlaneseq
      %v3061 = vshrl.u32 %v3060, 7
      %v3062 = vsub.s32 3, %v3061
      %v3063 = vrot.slane %v3046, %v3062
      %v3068 = vmul.f32 %v3045, %v3051
      %v3069 = vmul.f32 %v3044, %v3055
      %v3070 = vmul.f32 %v3043, %v3059
      %v3071 = vmul.f32 %v3042, %v3063
      %3072 = vst [vmem:[#allocation2 + $0xa0] sm:$0xff] %v3068
      %3073 = vst [vmem:[#allocation2 + $0xa8] sm:$0xff] %v3069
      %3074 = vst [vmem:[#allocation2 + $0xb0] sm:$0xff] %v3070
      %3075 = vst [vmem:[#allocation2 + $0xb8] sm:$0xff] %v3071
      %3076 = vrot.lane.b32.xlu0 %v2820, 57
      %v3077 = vpop.permute.xlu0 %3076
      %3078 = vrot.lane.b32.xlu0 %v2821, 57
      %v3079 = vpop.permute.xlu0 %3078
      %3080 = vrot.lane.b32.xlu0 %v2822, 57
      %v3081 = vpop.permute.xlu0 %3080
      %3082 = vrot.lane.b32.xlu0 %v2823, 57
      %v3083 = vpop.permute.xlu0 %3082
      %v3084 = vsel %vm505, %v3081, %v3083
      %v3085 = vsel %vm505, %v3079, %v3081
      %v3086 = vsel %vm505, %v3077, %v3079
      %v3087 = vsel %vm505, %v3083, %v3077
      %v3088 = vld [vmem:[%s510] ss:$8 sm:$0xf]
      %v3090 = vlaneseq
      %v3091 = vshrl.u32 %v3090, 7
      %v3092 = vsub.s32 0, %v3091
      %v3093 = vrot.slane %v3088, %v3092
      %v3094 = vlaneseq
      %v3095 = vshrl.u32 %v3094, 7
      %v3096 = vsub.s32 1, %v3095
      %v3097 = vrot.slane %v3088, %v3096
      %v3098 = vlaneseq
      %v3099 = vshrl.u32 %v3098, 7
      %v3100 = vsub.s32 2, %v3099
      %v3101 = vrot.slane %v3088, %v3100
      %v3102 = vlaneseq
      %v3103 = vshrl.u32 %v3102, 7
      %v3104 = vsub.s32 3, %v3103
      %v3105 = vrot.slane %v3088, %v3104
      %v3110 = vmul.f32 %v3087, %v3093
      %v3111 = vmul.f32 %v3086, %v3097
      %v3112 = vmul.f32 %v3085, %v3101
      %v3113 = vmul.f32 %v3084, %v3105
      %3114 = vst [vmem:[#allocation2 + $0xc0] sm:$0xff] %v3110
      %3115 = vst [vmem:[#allocation2 + $0xc8] sm:$0xff] %v3111
      %3116 = vst [vmem:[#allocation2 + $0xd0] sm:$0xff] %v3112
      %3117 = vst [vmem:[#allocation2 + $0xd8] sm:$0xff] %v3113
      %3118 = vrot.lane.b32.xlu0 %v2820, 56
      %v3119 = vpop.permute.xlu0 %3118
      %3120 = vrot.lane.b32.xlu0 %v2821, 56
      %v3121 = vpop.permute.xlu0 %3120
      %3122 = vrot.lane.b32.xlu0 %v2822, 56
      %v3123 = vpop.permute.xlu0 %3122
      %3124 = vrot.lane.b32.xlu0 %v2823, 56
      %v3125 = vpop.permute.xlu0 %3124
      %v3126 = vsel %vm549, %v3123, %v3125
      %v3127 = vsel %vm549, %v3121, %v3123
      %v3128 = vsel %vm549, %v3119, %v3121
      %v3129 = vsel %vm549, %v3125, %v3119
      %v3130 = vld [vmem:[%s554] ss:$8 sm:$0xf]
      %v3132 = vlaneseq
      %v3133 = vshrl.u32 %v3132, 7
      %v3134 = vsub.s32 0, %v3133
      %v3135 = vrot.slane %v3130, %v3134
      %v3136 = vlaneseq
      %v3137 = vshrl.u32 %v3136, 7
      %v3138 = vsub.s32 1, %v3137
      %v3139 = vrot.slane %v3130, %v3138
      %v3140 = vlaneseq
      %v3141 = vshrl.u32 %v3140, 7
      %v3142 = vsub.s32 2, %v3141
      %v3143 = vrot.slane %v3130, %v3142
      %v3144 = vlaneseq
      %v3145 = vshrl.u32 %v3144, 7
      %v3146 = vsub.s32 3, %v3145
      %v3147 = vrot.slane %v3130, %v3146
      %v3152 = vmul.f32 %v3129, %v3135
      %v3153 = vmul.f32 %v3128, %v3139
      %v3154 = vmul.f32 %v3127, %v3143
      %v3155 = vmul.f32 %v3126, %v3147
      %3156 = vst [vmem:[#allocation2 + $0xe0] sm:$0xff] %v3152
      %3157 = vst [vmem:[#allocation2 + $0xe8] sm:$0xff] %v3153
      %3158 = vst [vmem:[#allocation2 + $0xf0] sm:$0xff] %v3154
      %3159 = vst [vmem:[#allocation2 + $0xf8] sm:$0xff] %v3155
      %3160 = vrot.lane.b32.xlu0 %v2820, 55
      %v3161 = vpop.permute.xlu0 %3160
      %3162 = vrot.lane.b32.xlu0 %v2821, 55
      %v3163 = vpop.permute.xlu0 %3162
      %3164 = vrot.lane.b32.xlu0 %v2822, 55
      %v3165 = vpop.permute.xlu0 %3164
      %3166 = vrot.lane.b32.xlu0 %v2823, 55
      %v3167 = vpop.permute.xlu0 %3166
      %v3168 = vsel %vm593, %v3165, %v3167
      %v3169 = vsel %vm593, %v3163, %v3165
      %v3170 = vsel %vm593, %v3161, %v3163
      %v3171 = vsel %vm593, %v3167, %v3161
      %v3172 = vld [vmem:[%s598] ss:$8 sm:$0xf]
      %v3174 = vlaneseq
      %v3175 = vshrl.u32 %v3174, 7
      %v3176 = vsub.s32 0, %v3175
      %v3177 = vrot.slane %v3172, %v3176
      %v3178 = vlaneseq
      %v3179 = vshrl.u32 %v3178, 7
      %v3180 = vsub.s32 1, %v3179
      %v3181 = vrot.slane %v3172, %v3180
      %v3182 = vlaneseq
      %v3183 = vshrl.u32 %v3182, 7
      %v3184 = vsub.s32 2, %v3183
      %v3185 = vrot.slane %v3172, %v3184
      %v3186 = vlaneseq
      %v3187 = vshrl.u32 %v3186, 7
      %v3188 = vsub.s32 3, %v3187
      %v3189 = vrot.slane %v3172, %v3188
      %v3194 = vmul.f32 %v3171, %v3177
      %v3195 = vmul.f32 %v3170, %v3181
      %v3196 = vmul.f32 %v3169, %v3185
      %v3197 = vmul.f32 %v3168, %v3189
      %3198 = vst [vmem:[#allocation2 + $0x100] sm:$0xff] %v3194
      %3199 = vst [vmem:[#allocation2 + $0x108] sm:$0xff] %v3195
      %3200 = vst [vmem:[#allocation2 + $0x110] sm:$0xff] %v3196
      %3201 = vst [vmem:[#allocation2 + $0x118] sm:$0xff] %v3197
      %3202 = vrot.lane.b32.xlu0 %v2820, 9
      %v3203 = vpop.permute.xlu0 %3202
      %3204 = vrot.lane.b32.xlu0 %v2821, 9
      %v3205 = vpop.permute.xlu0 %3204
      %3206 = vrot.lane.b32.xlu0 %v2822, 9
      %v3207 = vpop.permute.xlu0 %3206
      %3208 = vrot.lane.b32.xlu0 %v2823, 9
      %v3209 = vpop.permute.xlu0 %3208
      %v3210 = vsel %vm637, %v3207, %v3209
      %v3211 = vsel %vm637, %v3205, %v3207
      %v3212 = vsel %vm637, %v3203, %v3205
      %v3213 = vsel %vm637, %v3209, %v3203
      %v3214 = vld [vmem:[%s642] ss:$8 sm:$0xf]
      %v3216 = vlaneseq
      %v3217 = vshrl.u32 %v3216, 7
      %v3218 = vsub.s32 0, %v3217
      %v3219 = vrot.slane %v3214, %v3218
      %v3220 = vlaneseq
      %v3221 = vshrl.u32 %v3220, 7
      %v3222 = vsub.s32 1, %v3221
      %v3223 = vrot.slane %v3214, %v3222
      %v3224 = vlaneseq
      %v3225 = vshrl.u32 %v3224, 7
      %v3226 = vsub.s32 2, %v3225
      %v3227 = vrot.slane %v3214, %v3226
      %v3228 = vlaneseq
      %v3229 = vshrl.u32 %v3228, 7
      %v3230 = vsub.s32 3, %v3229
      %v3231 = vrot.slane %v3214, %v3230
      %v3236 = vmul.f32 %v3213, %v3219
      %v3237 = vmul.f32 %v3212, %v3223
      %v3238 = vmul.f32 %v3211, %v3227
      %v3239 = vmul.f32 %v3210, %v3231
      %3240 = vst [vmem:[#allocation2 + $0x120] sm:$0xff] %v3236
      %3241 = vst [vmem:[#allocation2 + $0x128] sm:$0xff] %v3237
      %3242 = vst [vmem:[#allocation2 + $0x130] sm:$0xff] %v3238
      %3243 = vst [vmem:[#allocation2 + $0x138] sm:$0xff] %v3239
      %3244 = vrot.lane.b32.xlu0 %v2820, 8
      %v3245 = vpop.permute.xlu0 %3244
      %3246 = vrot.lane.b32.xlu0 %v2821, 8
      %v3247 = vpop.permute.xlu0 %3246
      %3248 = vrot.lane.b32.xlu0 %v2822, 8
      %v3249 = vpop.permute.xlu0 %3248
      %3250 = vrot.lane.b32.xlu0 %v2823, 8
      %v3251 = vpop.permute.xlu0 %3250
      %v3252 = vsel %vm681, %v3249, %v3251
      %v3253 = vsel %vm681, %v3247, %v3249
      %v3254 = vsel %vm681, %v3245, %v3247
      %v3255 = vsel %vm681, %v3251, %v3245
      %v3256 = vld [vmem:[%s686] ss:$8 sm:$0xf]
      %v3258 = vlaneseq
      %v3259 = vshrl.u32 %v3258, 7
      %v3260 = vsub.s32 0, %v3259
      %v3261 = vrot.slane %v3256, %v3260
      %v3262 = vlaneseq
      %v3263 = vshrl.u32 %v3262, 7
      %v3264 = vsub.s32 1, %v3263
      %v3265 = vrot.slane %v3256, %v3264
      %v3266 = vlaneseq
      %v3267 = vshrl.u32 %v3266, 7
      %v3268 = vsub.s32 2, %v3267
      %v3269 = vrot.slane %v3256, %v3268
      %v3270 = vlaneseq
      %v3271 = vshrl.u32 %v3270, 7
      %v3272 = vsub.s32 3, %v3271
      %v3273 = vrot.slane %v3256, %v3272
      %v3278 = vmul.f32 %v3255, %v3261
      %v3279 = vmul.f32 %v3254, %v3265
      %v3280 = vmul.f32 %v3253, %v3269
      %v3281 = vmul.f32 %v3252, %v3273
      %3282 = vst [vmem:[#allocation2 + $0x140] sm:$0xff] %v3278
      %3283 = vst [vmem:[#allocation2 + $0x148] sm:$0xff] %v3279
      %3284 = vst [vmem:[#allocation2 + $0x150] sm:$0xff] %v3280
      %3285 = vst [vmem:[#allocation2 + $0x158] sm:$0xff] %v3281
      %3286 = vrot.lane.b32.xlu0 %v2820, 7
      %v3287 = vpop.permute.xlu0 %3286
      %3288 = vrot.lane.b32.xlu0 %v2821, 7
      %v3289 = vpop.permute.xlu0 %3288
      %3290 = vrot.lane.b32.xlu0 %v2822, 7
      %v3291 = vpop.permute.xlu0 %3290
      %3292 = vrot.lane.b32.xlu0 %v2823, 7
      %v3293 = vpop.permute.xlu0 %3292
      %v3294 = vsel %vm725, %v3291, %v3293
      %v3295 = vsel %vm725, %v3289, %v3291
      %v3296 = vsel %vm725, %v3287, %v3289
      %v3297 = vsel %vm725, %v3293, %v3287
      %v3298 = vld [vmem:[%s730] ss:$8 sm:$0xf]
      %v3300 = vlaneseq
      %v3301 = vshrl.u32 %v3300, 7
      %v3302 = vsub.s32 0, %v3301
      %v3303 = vrot.slane %v3298, %v3302
      %v3304 = vlaneseq
      %v3305 = vshrl.u32 %v3304, 7
      %v3306 = vsub.s32 1, %v3305
      %v3307 = vrot.slane %v3298, %v3306
      %v3308 = vlaneseq
      %v3309 = vshrl.u32 %v3308, 7
      %v3310 = vsub.s32 2, %v3309
      %v3311 = vrot.slane %v3298, %v3310
      %v3312 = vlaneseq
      %v3313 = vshrl.u32 %v3312, 7
      %v3314 = vsub.s32 3, %v3313
      %v3315 = vrot.slane %v3298, %v3314
      %v3320 = vmul.f32 %v3297, %v3303
      %v3321 = vmul.f32 %v3296, %v3307
      %v3322 = vmul.f32 %v3295, %v3311
      %v3323 = vmul.f32 %v3294, %v3315
      %3324 = vst [vmem:[#allocation2 + $0x160] sm:$0xff] %v3320
      %3325 = vst [vmem:[#allocation2 + $0x168] sm:$0xff] %v3321
      %3326 = vst [vmem:[#allocation2 + $0x170] sm:$0xff] %v3322
      %3327 = vst [vmem:[#allocation2 + $0x178] sm:$0xff] %v3323
      %3328 = vrot.lane.b32.xlu0 %v2820, 1
      %v3329 = vpop.permute.xlu0 %3328
      %3330 = vrot.lane.b32.xlu0 %v2821, 1
      %v3331 = vpop.permute.xlu0 %3330
      %3332 = vrot.lane.b32.xlu0 %v2822, 1
      %v3333 = vpop.permute.xlu0 %3332
      %3334 = vrot.lane.b32.xlu0 %v2823, 1
      %v3335 = vpop.permute.xlu0 %3334
      %v3336 = vsel %vm769, %v3333, %v3335
      %v3337 = vsel %vm769, %v3331, %v3333
      %v3338 = vsel %vm769, %v3329, %v3331
      %v3339 = vsel %vm769, %v3335, %v3329
      %v3340 = vld [vmem:[%s774] ss:$8 sm:$0xf]
      %v3342 = vlaneseq
      %v3343 = vshrl.u32 %v3342, 7
      %v3344 = vsub.s32 0, %v3343
      %v3345 = vrot.slane %v3340, %v3344
      %v3346 = vlaneseq
      %v3347 = vshrl.u32 %v3346, 7
      %v3348 = vsub.s32 1, %v3347
      %v3349 = vrot.slane %v3340, %v3348
      %v3350 = vlaneseq
      %v3351 = vshrl.u32 %v3350, 7
      %v3352 = vsub.s32 2, %v3351
      %v3353 = vrot.slane %v3340, %v3352
      %v3354 = vlaneseq
      %v3355 = vshrl.u32 %v3354, 7
      %v3356 = vsub.s32 3, %v3355
      %v3357 = vrot.slane %v3340, %v3356
      %v3362 = vmul.f32 %v3339, %v3345
      %v3363 = vmul.f32 %v3338, %v3349
      %v3364 = vmul.f32 %v3337, %v3353
      %v3365 = vmul.f32 %v3336, %v3357
      %3366 = vst [vmem:[#allocation2 + $0x180] sm:$0xff] %v3362
      %3367 = vst [vmem:[#allocation2 + $0x188] sm:$0xff] %v3363
      %3368 = vst [vmem:[#allocation2 + $0x190] sm:$0xff] %v3364
      %3369 = vst [vmem:[#allocation2 + $0x198] sm:$0xff] %v3365
      %3370 = vst [vmem:[#allocation2 + $0x1a0] sm:$0xff] %v2820
      %3371 = vst [vmem:[#allocation2 + $0x1a8] sm:$0xff] %v2821
      %3372 = vst [vmem:[#allocation2 + $0x1b0] sm:$0xff] %v2822
      %3373 = vst [vmem:[#allocation2 + $0x1b8] sm:$0xff] %v2823
      %3374 = vrot.lane.b32.xlu0 %v2820, 127
      %v3375 = vpop.permute.xlu0 %3374
      %3376 = vrot.lane.b32.xlu0 %v2821, 127
      %v3377 = vpop.permute.xlu0 %3376
      %3378 = vrot.lane.b32.xlu0 %v2822, 127
      %v3379 = vpop.permute.xlu0 %3378
      %3380 = vrot.lane.b32.xlu0 %v2823, 127
      %v3381 = vpop.permute.xlu0 %3380
      %v3382 = vsel %vm817, %v3379, %v3381
      %v3383 = vsel %vm817, %v3377, %v3379
      %v3384 = vsel %vm817, %v3375, %v3377
      %v3385 = vsel %vm817, %v3381, %v3375
      %v3386 = vld [vmem:[%s822] ss:$8 sm:$0xf]
      %v3388 = vlaneseq
      %v3389 = vshrl.u32 %v3388, 7
      %v3390 = vsub.s32 0, %v3389
      %v3391 = vrot.slane %v3386, %v3390
      %v3392 = vlaneseq
      %v3393 = vshrl.u32 %v3392, 7
      %v3394 = vsub.s32 1, %v3393
      %v3395 = vrot.slane %v3386, %v3394
      %v3396 = vlaneseq
      %v3397 = vshrl.u32 %v3396, 7
      %v3398 = vsub.s32 2, %v3397
      %v3399 = vrot.slane %v3386, %v3398
      %v3400 = vlaneseq
      %v3401 = vshrl.u32 %v3400, 7
      %v3402 = vsub.s32 3, %v3401
      %v3403 = vrot.slane %v3386, %v3402
      %v3408 = vmul.f32 %v3384, %v3391
      %v3409 = vmul.f32 %v3383, %v3395
      %v3410 = vmul.f32 %v3382, %v3399
      %v3411 = vmul.f32 %v3385, %v3403
      %3412 = vst [vmem:[#allocation2 + $0x1c0] sm:$0xff] %v3408
      %3413 = vst [vmem:[#allocation2 + $0x1c8] sm:$0xff] %v3409
      %3414 = vst [vmem:[#allocation2 + $0x1d0] sm:$0xff] %v3410
      %3415 = vst [vmem:[#allocation2 + $0x1d8] sm:$0xff] %v3411
      %3416 = vrot.lane.b32.xlu0 %v2820, 121
      %v3417 = vpop.permute.xlu0 %3416
      %3418 = vrot.lane.b32.xlu0 %v2821, 121
      %v3419 = vpop.permute.xlu0 %3418
      %3420 = vrot.lane.b32.xlu0 %v2822, 121
      %v3421 = vpop.permute.xlu0 %3420
      %3422 = vrot.lane.b32.xlu0 %v2823, 121
      %v3423 = vpop.permute.xlu0 %3422
      %v3424 = vsel %vm861, %v3421, %v3423
      %v3425 = vsel %vm861, %v3419, %v3421
      %v3426 = vsel %vm861, %v3417, %v3419
      %v3427 = vsel %vm861, %v3423, %v3417
      %v3428 = vld [vmem:[%s866] ss:$8 sm:$0xf]
      %v3430 = vlaneseq
      %v3431 = vshrl.u32 %v3430, 7
      %v3432 = vsub.s32 0, %v3431
      %v3433 = vrot.slane %v3428, %v3432
      %v3434 = vlaneseq
      %v3435 = vshrl.u32 %v3434, 7
      %v3436 = vsub.s32 1, %v3435
      %v3437 = vrot.slane %v3428, %v3436
      %v3438 = vlaneseq
      %v3439 = vshrl.u32 %v3438, 7
      %v3440 = vsub.s32 2, %v3439
      %v3441 = vrot.slane %v3428, %v3440
      %v3442 = vlaneseq
      %v3443 = vshrl.u32 %v3442, 7
      %v3444 = vsub.s32 3, %v3443
      %v3445 = vrot.slane %v3428, %v3444
      %v3450 = vmul.f32 %v3426, %v3433
      %v3451 = vmul.f32 %v3425, %v3437
      %v3452 = vmul.f32 %v3424, %v3441
      %v3453 = vmul.f32 %v3427, %v3445
      %3454 = vst [vmem:[#allocation2 + $0x1e0] sm:$0xff] %v3450
      %3455 = vst [vmem:[#allocation2 + $0x1e8] sm:$0xff] %v3451
      %3456 = vst [vmem:[#allocation2 + $0x1f0] sm:$0xff] %v3452
      %3457 = vst [vmem:[#allocation2 + $0x1f8] sm:$0xff] %v3453
      %3458 = vrot.lane.b32.xlu0 %v2820, 120
      %v3459 = vpop.permute.xlu0 %3458
      %3460 = vrot.lane.b32.xlu0 %v2821, 120
      %v3461 = vpop.permute.xlu0 %3460
      %3462 = vrot.lane.b32.xlu0 %v2822, 120
      %v3463 = vpop.permute.xlu0 %3462
      %3464 = vrot.lane.b32.xlu0 %v2823, 120
      %v3465 = vpop.permute.xlu0 %3464
      %v3466 = vsel %vm905, %v3463, %v3465
      %v3467 = vsel %vm905, %v3461, %v3463
      %v3468 = vsel %vm905, %v3459, %v3461
      %v3469 = vsel %vm905, %v3465, %v3459
      %v3470 = vld [vmem:[%s910] ss:$8 sm:$0xf]
      %v3472 = vlaneseq
      %v3473 = vshrl.u32 %v3472, 7
      %v3474 = vsub.s32 0, %v3473
      %v3475 = vrot.slane %v3470, %v3474
      %v3476 = vlaneseq
      %v3477 = vshrl.u32 %v3476, 7
      %v3478 = vsub.s32 1, %v3477
      %v3479 = vrot.slane %v3470, %v3478
      %v3480 = vlaneseq
      %v3481 = vshrl.u32 %v3480, 7
      %v3482 = vsub.s32 2, %v3481
      %v3483 = vrot.slane %v3470, %v3482
      %v3484 = vlaneseq
      %v3485 = vshrl.u32 %v3484, 7
      %v3486 = vsub.s32 3, %v3485
      %v3487 = vrot.slane %v3470, %v3486
      %v3492 = vmul.f32 %v3468, %v3475
      %v3493 = vmul.f32 %v3467, %v3479
      %v3494 = vmul.f32 %v3466, %v3483
      %v3495 = vmul.f32 %v3469, %v3487
      %3496 = vst [vmem:[#allocation2 + $0x200] sm:$0xff] %v3492
      %3497 = vst [vmem:[#allocation2 + $0x208] sm:$0xff] %v3493
      %3498 = vst [vmem:[#allocation2 + $0x210] sm:$0xff] %v3494
      %3499 = vst [vmem:[#allocation2 + $0x218] sm:$0xff] %v3495
      %3500 = vrot.lane.b32.xlu0 %v2820, 119
      %v3501 = vpop.permute.xlu0 %3500
      %3502 = vrot.lane.b32.xlu0 %v2821, 119
      %v3503 = vpop.permute.xlu0 %3502
      %3504 = vrot.lane.b32.xlu0 %v2822, 119
      %v3505 = vpop.permute.xlu0 %3504
      %3506 = vrot.lane.b32.xlu0 %v2823, 119
      %v3507 = vpop.permute.xlu0 %3506
      %v3508 = vsel %vm949, %v3505, %v3507
      %v3509 = vsel %vm949, %v3503, %v3505
      %v3510 = vsel %vm949, %v3501, %v3503
      %v3511 = vsel %vm949, %v3507, %v3501
      %v3512 = vld [vmem:[%s954] ss:$8 sm:$0xf]
      %v3514 = vlaneseq
      %v3515 = vshrl.u32 %v3514, 7
      %v3516 = vsub.s32 0, %v3515
      %v3517 = vrot.slane %v3512, %v3516
      %v3518 = vlaneseq
      %v3519 = vshrl.u32 %v3518, 7
      %v3520 = vsub.s32 1, %v3519
      %v3521 = vrot.slane %v3512, %v3520
      %v3522 = vlaneseq
      %v3523 = vshrl.u32 %v3522, 7
      %v3524 = vsub.s32 2, %v3523
      %v3525 = vrot.slane %v3512, %v3524
      %v3526 = vlaneseq
      %v3527 = vshrl.u32 %v3526, 7
      %v3528 = vsub.s32 3, %v3527
      %v3529 = vrot.slane %v3512, %v3528
      %v3534 = vmul.f32 %v3510, %v3517
      %v3535 = vmul.f32 %v3509, %v3521
      %v3536 = vmul.f32 %v3508, %v3525
      %v3537 = vmul.f32 %v3511, %v3529
      %3538 = vst [vmem:[#allocation2 + $0x220] sm:$0xff] %v3534
      %3539 = vst [vmem:[#allocation2 + $0x228] sm:$0xff] %v3535
      %3540 = vst [vmem:[#allocation2 + $0x230] sm:$0xff] %v3536
      %3541 = vst [vmem:[#allocation2 + $0x238] sm:$0xff] %v3537
      %v3542 = vld [vmem:[%s985] ss:$8 sm:$0xf]
      %v3544 = vlaneseq
      %v3545 = vshrl.u32 %v3544, 7
      %v3546 = vsub.s32 0, %v3545
      %v3547 = vrot.slane %v3542, %v3546
      %v3548 = vlaneseq
      %v3549 = vshrl.u32 %v3548, 7
      %v3550 = vsub.s32 1, %v3549
      %v3551 = vrot.slane %v3542, %v3550
      %v3552 = vlaneseq
      %v3553 = vshrl.u32 %v3552, 7
      %v3554 = vsub.s32 2, %v3553
      %v3555 = vrot.slane %v3542, %v3554
      %v3556 = vlaneseq
      %v3557 = vshrl.u32 %v3556, 7
      %v3558 = vsub.s32 3, %v3557
      %v3559 = vrot.slane %v3542, %v3558
      %v3564 = vmul.f32 %v2834, %v3547
      %v3565 = vmul.f32 %v2833, %v3551
      %v3566 = vmul.f32 %v2832, %v3555
      %v3567 = vmul.f32 %v2835, %v3559
      %3568 = vst [vmem:[#allocation2 + $0x240] sm:$0xff] %v3564
      %3569 = vst [vmem:[#allocation2 + $0x248] sm:$0xff] %v3565
      %3570 = vst [vmem:[#allocation2 + $0x250] sm:$0xff] %v3566
      %3571 = vst [vmem:[#allocation2 + $0x258] sm:$0xff] %v3567
      %v3572 = vld [vmem:[%s1016] ss:$8 sm:$0xf]
      %v3574 = vlaneseq
      %v3575 = vshrl.u32 %v3574, 7
      %v3576 = vsub.s32 0, %v3575
      %v3577 = vrot.slane %v3572, %v3576
      %v3578 = vlaneseq
      %v3579 = vshrl.u32 %v3578, 7
      %v3580 = vsub.s32 1, %v3579
      %v3581 = vrot.slane %v3572, %v3580
      %v3582 = vlaneseq
      %v3583 = vshrl.u32 %v3582, 7
      %v3584 = vsub.s32 2, %v3583
      %v3585 = vrot.slane %v3572, %v3584
      %v3586 = vlaneseq
      %v3587 = vshrl.u32 %v3586, 7
      %v3588 = vsub.s32 3, %v3587
      %v3589 = vrot.slane %v3572, %v3588
      %v3594 = vmul.f32 %v2876, %v3577
      %v3595 = vmul.f32 %v2875, %v3581
      %v3596 = vmul.f32 %v2874, %v3585
      %v3597 = vmul.f32 %v2877, %v3589
      %3598 = vst [vmem:[#allocation2 + $0x260] sm:$0xff] %v3594
      %3599 = vst [vmem:[#allocation2 + $0x268] sm:$0xff] %v3595
      %3600 = vst [vmem:[#allocation2 + $0x270] sm:$0xff] %v3596
      %3601 = vst [vmem:[#allocation2 + $0x278] sm:$0xff] %v3597
      %v3602 = vld [vmem:[%s1047] ss:$8 sm:$0xf]
      %v3604 = vlaneseq
      %v3605 = vshrl.u32 %v3604, 7
      %v3606 = vsub.s32 0, %v3605
      %v3607 = vrot.slane %v3602, %v3606
      %v3608 = vlaneseq
      %v3609 = vshrl.u32 %v3608, 7
      %v3610 = vsub.s32 1, %v3609
      %v3611 = vrot.slane %v3602, %v3610
      %v3612 = vlaneseq
      %v3613 = vshrl.u32 %v3612, 7
      %v3614 = vsub.s32 2, %v3613
      %v3615 = vrot.slane %v3602, %v3614
      %v3616 = vlaneseq
      %v3617 = vshrl.u32 %v3616, 7
      %v3618 = vsub.s32 3, %v3617
      %v3619 = vrot.slane %v3602, %v3618
      %v3624 = vmul.f32 %v2918, %v3607
      %v3625 = vmul.f32 %v2917, %v3611
      %v3626 = vmul.f32 %v2916, %v3615
      %v3627 = vmul.f32 %v2919, %v3619
      %3628 = vst [vmem:[#allocation2 + $0x280] sm:$0xff] %v3624
      %3629 = vst [vmem:[#allocation2 + $0x288] sm:$0xff] %v3625
      %3630 = vst [vmem:[#allocation2 + $0x290] sm:$0xff] %v3626
      %3631 = vst [vmem:[#allocation2 + $0x298] sm:$0xff] %v3627
      %v3632 = vld [vmem:[%s1078] ss:$8 sm:$0xf]
      %v3634 = vlaneseq
      %v3635 = vshrl.u32 %v3634, 7
      %v3636 = vsub.s32 0, %v3635
      %v3637 = vrot.slane %v3632, %v3636
      %v3638 = vlaneseq
      %v3639 = vshrl.u32 %v3638, 7
      %v3640 = vsub.s32 1, %v3639
      %v3641 = vrot.slane %v3632, %v3640
      %v3642 = vlaneseq
      %v3643 = vshrl.u32 %v3642, 7
      %v3644 = vsub.s32 2, %v3643
      %v3645 = vrot.slane %v3632, %v3644
      %v3646 = vlaneseq
      %v3647 = vshrl.u32 %v3646, 7
      %v3648 = vsub.s32 3, %v3647
      %v3649 = vrot.slane %v3632, %v3648
      %v3654 = vmul.f32 %v2960, %v3637
      %v3655 = vmul.f32 %v2959, %v3641
      %v3656 = vmul.f32 %v2958, %v3645
      %v3657 = vmul.f32 %v2961, %v3649
      %3658 = vst [vmem:[#allocation2 + $0x2a0] sm:$0xff] %v3654
      %3659 = vst [vmem:[#allocation2 + $0x2a8] sm:$0xff] %v3655
      %3660 = vst [vmem:[#allocation2 + $0x2b0] sm:$0xff] %v3656
      %3661 = vst [vmem:[#allocation2 + $0x2b8] sm:$0xff] %v3657
      %v3662 = vld [vmem:[%s1109] ss:$8 sm:$0xf]
      %v3664 = vlaneseq
      %v3665 = vshrl.u32 %v3664, 7
      %v3666 = vsub.s32 0, %v3665
      %v3667 = vrot.slane %v3662, %v3666
      %v3668 = vlaneseq
      %v3669 = vshrl.u32 %v3668, 7
      %v3670 = vsub.s32 1, %v3669
      %v3671 = vrot.slane %v3662, %v3670
      %v3672 = vlaneseq
      %v3673 = vshrl.u32 %v3672, 7
      %v3674 = vsub.s32 2, %v3673
      %v3675 = vrot.slane %v3662, %v3674
      %v3676 = vlaneseq
      %v3677 = vshrl.u32 %v3676, 7
      %v3678 = vsub.s32 3, %v3677
      %v3679 = vrot.slane %v3662, %v3678
      %v3684 = vmul.f32 %v3002, %v3667
      %v3685 = vmul.f32 %v3001, %v3671
      %v3686 = vmul.f32 %v3000, %v3675
      %v3687 = vmul.f32 %v3003, %v3679
      %3688 = vst [vmem:[#allocation2 + $0x2c0] sm:$0xff] %v3684
      %3689 = vst [vmem:[#allocation2 + $0x2c8] sm:$0xff] %v3685
      %3690 = vst [vmem:[#allocation2 + $0x2d0] sm:$0xff] %v3686
      %3691 = vst [vmem:[#allocation2 + $0x2d8] sm:$0xff] %v3687
      %v3692 = vld [vmem:[%s1140] ss:$8 sm:$0xf]
      %v3694 = vlaneseq
      %v3695 = vshrl.u32 %v3694, 7
      %v3696 = vsub.s32 0, %v3695
      %v3697 = vrot.slane %v3692, %v3696
      %v3698 = vlaneseq
      %v3699 = vshrl.u32 %v3698, 7
      %v3700 = vsub.s32 1, %v3699
      %v3701 = vrot.slane %v3692, %v3700
      %v3702 = vlaneseq
      %v3703 = vshrl.u32 %v3702, 7
      %v3704 = vsub.s32 2, %v3703
      %v3705 = vrot.slane %v3692, %v3704
      %v3706 = vlaneseq
      %v3707 = vshrl.u32 %v3706, 7
      %v3708 = vsub.s32 3, %v3707
      %v3709 = vrot.slane %v3692, %v3708
      %v3714 = vmul.f32 %v3044, %v3697
      %v3715 = vmul.f32 %v3043, %v3701
      %v3716 = vmul.f32 %v3042, %v3705
      %v3717 = vmul.f32 %v3045, %v3709
      %3718 = vst [vmem:[#allocation2 + $0x2e0] sm:$0xff] %v3714
      %3719 = vst [vmem:[#allocation2 + $0x2e8] sm:$0xff] %v3715
      %3720 = vst [vmem:[#allocation2 + $0x2f0] sm:$0xff] %v3716
      %3721 = vst [vmem:[#allocation2 + $0x2f8] sm:$0xff] %v3717
      %v3722 = vld [vmem:[%s1171] ss:$8 sm:$0xf]
      %v3724 = vlaneseq
      %v3725 = vshrl.u32 %v3724, 7
      %v3726 = vsub.s32 0, %v3725
      %v3727 = vrot.slane %v3722, %v3726
      %v3728 = vlaneseq
      %v3729 = vshrl.u32 %v3728, 7
      %v3730 = vsub.s32 1, %v3729
      %v3731 = vrot.slane %v3722, %v3730
      %v3732 = vlaneseq
      %v3733 = vshrl.u32 %v3732, 7
      %v3734 = vsub.s32 2, %v3733
      %v3735 = vrot.slane %v3722, %v3734
      %v3736 = vlaneseq
      %v3737 = vshrl.u32 %v3736, 7
      %v3738 = vsub.s32 3, %v3737
      %v3739 = vrot.slane %v3722, %v3738
      %v3744 = vmul.f32 %v3086, %v3727
      %v3745 = vmul.f32 %v3085, %v3731
      %v3746 = vmul.f32 %v3084, %v3735
      %v3747 = vmul.f32 %v3087, %v3739
      %3748 = vst [vmem:[#allocation2 + $0x300] sm:$0xff] %v3744
      %3749 = vst [vmem:[#allocation2 + $0x308] sm:$0xff] %v3745
      %3750 = vst [vmem:[#allocation2 + $0x310] sm:$0xff] %v3746
      %3751 = vst [vmem:[#allocation2 + $0x318] sm:$0xff] %v3747
      %v3752 = vld [vmem:[%s1202] ss:$8 sm:$0xf]
      %v3754 = vlaneseq
      %v3755 = vshrl.u32 %v3754, 7
      %v3756 = vsub.s32 0, %v3755
      %v3757 = vrot.slane %v3752, %v3756
      %v3758 = vlaneseq
      %v3759 = vshrl.u32 %v3758, 7
      %v3760 = vsub.s32 1, %v3759
      %v3761 = vrot.slane %v3752, %v3760
      %v3762 = vlaneseq
      %v3763 = vshrl.u32 %v3762, 7
      %v3764 = vsub.s32 2, %v3763
      %v3765 = vrot.slane %v3752, %v3764
      %v3766 = vlaneseq
      %v3767 = vshrl.u32 %v3766, 7
      %v3768 = vsub.s32 3, %v3767
      %v3769 = vrot.slane %v3752, %v3768
      %v3774 = vmul.f32 %v3128, %v3757
      %v3775 = vmul.f32 %v3127, %v3761
      %v3776 = vmul.f32 %v3126, %v3765
      %v3777 = vmul.f32 %v3129, %v3769
      %3778 = vst [vmem:[#allocation2 + $0x320] sm:$0xff] %v3774
      %3779 = vst [vmem:[#allocation2 + $0x328] sm:$0xff] %v3775
      %3780 = vst [vmem:[#allocation2 + $0x330] sm:$0xff] %v3776
      %3781 = vst [vmem:[#allocation2 + $0x338] sm:$0xff] %v3777
      %v3782 = vld [vmem:[%s1233] ss:$8 sm:$0xf]
      %v3784 = vlaneseq
      %v3785 = vshrl.u32 %v3784, 7
      %v3786 = vsub.s32 0, %v3785
      %v3787 = vrot.slane %v3782, %v3786
      %v3788 = vlaneseq
      %v3789 = vshrl.u32 %v3788, 7
      %v3790 = vsub.s32 1, %v3789
      %v3791 = vrot.slane %v3782, %v3790
      %v3792 = vlaneseq
      %v3793 = vshrl.u32 %v3792, 7
      %v3794 = vsub.s32 2, %v3793
      %v3795 = vrot.slane %v3782, %v3794
      %v3796 = vlaneseq
      %v3797 = vshrl.u32 %v3796, 7
      %v3798 = vsub.s32 3, %v3797
      %v3799 = vrot.slane %v3782, %v3798
      %v3804 = vmul.f32 %v3170, %v3787
      %v3805 = vmul.f32 %v3169, %v3791
      %v3806 = vmul.f32 %v3168, %v3795
      %v3807 = vmul.f32 %v3171, %v3799
      %3808 = vst [vmem:[#allocation2 + $0x340] sm:$0xff] %v3804
      %3809 = vst [vmem:[#allocation2 + $0x348] sm:$0xff] %v3805
      %3810 = vst [vmem:[#allocation2 + $0x350] sm:$0xff] %v3806
      %3811 = vst [vmem:[#allocation2 + $0x358] sm:$0xff] %v3807
      %s3812 = scalar_lea.vmem %s1, 32
      %v3813 = vld [vmem:[%s3812] sm:$0xff]
      %v3814 = vld [vmem:[%s3812 + $0x8] sm:$0xff]
      %v3815 = vld [vmem:[#allocation2] sm:$0xff]
      %v3816 = vld [vmem:[#allocation2 + $0x8] sm:$0xff]
      %v3817 = vld [vmem:[#allocation2 + $0x10] sm:$0xff]
      %v3818 = vld [vmem:[#allocation2 + $0x18] sm:$0xff]
      %v3819 = vld [vmem:[#allocation2 + $0x20] sm:$0xff]
      %v3820 = vld [vmem:[#allocation2 + $0x28] sm:$0xff]
      %v3821 = vld [vmem:[#allocation2 + $0x30] sm:$0xff]
      %v3822 = vld [vmem:[#allocation2 + $0x38] sm:$0xff]
      %v3823 = vld [vmem:[#allocation2 + $0x40] sm:$0xff]
      %v3824 = vld [vmem:[#allocation2 + $0x48] sm:$0xff]
      %v3825 = vld [vmem:[#allocation2 + $0x50] sm:$0xff]
      %v3826 = vld [vmem:[#allocation2 + $0x58] sm:$0xff]
      %v3827 = vld [vmem:[#allocation2 + $0x60] sm:$0xff]
      %v3828 = vld [vmem:[#allocation2 + $0x68] sm:$0xff]
      %v3829 = vld [vmem:[#allocation2 + $0x70] sm:$0xff]
      %v3830 = vld [vmem:[#allocation2 + $0x78] sm:$0xff]
      %v3831 = vld [vmem:[#allocation2 + $0x80] sm:$0xff]
      %v3832 = vld [vmem:[#allocation2 + $0x88] sm:$0xff]
      %v3833 = vld [vmem:[#allocation2 + $0x90] sm:$0xff]
      %v3834 = vld [vmem:[#allocation2 + $0x98] sm:$0xff]
      %v3835 = vld [vmem:[#allocation2 + $0xa0] sm:$0xff]
      %v3836 = vld [vmem:[#allocation2 + $0xa8] sm:$0xff]
      %v3837 = vld [vmem:[#allocation2 + $0xb0] sm:$0xff]
      %v3838 = vld [vmem:[#allocation2 + $0xb8] sm:$0xff]
      %v3839 = vld [vmem:[#allocation2 + $0xc0] sm:$0xff]
      %v3840 = vld [vmem:[#allocation2 + $0xc8] sm:$0xff]
      %v3841 = vld [vmem:[#allocation2 + $0xd0] sm:$0xff]
      %v3842 = vld [vmem:[#allocation2 + $0xd8] sm:$0xff]
      %v3843 = vld [vmem:[#allocation2 + $0xe0] sm:$0xff]
      %v3844 = vld [vmem:[#allocation2 + $0xe8] sm:$0xff]
      %v3845 = vld [vmem:[#allocation2 + $0xf0] sm:$0xff]
      %v3846 = vld [vmem:[#allocation2 + $0xf8] sm:$0xff]
      %v3847 = vld [vmem:[#allocation2 + $0x100] sm:$0xff]
      %v3848 = vld [vmem:[#allocation2 + $0x108] sm:$0xff]
      %v3849 = vld [vmem:[#allocation2 + $0x110] sm:$0xff]
      %v3850 = vld [vmem:[#allocation2 + $0x118] sm:$0xff]
      %v3851 = vld [vmem:[#allocation2 + $0x120] sm:$0xff]
      %v3852 = vld [vmem:[#allocation2 + $0x128] sm:$0xff]
      %v3853 = vld [vmem:[#allocation2 + $0x130] sm:$0xff]
      %v3854 = vld [vmem:[#allocation2 + $0x138] sm:$0xff]
      %v3855 = vld [vmem:[#allocation2 + $0x140] sm:$0xff]
      %v3856 = vld [vmem:[#allocation2 + $0x148] sm:$0xff]
      %v3857 = vld [vmem:[#allocation2 + $0x150] sm:$0xff]
      %v3858 = vld [vmem:[#allocation2 + $0x158] sm:$0xff]
      %v3859 = vld [vmem:[#allocation2 + $0x160] sm:$0xff]
      %v3860 = vld [vmem:[#allocation2 + $0x168] sm:$0xff]
      %v3861 = vld [vmem:[#allocation2 + $0x170] sm:$0xff]
      %v3862 = vld [vmem:[#allocation2 + $0x178] sm:$0xff]
      %v3863 = vld [vmem:[#allocation2 + $0x180] sm:$0xff]
      %v3864 = vld [vmem:[#allocation2 + $0x188] sm:$0xff]
      %v3865 = vld [vmem:[#allocation2 + $0x190] sm:$0xff]
      %v3866 = vld [vmem:[#allocation2 + $0x198] sm:$0xff]
      %v3867 = vld [vmem:[#allocation2 + $0x1a0] sm:$0xff]
      %v3868 = vld [vmem:[#allocation2 + $0x1a8] sm:$0xff]
      %v3869 = vld [vmem:[#allocation2 + $0x1b0] sm:$0xff]
      %v3870 = vld [vmem:[#allocation2 + $0x1b8] sm:$0xff]
      %v3871 = vld [vmem:[#allocation2 + $0x1c0] sm:$0xff]
      %v3872 = vld [vmem:[#allocation2 + $0x1c8] sm:$0xff]
      %v3873 = vld [vmem:[#allocation2 + $0x1d0] sm:$0xff]
      %v3874 = vld [vmem:[#allocation2 + $0x1d8] sm:$0xff]
      %v3875 = vld [vmem:[#allocation2 + $0x1e0] sm:$0xff]
      %v3876 = vld [vmem:[#allocation2 + $0x1e8] sm:$0xff]
      %v3877 = vld [vmem:[#allocation2 + $0x1f0] sm:$0xff]
      %v3878 = vld [vmem:[#allocation2 + $0x1f8] sm:$0xff]
      %v3879 = vld [vmem:[#allocation2 + $0x200] sm:$0xff]
      %v3880 = vld [vmem:[#allocation2 + $0x208] sm:$0xff]
      %v3881 = vld [vmem:[#allocation2 + $0x210] sm:$0xff]
      %v3882 = vld [vmem:[#allocation2 + $0x218] sm:$0xff]
      %v3883 = vld [vmem:[#allocation2 + $0x220] sm:$0xff]
      %v3884 = vld [vmem:[#allocation2 + $0x228] sm:$0xff]
      %v3885 = vld [vmem:[#allocation2 + $0x230] sm:$0xff]
      %v3886 = vld [vmem:[#allocation2 + $0x238] sm:$0xff]
      %v3887 = vld [vmem:[#allocation2 + $0x240] sm:$0xff]
      %v3888 = vld [vmem:[#allocation2 + $0x248] sm:$0xff]
      %v3889 = vld [vmem:[#allocation2 + $0x250] sm:$0xff]
      %v3890 = vld [vmem:[#allocation2 + $0x258] sm:$0xff]
      %v3891 = vld [vmem:[#allocation2 + $0x260] sm:$0xff]
      %v3892 = vld [vmem:[#allocation2 + $0x268] sm:$0xff]
      %v3893 = vld [vmem:[#allocation2 + $0x270] sm:$0xff]
      %v3894 = vld [vmem:[#allocation2 + $0x278] sm:$0xff]
      %v3895 = vld [vmem:[#allocation2 + $0x280] sm:$0xff]
      %v3896 = vld [vmem:[#allocation2 + $0x288] sm:$0xff]
      %v3897 = vld [vmem:[#allocation2 + $0x290] sm:$0xff]
      %v3898 = vld [vmem:[#allocation2 + $0x298] sm:$0xff]
      %v3899 = vld [vmem:[#allocation2 + $0x2a0] sm:$0xff]
      %v3900 = vld [vmem:[#allocation2 + $0x2a8] sm:$0xff]
      %v3901 = vld [vmem:[#allocation2 + $0x2b0] sm:$0xff]
      %v3902 = vld [vmem:[#allocation2 + $0x2b8] sm:$0xff]
      %v3903 = vld [vmem:[#allocation2 + $0x2c0] sm:$0xff]
      %v3904 = vld [vmem:[#allocation2 + $0x2c8] sm:$0xff]
      %v3905 = vld [vmem:[#allocation2 + $0x2d0] sm:$0xff]
      %v3906 = vld [vmem:[#allocation2 + $0x2d8] sm:$0xff]
      %v3907 = vld [vmem:[#allocation2 + $0x2e0] sm:$0xff]
      %v3908 = vld [vmem:[#allocation2 + $0x2e8] sm:$0xff]
      %v3909 = vld [vmem:[#allocation2 + $0x2f0] sm:$0xff]
      %v3910 = vld [vmem:[#allocation2 + $0x2f8] sm:$0xff]
      %v3911 = vld [vmem:[#allocation2 + $0x300] sm:$0xff]
      %v3912 = vld [vmem:[#allocation2 + $0x308] sm:$0xff]
      %v3913 = vld [vmem:[#allocation2 + $0x310] sm:$0xff]
      %v3914 = vld [vmem:[#allocation2 + $0x318] sm:$0xff]
      %v3915 = vld [vmem:[#allocation2 + $0x320] sm:$0xff]
      %v3916 = vld [vmem:[#allocation2 + $0x328] sm:$0xff]
      %v3917 = vld [vmem:[#allocation2 + $0x330] sm:$0xff]
      %v3918 = vld [vmem:[#allocation2 + $0x338] sm:$0xff]
      %v3919 = vld [vmem:[#allocation2 + $0x340] sm:$0xff]
      %v3920 = vld [vmem:[#allocation2 + $0x348] sm:$0xff]
      %v3921 = vld [vmem:[#allocation2 + $0x350] sm:$0xff]
      %v3922 = vld [vmem:[#allocation2 + $0x358] sm:$0xff]
      %v3923 = vld [vmem:[#allocation2 + $0x360] sm:$0xff]
      %v3924 = vld [vmem:[#allocation2 + $0x368] sm:$0xff]
      %v3925 = vld [vmem:[#allocation2 + $0x370] sm:$0xff]
      %v3926 = vld [vmem:[#allocation2 + $0x378] sm:$0xff]
      %v3928 = vsel %vm1378, %v3814, 0
      %3930 = vmatprep.subr.mxu0 %v3876
      %3931 = vmatpush1.msra.mxu0 %v3875
      %3932 = vmatprep.subr.mxu0 %v3872
      %3933 = vmatpush1.msra.mxu0 %v3871
      %3934 = vmatprep.subr.mxu0 %v3868
      %3935 = vmatpush1.msra.mxu0 %v3867
      %3936 = vmatprep.subr.mxu0 %v3864
      %3937 = vmatpush1.msra.mxu0 %v3863
      %3938 = vmatprep.subr.mxu0 %v3860
      %3939 = vmatpush1.msra.mxu0 %v3859
      %3940 = vmatprep.subr.mxu0 %v3856
      %3941 = vmatpush1.msra.mxu0 %v3855
      %3942 = vmatprep.subr.mxu0 %v3852
      %3943 = vmatpush1.msra.mxu0 %v3851
      %3944 = vmatprep.subr.mxu0 %v3848
      %3945 = vmatpush1.msra.mxu0 %v3847
      %3946 = vmatprep.subr.mxu0 %v3844
      %3947 = vmatpush1.msra.mxu0 %v3843
      %3948 = vmatprep.subr.mxu0 %v3840
      %3949 = vmatpush1.msra.mxu0 %v3839
      %3950 = vmatprep.subr.mxu0 %v3836
      %3951 = vmatpush1.msra.mxu0 %v3835
      %3952 = vmatprep.subr.mxu0 %v3832
      %3953 = vmatpush1.msra.mxu0 %v3831
      %3954 = vmatprep.subr.mxu0 %v3828
      %3955 = vmatpush1.msra.mxu0 %v3827
      %3956 = vmatprep.subr.mxu0 %v3824
      %3957 = vmatpush1.msra.mxu0 %v3823
      %3958 = vmatprep.subr.mxu0 %v3820
      %3959 = vmatpush1.msra.mxu0 %v3819
      %3960 = vmatprep.subr.mxu0 %v3816
      %3961 = vmatpush1.msra.mxu0 %v3815
      %3962 = vmatprep.subr.mxu0 0.0
      %3963 = vmatpush2.msra.mxu0 0.0
      %3964 = vmatprep.subr.mxu0 0.0
      %3965 = vmatpush2.msra.mxu0 0.0
      %3966 = vmatprep.subr.mxu0 0.0
      %3967 = vmatpush2.msra.mxu0 0.0
      %3968 = vmatprep.subr.mxu0 0.0
      %3969 = vmatpush2.msra.mxu0 0.0
      %3970 = vmatprep.subr.mxu0 %v3924
      %3971 = vmatpush2.msra.mxu0 %v3923
      %3972 = vmatprep.subr.mxu0 %v3920
      %3973 = vmatpush2.msra.mxu0 %v3919
      %3974 = vmatprep.subr.mxu0 %v3916
      %3975 = vmatpush2.msra.mxu0 %v3915
      %3976 = vmatprep.subr.mxu0 %v3912
      %3977 = vmatpush2.msra.mxu0 %v3911
      %3978 = vmatprep.subr.mxu0 %v3908
      %3979 = vmatpush2.msra.mxu0 %v3907
      %3980 = vmatprep.subr.mxu0 %v3904
      %3981 = vmatpush2.msra.mxu0 %v3903
      %3982 = vmatprep.subr.mxu0 %v3900
      %3983 = vmatpush2.msra.mxu0 %v3899
      %3984 = vmatprep.subr.mxu0 %v3896
      %3985 = vmatpush2.msra.mxu0 %v3895
      %3986 = vmatprep.subr.mxu0 %v3892
      %3987 = vmatpush2.msra.mxu0 %v3891
      %3988 = vmatprep.subr.mxu0 %v3888
      %3989 = vmatpush2.msra.mxu0 %v3887
      %3990 = vmatprep.subr.mxu0 %v3884
      %3991 = vmatpush2.msra.mxu0 %v3883
      %3992 = vmatprep.subr.mxu0 %v3880
      %3993 = vmatpush2.msra.mxu0 %v3879
      %3994 = vmatprep.mubr.f32.mxu0 %v3928
      %3995 = vmatmul.mubr.f32.gmra.mxu0 %v3813
      %v3996 = vpop.f32.mrf.mxu0
      %v3997 = vadd.f32 0.0, %v3996
      %v3998 = vpop.f32.mrf.mxu0
      %v3999 = vadd.f32 0.0, %v3998
      %4000 = vdwg.mxu0
      %4001 = vmatprep.subr.mxu0 %v3878
      %4002 = vmatpush1.msra.mxu0 %v3877
      %4003 = vmatprep.subr.mxu0 %v3874
      %4004 = vmatpush1.msra.mxu0 %v3873
      %4005 = vmatprep.subr.mxu0 %v3870
      %4006 = vmatpush1.msra.mxu0 %v3869
      %4007 = vmatprep.subr.mxu0 %v3866
      %4008 = vmatpush1.msra.mxu0 %v3865
      %4009 = vmatprep.subr.mxu0 %v3862
      %4010 = vmatpush1.msra.mxu0 %v3861
      %4011 = vmatprep.subr.mxu0 %v3858
      %4012 = vmatpush1.msra.mxu0 %v3857
      %4013 = vmatprep.subr.mxu0 %v3854
      %4014 = vmatpush1.msra.mxu0 %v3853
      %4015 = vmatprep.subr.mxu0 %v3850
      %4016 = vmatpush1.msra.mxu0 %v3849
      %4017 = vmatprep.subr.mxu0 %v3846
      %4018 = vmatpush1.msra.mxu0 %v3845
      %4019 = vmatprep.subr.mxu0 %v3842
      %4020 = vmatpush1.msra.mxu0 %v3841
      %4021 = vmatprep.subr.mxu0 %v3838
      %4022 = vmatpush1.msra.mxu0 %v3837
      %4023 = vmatprep.subr.mxu0 %v3834
      %4024 = vmatpush1.msra.mxu0 %v3833
      %4025 = vmatprep.subr.mxu0 %v3830
      %4026 = vmatpush1.msra.mxu0 %v3829
      %4027 = vmatprep.subr.mxu0 %v3826
      %4028 = vmatpush1.msra.mxu0 %v3825
      %4029 = vmatprep.subr.mxu0 %v3822
      %4030 = vmatpush1.msra.mxu0 %v3821
      %4031 = vmatprep.subr.mxu0 %v3818
      %4032 = vmatpush1.msra.mxu0 %v3817
      %4033 = vmatprep.subr.mxu0 0.0
      %4034 = vmatpush2.msra.mxu0 0.0
      %4035 = vmatprep.subr.mxu0 0.0
      %4036 = vmatpush2.msra.mxu0 0.0
      %4037 = vmatprep.subr.mxu0 0.0
      %4038 = vmatpush2.msra.mxu0 0.0
      %4039 = vmatprep.subr.mxu0 0.0
      %4040 = vmatpush2.msra.mxu0 0.0
      %4041 = vmatprep.subr.mxu0 %v3926
      %4042 = vmatpush2.msra.mxu0 %v3925
      %4043 = vmatprep.subr.mxu0 %v3922
      %4044 = vmatpush2.msra.mxu0 %v3921
      %4045 = vmatprep.subr.mxu0 %v3918
      %4046 = vmatpush2.msra.mxu0 %v3917
      %4047 = vmatprep.subr.mxu0 %v3914
      %4048 = vmatpush2.msra.mxu0 %v3913
      %4049 = vmatprep.subr.mxu0 %v3910
      %4050 = vmatpush2.msra.mxu0 %v3909
      %4051 = vmatprep.subr.mxu0 %v3906
      %4052 = vmatpush2.msra.mxu0 %v3905
      %4053 = vmatprep.subr.mxu0 %v3902
      %4054 = vmatpush2.msra.mxu0 %v3901
      %4055 = vmatprep.subr.mxu0 %v3898
      %4056 = vmatpush2.msra.mxu0 %v3897
      %4057 = vmatprep.subr.mxu0 %v3894
      %4058 = vmatpush2.msra.mxu0 %v3893
      %4059 = vmatprep.subr.mxu0 %v3890
      %4060 = vmatpush2.msra.mxu0 %v3889
      %4061 = vmatprep.subr.mxu0 %v3886
      %4062 = vmatpush2.msra.mxu0 %v3885
      %4063 = vmatprep.subr.mxu0 %v3882
      %4064 = vmatpush2.msra.mxu0 %v3881
      %4065 = vmatprep.mubr.f32.mxu0 %v3928
      %4066 = vmatmul.mubr.f32.gmra.mxu0 %v3813
      %v4067 = vpop.f32.mrf.mxu0
      %v4068 = vadd.f32 0.0, %v4067
      %v4069 = vpop.f32.mrf.mxu0
      %v4070 = vadd.f32 0.0, %v4069
      %4071 = vdwg.mxu0
      %v4072 = vmax.f32 %v3997, 0.0
      %v4073 = vmax.f32 %v3999, 0.0
      %v4074 = vmax.f32 %v4068, 0.0
      %v4075 = vmax.f32 %v4070, 0.0
      %4076 = vst [vmem:[%s197] sm:$0xff] %v4072
      %4077 = vst [vmem:[%s197 + $0x8] sm:$0xff] %v4073
      %4078 = vst [vmem:[%s197 + $0x10] sm:$0xff] %v4074
      %4079 = vst [vmem:[%s197 + $0x18] sm:$0xff] %v4075
      %p4080 = scmp.lt.s32.totalorder %s15, 1
      %s4081 = scalar_select %p4080, %s15, 1
      %s4082 = smul.addr %s4081, 4
      %s4083 = smul.addr %s4082, 8
      %s4084 = scalar_lea.vmem %s4, %s4083
      // Predicated region
      $region37: #{block3d_forward.1} parent=35 // pred_check
        %p4085 = pneg %p122
      $region38: #{block3d_forward.1} parent=35 // pred_check_branch
        %4087 = sbr.rel (%p4085) target = $region40
      $region39: #{block3d_forward.1} parent=35 // pred_region
        _
      $region40: #{block3d_forward.1} parent=35 // pred_fallthru
        _
    $region36: #{block3d_forward.1} parent=5 // pred_fallthru
      _
    %p4088 = scmp.le.s32.totalorder 2, %s10
    // Predicated region
    $region41: #{block3d_forward.1} parent=5 // pred_check
      %p4089 = pneg %p4088
    $region42: #{block3d_forward.1} parent=5 // pred_check_branch
      %4091 = sbr.rel (%p4089) target = $region44
    $region43: #{block3d_forward.1} parent=5 // pred_region
      %s4092 = ssub.s32 %s10, 2
      // Predicated region
      $region45: #{block3d_forward.1} parent=43 // pred_check
        %p4093 = pneg %p128
      $region46: #{block3d_forward.1} parent=43 // pred_check_branch
        %4095 = sbr.rel (%p4093) target = $region48
      $region47: #{block3d_forward.1} parent=43 // pred_region
        %p4096 = scmp.lt.s32.totalorder %s16, 1
        %s4097 = scalar_select %p4096, %s16, 1
        %s4098 = smul.addr %s4097, 4
        %s4099 = smul.addr %s4098, 8
        %s4100 = scalar_lea.vmem %s4, %s4099
      $region48: #{block3d_forward.1} parent=43 // pred_fallthru
        _
    $region44: #{block3d_forward.1} parent=5 // pred_fallthru
      _
  $region6: #{block3d_forward.1} parent=0 // loop_footer
    %s14 = sadd.s32 1, %s10
  $region7: #{block3d_forward.1} parent=0 // loop_footer_branch
    %9 = sbr.rel target = $region3
  $region8: #{block3d_forward.1} parent=0 // loop_exit
    _

</llo_original>
